<compile_context>
chip_gen: v7x
topology: tpu7x:2x2x1
jax: 0.10.0
libtpu: 0.0.40
codegen_flags: <defaults>
</compile_context>

<pallas_src>
import math
import functools

import jax
import jax.numpy as jnp
from jax.experimental import pallas as pl
from jax.experimental.pallas import tpu as pltpu


# ----------------------------- small helpers -------------------------------

def _round_up(x, m):
    return ((x + m - 1) // m) * m


def _ln(x, g, b, eps=1e-5):
    """LayerNorm over the last axis (matches torch.nn.LayerNorm defaults)."""
    mu = jnp.mean(x, axis=-1, keepdims=True)
    var = jnp.mean((x - mu) ** 2, axis=-1, keepdims=True)
    return (x - mu) * jax.lax.rsqrt(var + eps) * g + b


def _mm(a, w_bf16):
    """MXU matmul: bf16 inputs, f32 accumulation."""
    return jnp.dot(a.astype(jnp.bfloat16), w_bf16,
                   preferred_element_type=jnp.float32)


# -------------------------------- kernel ------------------------------------

def encoder_kernel(patch_ref, wpatch_ref, poscls_ref, kbias_ref,
                   lnpre_g_ref, lnpre_b_ref,
                   ln1g_ref, ln1b_ref, wqkv_ref, bqkv_ref, wo_ref, bo_ref,
                   ln2g_ref, ln2b_ref, wfc_ref, bfc_ref, wpr_ref, bpr_ref,
                   lnpost_g_ref, lnpost_b_ref, proj_ref,
                   out_ref, act_ref, ctx_ref, *, num_heads):
    """grid = (batch_tiles, layers); one inner grid step == one resblock.

    The activation is resident in act_ref (VMEM scratch, persists across the
    layer axis); stacked per-layer weights are streamed by BlockSpec
    (double-buffered).  l==0 does patch-embed/ln_pre, l==L-1 does the head.
    """
    l = pl.program_id(1)
    Bt, S, D = act_ref.shape
    H = num_heads
    hd = D // H
    scale = 1.0 / math.sqrt(hd)

    # ---- l == 0 prologue: conv1-as-matmul + (pos + cls) + ln_pre ----------
    @pl.when(l == 0)
    def _():
        Cp = patch_ref.shape[-1]
        emb = _mm(patch_ref[...].reshape(Bt * S, Cp), wpatch_ref[...])
        emb = emb.reshape(Bt, S, D) + poscls_ref[...][None, :, :]
        act_ref[...] = _ln(emb, lnpre_g_ref[...], lnpre_b_ref[...])

    x = act_ref[...]                                  # (Bt, S, D) f32 resident

    # ---- attention: x = x + Wo( softmax(Q K^T / sqrt(hd) + kbias) V ) -----
    xn = _ln(x, ln1g_ref[...], ln1b_ref[...])
    qkv = _mm(xn.reshape(Bt * S, D), wqkv_ref[...]) + bqkv_ref[...]   # (Bt*S, 3D)
    qkv = qkv.reshape(Bt, S, 3 * D)
    kbias = kbias_ref[...].reshape(1, 1, S)           # host-precomputed pad mask

    # TODO(synk): head-grouped / fully head-batched contraction for lane-dense
    #             slices and unmasked ctx stores (hd < 128 splits a vreg).
    for h in range(H):                                # static, small head loop
        sl = slice(h * hd, (h + 1) * hd)
        qh = qkv[:, :, h * hd:(h + 1) * hd].astype(jnp.bfloat16)
        kh = qkv[:, :, D + h * hd:D + (h + 1) * hd].astype(jnp.bfloat16)
        vh = qkv[:, :, 2 * D + h * hd:2 * D + (h + 1) * hd].astype(jnp.bfloat16)

        s = jnp.einsum('bqd,bkd->bqk', qh, kh,
                       preferred_element_type=jnp.float32) * scale + kbias
        s = s - jnp.max(s, axis=-1, keepdims=True)
        p = jnp.exp(s)
        p = p * pl.reciprocal(jnp.sum(p, axis=-1, keepdims=True), approx=True)
        ctx_ref[:, :, sl] = jnp.einsum(
            'bqk,bkd->bqd', p.astype(jnp.bfloat16), vh,
            preferred_element_type=jnp.float32).astype(jnp.bfloat16)

    attn = _mm(ctx_ref[...].reshape(Bt * S, D), wo_ref[...]) + bo_ref[...]
    x = x + attn.reshape(Bt, S, D)

    # ---- MLP: x = x + Wproj( QuickGELU( Wfc(ln_2(x)) ) ) -------------------
    xn2 = _ln(x, ln2g_ref[...], ln2b_ref[...]).reshape(Bt * S, D)
    h1 = _mm(xn2, wfc_ref[...]) + bfc_ref[...]
    h1 = (h1 * jax.nn.sigmoid(1.702 * h1)).astype(jnp.bfloat16)   # QuickGELU
    mlp = jnp.dot(h1, wpr_ref[...],
                  preferred_element_type=jnp.float32) + bpr_ref[...]
    x = x + mlp.reshape(Bt, S, D)
    act_ref[...] = x

    # ---- l == L-1 epilogue: ln_post on CLS token, then @ proj --------------
    @pl.when(l == pl.num_programs(1) - 1)
    def _():
        cls_out = _ln(x[:, 0, :], lnpost_g_ref[...], lnpost_b_ref[...])
        out_ref[...] = _mm(cls_out, proj_ref[...])


# -------------------------------- wrapper -----------------------------------

def _vmem_limit_bytes():
    # Generation-aware budget: v5e/v6e have 128 MiB physical VMEM, v7x 64 MiB.
    try:
        cap = pltpu.get_tpu_info().vmem_capacity_bytes
    except Exception:
        cap = 64 * 1024 * 1024
    return int(cap * 0.7)


def vision_encoder_zs(x, params, *, patch_size, num_heads, batch_tile=None):
    """x: (B, C, H, W) float32 (NCHW, like the PyTorch module)."""
    B, C, Himg, Wimg = x.shape
    ps = patch_size
    gh, gw = Himg // ps, Wimg // ps
    N = gh * gw
    Cp = C * ps * ps
    D = params["conv1_w"].shape[0]
    out_dim = params["proj"].shape[1]
    n_valid = N + 1
    # Lane-dense sequence pad at realistic ViT sizes (e.g. 197 -> 256); cheap
    # multiple-of-8 pad at toy sizes.  Padded keys are masked via key_bias.
    S = _round_up(n_valid, 128) if n_valid >= 128 else _round_up(n_valid, 8)

    # Batch tiling: on v7x pass batch_tile = B // 2 (multiple of 8 at scale) so
    # the "parallel" grid axis spreads tiles across both TensorCores.
    Bt = B if batch_tile is None else batch_tile
    assert B % Bt == 0, "batch_tile must divide batch"

    f32, bf16 = jnp.float32, jnp.bfloat16

    # --- host/XLA glue: one-time layout prep (no per-layer work) -------------
    # conv1 (stride == kernel, no bias) == patch-flatten matmul.  Row 0 (CLS)
    # and pad rows are zero patches; the class embedding is folded into row 0
    # of the (positional + class) table, so the kernel needs no concat.
    patches = x.reshape(B, C, gh, ps, gw, ps).transpose(0, 2, 4, 1, 3, 5)
    patches = patches.reshape(B, N, Cp)
    patches_pad = jnp.zeros((B, S, Cp), f32).at[:, 1:N + 1, :].set(patches)
    w_patch = params["conv1_w"].reshape(D, Cp).T.astype(bf16)

    poscls = jnp.zeros((S, D), f32).at[:n_valid].set(
        params["positional_embedding"])
    poscls = poscls.at[0].add(params["class_embedding"].reshape(D))

    # Key-pad mask built once here (hoisted out of the per-layer kernel body).
    key_bias = jnp.where(jnp.arange(S) < n_valid, 0.0, -1e30).astype(f32)
    key_bias = key_bias.reshape(1, S)

    blk = params["blocks"]
    L = blk["w_qkv"].shape[0]
    proj_bf16 = params["proj"].astype(bf16)

    def const(arr):           # whole-array block, identical for every step
        shp = arr.shape
        return pl.BlockSpec(shp, lambda bt, l, _n=len(shp): (0,) * _n)

    def per_layer(name):      # stacked (L, a, b) weights streamed over layers
        a, b = blk[name].shape[1:]
        return pl.BlockSpec((None, a, b), lambda bt, l: (l, 0, 0))

    grid_spec = pltpu.PrefetchScalarGridSpec(
        num_scalar_prefetch=0,
        grid=(B // Bt, L),
        in_specs=[
            pl.BlockSpec((Bt, S, Cp), lambda bt, l: (bt, 0, 0)),   # patches
            const(w_patch), const(poscls), const(key_bias),
            const(params["ln_pre_g"]), const(params["ln_pre_b"]),
            per_layer("ln1_g"), per_layer("ln1_b"),
            per_layer("w_qkv"), per_layer("b_qkv"),
            per_layer("w_out"), per_layer("b_out"),
            per_layer("ln2_g"), per_layer("ln2_b"),
            per_layer("w_fc"), per_layer("b_fc"),
            per_layer("w_proj"), per_layer("b_proj"),
            const(params["ln_post_g"]), const(params["ln_post_b"]),
            const(proj_bf16),
        ],
        out_specs=pl.BlockSpec((Bt, out_dim), lambda bt, l: (bt, 0)),
        scratch_shapes=[
            pltpu.VMEM((Bt, S, D), jnp.float32),     # resident activation
            pltpu.VMEM((Bt, S, D), jnp.bfloat16),    # per-head attn context
        ],
    )

    return pl.pallas_call(
        functools.partial(encoder_kernel, num_heads=num_heads),
        out_shape=jax.ShapeDtypeStruct((B, out_dim), jnp.float32),
        grid_spec=grid_spec,
        compiler_params=pltpu.CompilerParams(
            dimension_semantics=("parallel", "arbitrary"),
            vmem_limit_bytes=_vmem_limit_bytes()),
    )(patches_pad, w_patch, poscls, key_bias,
      params["ln_pre_g"], params["ln_pre_b"],
      blk["ln1_g"], blk["ln1_b"], blk["w_qkv"], blk["b_qkv"],
      blk["w_out"], blk["b_out"], blk["ln2_g"], blk["ln2_b"],
      blk["w_fc"], blk["b_fc"], blk["w_proj"], blk["b_proj"],
      params["ln_post_g"], params["ln_post_b"], proj_bf16)


# -------------------------- deterministic params ----------------------------

def init_params(key, *, C, patch_size, D, seq_len, num_layers, out_dim):
    f32, bf16 = jnp.float32, jnp.bfloat16

    def normal(k, shape, scale=0.02):
        return (scale * jax.random.normal(k, shape)).astype(f32)

    keys = jax.random.split(key, 12)
    L = num_layers
    return {
        "conv1_w": normal(keys[0], (D, C, patch_size, patch_size)),
        "class_embedding": normal(keys[1], (1, D)),
        "positional_embedding": normal(keys[2], (seq_len, D)),
        "ln_pre_g": jnp.ones((1, D), f32),
        "ln_pre_b": jnp.zeros((1, D), f32),
        "ln_post_g": jnp.ones((1, D), f32),
        "ln_post_b": jnp.zeros((1, D), f32),
        "proj": normal(keys[3], (D, out_dim)),
        "blocks": {   # stacked per-layer weights (layer axis leading)
            "ln1_g": jnp.ones((L, 1, D), f32),
            "ln1_b": jnp.zeros((L, 1, D), f32),
            "w_qkv": normal(keys[4], (L, D, 3 * D)).astype(bf16),
            "b_qkv": normal(keys[5], (L, 1, 3 * D)),
            "w_out": normal(keys[6], (L, D, D)).astype(bf16),
            "b_out": normal(keys[7], (L, 1, D)),
            "ln2_g": jnp.ones((L, 1, D), f32),
            "ln2_b": jnp.zeros((L, 1, D), f32),
            "w_fc": normal(keys[8], (L, D, 4 * D)).astype(bf16),
            "b_fc": normal(keys[9], (L, 1, 4 * D)),
            "w_proj": normal(keys[10], (L, 4 * D, D)).astype(bf16),
            "b_proj": normal(keys[11], (L, 1, D)),
        },
    }


# ---------------------------------- main ------------------------------------

if __name__ == "__main__":
    B, C, IMG, PS = 2, 3, 32, 16            # 2x2 patch grid -> seq 5 (pad to 8)
    D, LAYERS, HEADS, OUT = 128, 2, 4, 128  # width, depth, heads, embed_dim

    key = jax.random.PRNGKey(0)
    kx, kp = jax.random.split(key)
    x = jax.random.normal(kx, (B, C, IMG, IMG), dtype=jnp.float32)

    grid = IMG // PS
    seq_len = grid * grid + 1
    params = init_params(kp, C=C, patch_size=PS, D=D, seq_len=seq_len,
                         num_layers=LAYERS, out_dim=OUT)

    out = vision_encoder_zs(x, params, patch_size=PS, num_heads=HEADS)
    out = jax.block_until_ready(out)
    assert out.shape == (B, OUT), out.shape
    assert bool(jnp.all(jnp.isfinite(out)))
    print("KERNEL_OK")
</pallas_src>

<mosaic_0001>
module attributes {stable_mosaic.version = 11 : i64} {
  func.func @encoder_kernel(%arg0: i32, %arg1: i32, %arg2: memref<2x8x768xf32, #tpu.memory_space<vmem>>, %arg3: memref<768x128xbf16, #tpu.memory_space<vmem>>, %arg4: memref<8x128xf32, #tpu.memory_space<vmem>>, %arg5: memref<1x8xf32, #tpu.memory_space<vmem>>, %arg6: memref<1x128xf32, #tpu.memory_space<vmem>>, %arg7: memref<1x128xf32, #tpu.memory_space<vmem>>, %arg8: memref<1x1x128xf32, #tpu.memory_space<vmem>>, %arg9: memref<1x1x128xf32, #tpu.memory_space<vmem>>, %arg10: memref<1x128x384xbf16, #tpu.memory_space<vmem>>, %arg11: memref<1x1x384xf32, #tpu.memory_space<vmem>>, %arg12: memref<1x128x128xbf16, #tpu.memory_space<vmem>>, %arg13: memref<1x1x128xf32, #tpu.memory_space<vmem>>, %arg14: memref<1x1x128xf32, #tpu.memory_space<vmem>>, %arg15: memref<1x1x128xf32, #tpu.memory_space<vmem>>, %arg16: memref<1x128x512xbf16, #tpu.memory_space<vmem>>, %arg17: memref<1x1x512xf32, #tpu.memory_space<vmem>>, %arg18: memref<1x512x128xbf16, #tpu.memory_space<vmem>>, %arg19: memref<1x1x128xf32, #tpu.memory_space<vmem>>, %arg20: memref<1x128xf32, #tpu.memory_space<vmem>>, %arg21: memref<1x128xf32, #tpu.memory_space<vmem>>, %arg22: memref<128x128xbf16, #tpu.memory_space<vmem>>, %arg23: memref<2x128xf32, #tpu.memory_space<vmem>>, %arg24: memref<2x8x128xf32, #tpu.memory_space<vmem>>, %arg25: memref<2x8x128xbf16, #tpu.memory_space<vmem>>) attributes {dimension_semantics = [#tpu.dimension_semantics<parallel>, #tpu.dimension_semantics<arbitrary>], iteration_bounds = array<i64: 1, 2>, scalar_prefetch = 0 : i64, scratch_operands = 2 : i64, tpu.core_type = #tpu.core_type<tc>, window_params = [{transform_indices = @transform_0, window_bounds = array<i64: 2, 8, 768>}, {pipeline_mode = #tpu.pipeline_mode<synchronous>, transform_indices = @transform_1, window_bounds = array<i64: 768, 128>}, {pipeline_mode = #tpu.pipeline_mode<synchronous>, transform_indices = @transform_2, window_bounds = array<i64: 8, 128>}, {pipeline_mode = #tpu.pipeline_mode<synchronous>, transform_indices = @transform_3, window_bounds = array<i64: 1, 8>}, {pipeline_mode = #tpu.pipeline_mode<synchronous>, transform_indices = @transform_4, window_bounds = array<i64: 1, 128>}, {pipeline_mode = #tpu.pipeline_mode<synchronous>, transform_indices = @transform_5, window_bounds = array<i64: 1, 128>}, {transform_indices = @transform_6, window_bounds = array<i64: 1, 1, 128>}, {transform_indices = @transform_7, window_bounds = array<i64: 1, 1, 128>}, {transform_indices = @transform_8, window_bounds = array<i64: 1, 128, 384>}, {transform_indices = @transform_9, window_bounds = array<i64: 1, 1, 384>}, {transform_indices = @transform_10, window_bounds = array<i64: 1, 128, 128>}, {transform_indices = @transform_11, window_bounds = array<i64: 1, 1, 128>}, {transform_indices = @transform_12, window_bounds = array<i64: 1, 1, 128>}, {transform_indices = @transform_13, window_bounds = array<i64: 1, 1, 128>}, {transform_indices = @transform_14, window_bounds = array<i64: 1, 128, 512>}, {transform_indices = @transform_15, window_bounds = array<i64: 1, 1, 512>}, {transform_indices = @transform_16, window_bounds = array<i64: 1, 512, 128>}, {transform_indices = @transform_17, window_bounds = array<i64: 1, 1, 128>}, {pipeline_mode = #tpu.pipeline_mode<synchronous>, transform_indices = @transform_18, window_bounds = array<i64: 1, 128>}, {pipeline_mode = #tpu.pipeline_mode<synchronous>, transform_indices = @transform_19, window_bounds = array<i64: 1, 128>}, {pipeline_mode = #tpu.pipeline_mode<synchronous>, transform_indices = @transform_20, window_bounds = array<i64: 128, 128>}, {transform_indices = @transform_21, window_bounds = array<i64: 2, 128>}]} {
    %c0_i32 = arith.constant 0 : i32
    %0 = arith.cmpi eq, %arg1, %c0_i32 : i32
    %1 = arith.extui %0 : i1 to i32
    %c0_i32_0 = arith.constant 0 : i32
    %2 = arith.cmpi ne, %1, %c0_i32_0 : i32
    scf.if %2 {
      %c0_92 = arith.constant 0 : index
      %c0_93 = arith.constant 0 : index
      %c0_94 = arith.constant 0 : index
      %214 = vector.load %arg2[%c0_92, %c0_93, %c0_94] : memref<2x8x768xf32, #tpu.memory_space<vmem>>, vector<2x8x768xf32>
      %215 = vector.shape_cast %214 : vector<2x8x768xf32> to vector<16x768xf32>
      %c0_95 = arith.constant 0 : index
      %c0_96 = arith.constant 0 : index
      %216 = vector.load %arg3[%c0_95, %c0_96] : memref<768x128xbf16, #tpu.memory_space<vmem>>, vector<768x128xbf16>
      %217 = arith.truncf %215 : vector<16x768xf32> to vector<16x768xbf16>
      %cst_97 = arith.constant dense<0.000000e+00> : vector<16x128xf32>
      %218 = tpu.matmul %217, %216, %cst_97 {dimension_numbers = #tpu.dot_dimension_numbers<[1], [0], [0], [1], [0, 0, 1, 1], [], []>} : vector<16x768xbf16>, vector<768x128xbf16>, vector<16x128xf32> -> vector<16x128xf32>
      %219 = vector.shape_cast %218 : vector<16x128xf32> to vector<2x8x128xf32>
      %c0_98 = arith.constant 0 : index
      %c0_99 = arith.constant 0 : index
      %220 = vector.load %arg4[%c0_98, %c0_99] : memref<8x128xf32, #tpu.memory_space<vmem>>, vector<8x128xf32>
      %221 = vector.shape_cast %220 : vector<8x128xf32> to vector<1x8x128xf32>
      %222 = vector.broadcast %221 : vector<1x8x128xf32> to vector<2x8x128xf32>
      %223 = arith.addf %219, %222 : vector<2x8x128xf32>
      %c0_100 = arith.constant 0 : index
      %c0_101 = arith.constant 0 : index
      %224 = vector.load %arg6[%c0_100, %c0_101] : memref<1x128xf32, #tpu.memory_space<vmem>>, vector<1x128xf32>
      %c0_102 = arith.constant 0 : index
      %c0_103 = arith.constant 0 : index
      %225 = vector.load %arg7[%c0_102, %c0_103] : memref<1x128xf32, #tpu.memory_space<vmem>>, vector<1x128xf32>
      %cst_104 = arith.constant dense<0.000000e+00> : vector<2x8xf32>
      %226 = vector.multi_reduction <add>, %223, %cst_104 [2] : vector<2x8x128xf32> to vector<2x8xf32>
      %227 = vector.shape_cast %226 : vector<2x8xf32> to vector<2x8x1xf32>
      %cst_105 = arith.constant 1.280000e+02 : f32
      %228 = vector.broadcast %cst_105 : f32 to vector<2x8x1xf32>
      %229 = arith.divf %227, %228 : vector<2x8x1xf32>
      %230 = vector.broadcast %229 : vector<2x8x1xf32> to vector<2x8x128xf32>
      %231 = arith.subf %223, %230 : vector<2x8x128xf32>
      %232 = arith.mulf %231, %231 : vector<2x8x128xf32>
      %cst_106 = arith.constant dense<0.000000e+00> : vector<2x8xf32>
      %233 = vector.multi_reduction <add>, %232, %cst_106 [2] : vector<2x8x128xf32> to vector<2x8xf32>
      %234 = vector.shape_cast %233 : vector<2x8xf32> to vector<2x8x1xf32>
      %cst_107 = arith.constant 1.280000e+02 : f32
      %235 = vector.broadcast %cst_107 : f32 to vector<2x8x1xf32>
      %236 = arith.divf %234, %235 : vector<2x8x1xf32>
      %237 = vector.broadcast %229 : vector<2x8x1xf32> to vector<2x8x128xf32>
      %238 = arith.subf %223, %237 : vector<2x8x128xf32>
      %cst_108 = arith.constant 9.99999974E-6 : f32
      %239 = vector.broadcast %cst_108 : f32 to vector<2x8x1xf32>
      %240 = arith.addf %236, %239 : vector<2x8x1xf32>
      %241 = math.rsqrt %240 : vector<2x8x1xf32>
      %242 = vector.broadcast %241 : vector<2x8x1xf32> to vector<2x8x128xf32>
      %243 = arith.mulf %238, %242 : vector<2x8x128xf32>
      %244 = vector.shape_cast %224 : vector<1x128xf32> to vector<1x1x128xf32>
      %245 = vector.broadcast %244 : vector<1x1x128xf32> to vector<2x8x128xf32>
      %246 = arith.mulf %243, %245 : vector<2x8x128xf32>
      %247 = vector.shape_cast %225 : vector<1x128xf32> to vector<1x1x128xf32>
      %248 = vector.broadcast %247 : vector<1x1x128xf32> to vector<2x8x128xf32>
      %249 = arith.addf %246, %248 : vector<2x8x128xf32>
      %c0_109 = arith.constant 0 : index
      %c0_110 = arith.constant 0 : index
      %c0_111 = arith.constant 0 : index
      %250 = vector.load %arg24[%c0_109, %c0_110, %c0_111] : memref<2x8x128xf32, #tpu.memory_space<vmem>>, vector<2x8x128xf32>
      tpu.vector_store %arg24[%c0_109, %c0_110, %c0_111], %249 {strides = array<i32>} : memref<2x8x128xf32, #tpu.memory_space<vmem>>, vector<2x8x128xf32>,
    } else {
    }
    %c0 = arith.constant 0 : index
    %c0_1 = arith.constant 0 : index
    %c0_2 = arith.constant 0 : index
    %3 = vector.load %arg24[%c0, %c0_1, %c0_2] : memref<2x8x128xf32, #tpu.memory_space<vmem>>, vector<2x8x128xf32>
    %c0_3 = arith.constant 0 : index
    %c0_4 = arith.constant 0 : index
    %c0_5 = arith.constant 0 : index
    %4 = vector.load %arg8[%c0_3, %c0_4, %c0_5] : memref<1x1x128xf32, #tpu.memory_space<vmem>>, vector<1x1x128xf32>
    %5 = vector.shape_cast %4 : vector<1x1x128xf32> to vector<1x128xf32>
    %c0_6 = arith.constant 0 : index
    %c0_7 = arith.constant 0 : index
    %c0_8 = arith.constant 0 : index
    %6 = vector.load %arg9[%c0_6, %c0_7, %c0_8] : memref<1x1x128xf32, #tpu.memory_space<vmem>>, vector<1x1x128xf32>
    %7 = vector.shape_cast %6 : vector<1x1x128xf32> to vector<1x128xf32>
    %cst = arith.constant dense<0.000000e+00> : vector<2x8xf32>
    %8 = vector.multi_reduction <add>, %3, %cst [2] : vector<2x8x128xf32> to vector<2x8xf32>
    %9 = vector.shape_cast %8 : vector<2x8xf32> to vector<2x8x1xf32>
    %cst_9 = arith.constant 1.280000e+02 : f32
    %10 = vector.broadcast %cst_9 : f32 to vector<2x8x1xf32>
    %11 = arith.divf %9, %10 : vector<2x8x1xf32>
    %12 = vector.broadcast %11 : vector<2x8x1xf32> to vector<2x8x128xf32>
    %13 = arith.subf %3, %12 : vector<2x8x128xf32>
    %14 = arith.mulf %13, %13 : vector<2x8x128xf32>
    %cst_10 = arith.constant dense<0.000000e+00> : vector<2x8xf32>
    %15 = vector.multi_reduction <add>, %14, %cst_10 [2] : vector<2x8x128xf32> to vector<2x8xf32>
    %16 = vector.shape_cast %15 : vector<2x8xf32> to vector<2x8x1xf32>
    %cst_11 = arith.constant 1.280000e+02 : f32
    %17 = vector.broadcast %cst_11 : f32 to vector<2x8x1xf32>
    %18 = arith.divf %16, %17 : vector<2x8x1xf32>
    %19 = vector.broadcast %11 : vector<2x8x1xf32> to vector<2x8x128xf32>
    %20 = arith.subf %3, %19 : vector<2x8x128xf32>
    %cst_12 = arith.constant 9.99999974E-6 : f32
    %21 = vector.broadcast %cst_12 : f32 to vector<2x8x1xf32>
    %22 = arith.addf %18, %21 : vector<2x8x1xf32>
    %23 = math.rsqrt %22 : vector<2x8x1xf32>
    %24 = vector.broadcast %23 : vector<2x8x1xf32> to vector<2x8x128xf32>
    %25 = arith.mulf %20, %24 : vector<2x8x128xf32>
    %26 = vector.shape_cast %5 : vector<1x128xf32> to vector<1x1x128xf32>
    %27 = vector.broadcast %26 : vector<1x1x128xf32> to vector<2x8x128xf32>
    %28 = arith.mulf %25, %27 : vector<2x8x128xf32>
    %29 = vector.shape_cast %7 : vector<1x128xf32> to vector<1x1x128xf32>
    %30 = vector.broadcast %29 : vector<1x1x128xf32> to vector<2x8x128xf32>
    %31 = arith.addf %28, %30 : vector<2x8x128xf32>
    %32 = vector.shape_cast %31 : vector<2x8x128xf32> to vector<16x128xf32>
    %c0_13 = arith.constant 0 : index
    %c0_14 = arith.constant 0 : index
    %c0_15 = arith.constant 0 : index
    %33 = vector.load %arg10[%c0_13, %c0_14, %c0_15] : memref<1x128x384xbf16, #tpu.memory_space<vmem>>, vector<1x128x384xbf16>
    %34 = vector.shape_cast %33 : vector<1x128x384xbf16> to vector<128x384xbf16>
    %35 = arith.truncf %32 : vector<16x128xf32> to vector<16x128xbf16>
    %cst_16 = arith.constant dense<0.000000e+00> : vector<16x384xf32>
    %36 = tpu.matmul %35, %34, %cst_16 {dimension_numbers = #tpu.dot_dimension_numbers<[1], [0], [0], [1], [0, 0, 1, 1], [], []>} : vector<16x128xbf16>, vector<128x384xbf16>, vector<16x384xf32> -> vector<16x384xf32>
    %c0_17 = arith.constant 0 : index
    %c0_18 = arith.constant 0 : index
    %c0_19 = arith.constant 0 : index
    %37 = vector.load %arg11[%c0_17, %c0_18, %c0_19] : memref<1x1x384xf32, #tpu.memory_space<vmem>>, vector<1x1x384xf32>
    %38 = vector.shape_cast %37 : vector<1x1x384xf32> to vector<1x384xf32>
    %39 = vector.broadcast %38 : vector<1x384xf32> to vector<16x384xf32>
    %40 = arith.addf %36, %39 : vector<16x384xf32>
    %41 = vector.shape_cast %40 : vector<16x384xf32> to vector<2x8x384xf32>
    %c0_20 = arith.constant 0 : index
    %c0_21 = arith.constant 0 : index
    %42 = vector.load %arg5[%c0_20, %c0_21] : memref<1x8xf32, #tpu.memory_space<vmem>>, vector<1x8xf32>
    %43 = vector.shape_cast %42 : vector<1x8xf32> to vector<1x1x8xf32>
    %44 = vector.extract_strided_slice %41 {offsets = [0, 0, 0], sizes = [2, 8, 32], strides = [1, 1, 1]} : vector<2x8x384xf32> to vector<2x8x32xf32>
    %45 = arith.truncf %44 : vector<2x8x32xf32> to vector<2x8x32xbf16>
    %46 = vector.extract_strided_slice %41 {offsets = [0, 0, 128], sizes = [2, 8, 32], strides = [1, 1, 1]} : vector<2x8x384xf32> to vector<2x8x32xf32>
    %47 = arith.truncf %46 : vector<2x8x32xf32> to vector<2x8x32xbf16>
    %48 = vector.extract_strided_slice %41 {offsets = [0, 0, 256], sizes = [2, 8, 32], strides = [1, 1, 1]} : vector<2x8x384xf32> to vector<2x8x32xf32>
    %49 = arith.truncf %48 : vector<2x8x32xf32> to vector<2x8x32xbf16>
    "tpu.trace_start"() <{level = 10 : i32, message = "bqd,bkd->bqk"}> : () -> ()
    %cst_22 = arith.constant dense<0.000000e+00> : vector<2x8x8xf32>
    %50 = tpu.matmul %45, %47, %cst_22 {dimension_numbers = #tpu.dot_dimension_numbers<[2], [2], [1], [1], [0, 0, 0, 1, 1, 1], [0], [0]>} : vector<2x8x32xbf16>, vector<2x8x32xbf16>, vector<2x8x8xf32> -> vector<2x8x8xf32>
    "tpu.trace_stop"() : () -> ()
    %cst_23 = arith.constant 0.176776692 : f32
    %51 = vector.broadcast %cst_23 : f32 to vector<2x8x8xf32>
    %52 = arith.mulf %50, %51 : vector<2x8x8xf32>
    %53 = vector.broadcast %43 : vector<1x1x8xf32> to vector<2x8x8xf32>
    %54 = arith.addf %52, %53 : vector<2x8x8xf32>
    %cst_24 = arith.constant dense<0xFF800000> : vector<2x8xf32>
    %55 = vector.multi_reduction <maximumf>, %54, %cst_24 [2] : vector<2x8x8xf32> to vector<2x8xf32>
    %56 = vector.shape_cast %55 : vector<2x8xf32> to vector<2x8x1xf32>
    %57 = vector.broadcast %56 : vector<2x8x1xf32> to vector<2x8x8xf32>
    %58 = arith.subf %54, %57 : vector<2x8x8xf32>
    %59 = math.exp %58 : vector<2x8x8xf32>
    %cst_25 = arith.constant dense<0.000000e+00> : vector<2x8xf32>
    %60 = vector.multi_reduction <add>, %59, %cst_25 [2] : vector<2x8x8xf32> to vector<2x8xf32>
    %61 = vector.shape_cast %60 : vector<2x8xf32> to vector<2x8x1xf32>
    %62 = tpu.reciprocal %61 {approx = true} : vector<2x8x1xf32> -> vector<2x8x1xf32>
    %63 = vector.broadcast %62 : vector<2x8x1xf32> to vector<2x8x8xf32>
    %64 = arith.mulf %59, %63 : vector<2x8x8xf32>
    %65 = arith.truncf %64 : vector<2x8x8xf32> to vector<2x8x8xbf16>
    "tpu.trace_start"() <{level = 10 : i32, message = "bqk,bkd->bqd"}> : () -> ()
    %cst_26 = arith.constant dense<0.000000e+00> : vector<2x8x32xf32>
    %66 = tpu.matmul %65, %49, %cst_26 {dimension_numbers = #tpu.dot_dimension_numbers<[2], [1], [1], [2], [0, 0, 0, 1, 1, 2], [0], [0]>} : vector<2x8x8xbf16>, vector<2x8x32xbf16>, vector<2x8x32xf32> -> vector<2x8x32xf32>
    "tpu.trace_stop"() : () -> ()
    %67 = arith.truncf %66 : vector<2x8x32xf32> to vector<2x8x32xbf16>
    %c0_27 = arith.constant 0 : index
    %c0_28 = arith.constant 0 : index
    %c0_29 = arith.constant 0 : index
    %68 = vector.load %arg25[%c0_27, %c0_28, %c0_29] : memref<2x8x128xbf16, #tpu.memory_space<vmem>>, vector<2x8x32xbf16>
    tpu.vector_store %arg25[%c0_27, %c0_28, %c0_29], %67 {strides = array<i32>} : memref<2x8x128xbf16, #tpu.memory_space<vmem>>, vector<2x8x32xbf16>,
    %69 = vector.extract_strided_slice %41 {offsets = [0, 0, 32], sizes = [2, 8, 32], strides = [1, 1, 1]} : vector<2x8x384xf32> to vector<2x8x32xf32>
    %70 = arith.truncf %69 : vector<2x8x32xf32> to vector<2x8x32xbf16>
    %71 = vector.extract_strided_slice %41 {offsets = [0, 0, 160], sizes = [2, 8, 32], strides = [1, 1, 1]} : vector<2x8x384xf32> to vector<2x8x32xf32>
    %72 = arith.truncf %71 : vector<2x8x32xf32> to vector<2x8x32xbf16>
    %73 = vector.extract_strided_slice %41 {offsets = [0, 0, 288], sizes = [2, 8, 32], strides = [1, 1, 1]} : vector<2x8x384xf32> to vector<2x8x32xf32>
    %74 = arith.truncf %73 : vector<2x8x32xf32> to vector<2x8x32xbf16>
    "tpu.trace_start"() <{level = 10 : i32, message = "bqd,bkd->bqk"}> : () -> ()
    %cst_30 = arith.constant dense<0.000000e+00> : vector<2x8x8xf32>
    %75 = tpu.matmul %70, %72, %cst_30 {dimension_numbers = #tpu.dot_dimension_numbers<[2], [2], [1], [1], [0, 0, 0, 1, 1, 1], [0], [0]>} : vector<2x8x32xbf16>, vector<2x8x32xbf16>, vector<2x8x8xf32> -> vector<2x8x8xf32>
    "tpu.trace_stop"() : () -> ()
    %cst_31 = arith.constant 0.176776692 : f32
    %76 = vector.broadcast %cst_31 : f32 to vector<2x8x8xf32>
    %77 = arith.mulf %75, %76 : vector<2x8x8xf32>
    %78 = vector.broadcast %43 : vector<1x1x8xf32> to vector<2x8x8xf32>
    %79 = arith.addf %77, %78 : vector<2x8x8xf32>
    %cst_32 = arith.constant dense<0xFF800000> : vector<2x8xf32>
    %80 = vector.multi_reduction <maximumf>, %79, %cst_32 [2] : vector<2x8x8xf32> to vector<2x8xf32>
    %81 = vector.shape_cast %80 : vector<2x8xf32> to vector<2x8x1xf32>
    %82 = vector.broadcast %81 : vector<2x8x1xf32> to vector<2x8x8xf32>
    %83 = arith.subf %79, %82 : vector<2x8x8xf32>
    %84 = math.exp %83 : vector<2x8x8xf32>
    %cst_33 = arith.constant dense<0.000000e+00> : vector<2x8xf32>
    %85 = vector.multi_reduction <add>, %84, %cst_33 [2] : vector<2x8x8xf32> to vector<2x8xf32>
    %86 = vector.shape_cast %85 : vector<2x8xf32> to vector<2x8x1xf32>
    %87 = tpu.reciprocal %86 {approx = true} : vector<2x8x1xf32> -> vector<2x8x1xf32>
    %88 = vector.broadcast %87 : vector<2x8x1xf32> to vector<2x8x8xf32>
    %89 = arith.mulf %84, %88 : vector<2x8x8xf32>
    %90 = arith.truncf %89 : vector<2x8x8xf32> to vector<2x8x8xbf16>
    "tpu.trace_start"() <{level = 10 : i32, message = "bqk,bkd->bqd"}> : () -> ()
    %cst_34 = arith.constant dense<0.000000e+00> : vector<2x8x32xf32>
    %91 = tpu.matmul %90, %74, %cst_34 {dimension_numbers = #tpu.dot_dimension_numbers<[2], [1], [1], [2], [0, 0, 0, 1, 1, 2], [0], [0]>} : vector<2x8x8xbf16>, vector<2x8x32xbf16>, vector<2x8x32xf32> -> vector<2x8x32xf32>
    "tpu.trace_stop"() : () -> ()
    %92 = arith.truncf %91 : vector<2x8x32xf32> to vector<2x8x32xbf16>
    %c0_35 = arith.constant 0 : index
    %c0_36 = arith.constant 0 : index
    %c32 = arith.constant 32 : index
    %93 = vector.load %arg25[%c0_35, %c0_36, %c32] : memref<2x8x128xbf16, #tpu.memory_space<vmem>>, vector<2x8x32xbf16>
    tpu.vector_store %arg25[%c0_35, %c0_36, %c32], %92 {strides = array<i32>} : memref<2x8x128xbf16, #tpu.memory_space<vmem>>, vector<2x8x32xbf16>,
    %94 = vector.extract_strided_slice %41 {offsets = [0, 0, 64], sizes = [2, 8, 32], strides = [1, 1, 1]} : vector<2x8x384xf32> to vector<2x8x32xf32>
    %95 = arith.truncf %94 : vector<2x8x32xf32> to vector<2x8x32xbf16>
    %96 = vector.extract_strided_slice %41 {offsets = [0, 0, 192], sizes = [2, 8, 32], strides = [1, 1, 1]} : vector<2x8x384xf32> to vector<2x8x32xf32>
    %97 = arith.truncf %96 : vector<2x8x32xf32> to vector<2x8x32xbf16>
    %98 = vector.extract_strided_slice %41 {offsets = [0, 0, 320], sizes = [2, 8, 32], strides = [1, 1, 1]} : vector<2x8x384xf32> to vector<2x8x32xf32>
    %99 = arith.truncf %98 : vector<2x8x32xf32> to vector<2x8x32xbf16>
    "tpu.trace_start"() <{level = 10 : i32, message = "bqd,bkd->bqk"}> : () -> ()
    %cst_37 = arith.constant dense<0.000000e+00> : vector<2x8x8xf32>
    %100 = tpu.matmul %95, %97, %cst_37 {dimension_numbers = #tpu.dot_dimension_numbers<[2], [2], [1], [1], [0, 0, 0, 1, 1, 1], [0], [0]>} : vector<2x8x32xbf16>, vector<2x8x32xbf16>, vector<2x8x8xf32> -> vector<2x8x8xf32>
    "tpu.trace_stop"() : () -> ()
    %cst_38 = arith.constant 0.176776692 : f32
    %101 = vector.broadcast %cst_38 : f32 to vector<2x8x8xf32>
    %102 = arith.mulf %100, %101 : vector<2x8x8xf32>
    %103 = vector.broadcast %43 : vector<1x1x8xf32> to vector<2x8x8xf32>
    %104 = arith.addf %102, %103 : vector<2x8x8xf32>
    %cst_39 = arith.constant dense<0xFF800000> : vector<2x8xf32>
    %105 = vector.multi_reduction <maximumf>, %104, %cst_39 [2] : vector<2x8x8xf32> to vector<2x8xf32>
    %106 = vector.shape_cast %105 : vector<2x8xf32> to vector<2x8x1xf32>
    %107 = vector.broadcast %106 : vector<2x8x1xf32> to vector<2x8x8xf32>
    %108 = arith.subf %104, %107 : vector<2x8x8xf32>
    %109 = math.exp %108 : vector<2x8x8xf32>
    %cst_40 = arith.constant dense<0.000000e+00> : vector<2x8xf32>
    %110 = vector.multi_reduction <add>, %109, %cst_40 [2] : vector<2x8x8xf32> to vector<2x8xf32>
    %111 = vector.shape_cast %110 : vector<2x8xf32> to vector<2x8x1xf32>
    %112 = tpu.reciprocal %111 {approx = true} : vector<2x8x1xf32> -> vector<2x8x1xf32>
    %113 = vector.broadcast %112 : vector<2x8x1xf32> to vector<2x8x8xf32>
    %114 = arith.mulf %109, %113 : vector<2x8x8xf32>
    %115 = arith.truncf %114 : vector<2x8x8xf32> to vector<2x8x8xbf16>
    "tpu.trace_start"() <{level = 10 : i32, message = "bqk,bkd->bqd"}> : () -> ()
    %cst_41 = arith.constant dense<0.000000e+00> : vector<2x8x32xf32>
    %116 = tpu.matmul %115, %99, %cst_41 {dimension_numbers = #tpu.dot_dimension_numbers<[2], [1], [1], [2], [0, 0, 0, 1, 1, 2], [0], [0]>} : vector<2x8x8xbf16>, vector<2x8x32xbf16>, vector<2x8x32xf32> -> vector<2x8x32xf32>
    "tpu.trace_stop"() : () -> ()
    %117 = arith.truncf %116 : vector<2x8x32xf32> to vector<2x8x32xbf16>
    %c0_42 = arith.constant 0 : index
    %c0_43 = arith.constant 0 : index
    %c64 = arith.constant 64 : index
    %118 = vector.load %arg25[%c0_42, %c0_43, %c64] : memref<2x8x128xbf16, #tpu.memory_space<vmem>>, vector<2x8x32xbf16>
    tpu.vector_store %arg25[%c0_42, %c0_43, %c64], %117 {strides = array<i32>} : memref<2x8x128xbf16, #tpu.memory_space<vmem>>, vector<2x8x32xbf16>,
    %119 = vector.extract_strided_slice %41 {offsets = [0, 0, 96], sizes = [2, 8, 32], strides = [1, 1, 1]} : vector<2x8x384xf32> to vector<2x8x32xf32>
    %120 = arith.truncf %119 : vector<2x8x32xf32> to vector<2x8x32xbf16>
    %121 = vector.extract_strided_slice %41 {offsets = [0, 0, 224], sizes = [2, 8, 32], strides = [1, 1, 1]} : vector<2x8x384xf32> to vector<2x8x32xf32>
    %122 = arith.truncf %121 : vector<2x8x32xf32> to vector<2x8x32xbf16>
    %123 = vector.extract_strided_slice %41 {offsets = [0, 0, 352], sizes = [2, 8, 32], strides = [1, 1, 1]} : vector<2x8x384xf32> to vector<2x8x32xf32>
    %124 = arith.truncf %123 : vector<2x8x32xf32> to vector<2x8x32xbf16>
    "tpu.trace_start"() <{level = 10 : i32, message = "bqd,bkd->bqk"}> : () -> ()
    %cst_44 = arith.constant dense<0.000000e+00> : vector<2x8x8xf32>
    %125 = tpu.matmul %120, %122, %cst_44 {dimension_numbers = #tpu.dot_dimension_numbers<[2], [2], [1], [1], [0, 0, 0, 1, 1, 1], [0], [0]>} : vector<2x8x32xbf16>, vector<2x8x32xbf16>, vector<2x8x8xf32> -> vector<2x8x8xf32>
    "tpu.trace_stop"() : () -> ()
    %cst_45 = arith.constant 0.176776692 : f32
    %126 = vector.broadcast %cst_45 : f32 to vector<2x8x8xf32>
    %127 = arith.mulf %125, %126 : vector<2x8x8xf32>
    %128 = vector.broadcast %43 : vector<1x1x8xf32> to vector<2x8x8xf32>
    %129 = arith.addf %127, %128 : vector<2x8x8xf32>
    %cst_46 = arith.constant dense<0xFF800000> : vector<2x8xf32>
    %130 = vector.multi_reduction <maximumf>, %129, %cst_46 [2] : vector<2x8x8xf32> to vector<2x8xf32>
    %131 = vector.shape_cast %130 : vector<2x8xf32> to vector<2x8x1xf32>
    %132 = vector.broadcast %131 : vector<2x8x1xf32> to vector<2x8x8xf32>
    %133 = arith.subf %129, %132 : vector<2x8x8xf32>
    %134 = math.exp %133 : vector<2x8x8xf32>
    %cst_47 = arith.constant dense<0.000000e+00> : vector<2x8xf32>
    %135 = vector.multi_reduction <add>, %134, %cst_47 [2] : vector<2x8x8xf32> to vector<2x8xf32>
    %136 = vector.shape_cast %135 : vector<2x8xf32> to vector<2x8x1xf32>
    %137 = tpu.reciprocal %136 {approx = true} : vector<2x8x1xf32> -> vector<2x8x1xf32>
    %138 = vector.broadcast %137 : vector<2x8x1xf32> to vector<2x8x8xf32>
    %139 = arith.mulf %134, %138 : vector<2x8x8xf32>
    %140 = arith.truncf %139 : vector<2x8x8xf32> to vector<2x8x8xbf16>
    "tpu.trace_start"() <{level = 10 : i32, message = "bqk,bkd->bqd"}> : () -> ()
    %cst_48 = arith.constant dense<0.000000e+00> : vector<2x8x32xf32>
    %141 = tpu.matmul %140, %124, %cst_48 {dimension_numbers = #tpu.dot_dimension_numbers<[2], [1], [1], [2], [0, 0, 0, 1, 1, 2], [0], [0]>} : vector<2x8x8xbf16>, vector<2x8x32xbf16>, vector<2x8x32xf32> -> vector<2x8x32xf32>
    "tpu.trace_stop"() : () -> ()
    %142 = arith.truncf %141 : vector<2x8x32xf32> to vector<2x8x32xbf16>
    %c0_49 = arith.constant 0 : index
    %c0_50 = arith.constant 0 : index
    %c96 = arith.constant 96 : index
    %143 = vector.load %arg25[%c0_49, %c0_50, %c96] : memref<2x8x128xbf16, #tpu.memory_space<vmem>>, vector<2x8x32xbf16>
    tpu.vector_store %arg25[%c0_49, %c0_50, %c96], %142 {strides = array<i32>} : memref<2x8x128xbf16, #tpu.memory_space<vmem>>, vector<2x8x32xbf16>,
    %c0_51 = arith.constant 0 : index
    %c0_52 = arith.constant 0 : index
    %c0_53 = arith.constant 0 : index
    %144 = vector.load %arg25[%c0_51, %c0_52, %c0_53] : memref<2x8x128xbf16, #tpu.memory_space<vmem>>, vector<2x8x128xbf16>
    %145 = vector.shape_cast %144 : vector<2x8x128xbf16> to vector<16x128xbf16>
    %c0_54 = arith.constant 0 : index
    %c0_55 = arith.constant 0 : index
    %c0_56 = arith.constant 0 : index
    %146 = vector.load %arg12[%c0_54, %c0_55, %c0_56] : memref<1x128x128xbf16, #tpu.memory_space<vmem>>, vector<1x128x128xbf16>
    %147 = vector.shape_cast %146 : vector<1x128x128xbf16> to vector<128x128xbf16>
    %cst_57 = arith.constant dense<0.000000e+00> : vector<16x128xf32>
    %148 = tpu.matmul %145, %147, %cst_57 {dimension_numbers = #tpu.dot_dimension_numbers<[1], [0], [0], [1], [0, 0, 1, 1], [], []>} : vector<16x128xbf16>, vector<128x128xbf16>, vector<16x128xf32> -> vector<16x128xf32>
    %c0_58 = arith.constant 0 : index
    %c0_59 = arith.constant 0 : index
    %c0_60 = arith.constant 0 : index
    %149 = vector.load %arg13[%c0_58, %c0_59, %c0_60] : memref<1x1x128xf32, #tpu.memory_space<vmem>>, vector<1x1x128xf32>
    %150 = vector.shape_cast %149 : vector<1x1x128xf32> to vector<1x128xf32>
    %151 = vector.broadcast %150 : vector<1x128xf32> to vector<16x128xf32>
    %152 = arith.addf %148, %151 : vector<16x128xf32>
    %153 = vector.shape_cast %152 : vector<16x128xf32> to vector<2x8x128xf32>
    %154 = arith.addf %3, %153 : vector<2x8x128xf32>
    %c0_61 = arith.constant 0 : index
    %c0_62 = arith.constant 0 : index
    %c0_63 = arith.constant 0 : index
    %155 = vector.load %arg14[%c0_61, %c0_62, %c0_63] : memref<1x1x128xf32, #tpu.memory_space<vmem>>, vector<1x1x128xf32>
    %156 = vector.shape_cast %155 : vector<1x1x128xf32> to vector<1x128xf32>
    %c0_64 = arith.constant 0 : index
    %c0_65 = arith.constant 0 : index
    %c0_66 = arith.constant 0 : index
    %157 = vector.load %arg15[%c0_64, %c0_65, %c0_66] : memref<1x1x128xf32, #tpu.memory_space<vmem>>, vector<1x1x128xf32>
    %158 = vector.shape_cast %157 : vector<1x1x128xf32> to vector<1x128xf32>
    %cst_67 = arith.constant dense<0.000000e+00> : vector<2x8xf32>
    %159 = vector.multi_reduction <add>, %154, %cst_67 [2] : vector<2x8x128xf32> to vector<2x8xf32>
    %160 = vector.shape_cast %159 : vector<2x8xf32> to vector<2x8x1xf32>
    %cst_68 = arith.constant 1.280000e+02 : f32
    %161 = vector.broadcast %cst_68 : f32 to vector<2x8x1xf32>
    %162 = arith.divf %160, %161 : vector<2x8x1xf32>
    %163 = vector.broadcast %162 : vector<2x8x1xf32> to vector<2x8x128xf32>
    %164 = arith.subf %154, %163 : vector<2x8x128xf32>
    %165 = arith.mulf %164, %164 : vector<2x8x128xf32>
    %cst_69 = arith.constant dense<0.000000e+00> : vector<2x8xf32>
    %166 = vector.multi_reduction <add>, %165, %cst_69 [2] : vector<2x8x128xf32> to vector<2x8xf32>
    %167 = vector.shape_cast %166 : vector<2x8xf32> to vector<2x8x1xf32>
    %cst_70 = arith.constant 1.280000e+02 : f32
    %168 = vector.broadcast %cst_70 : f32 to vector<2x8x1xf32>
    %169 = arith.divf %167, %168 : vector<2x8x1xf32>
    %170 = vector.broadcast %162 : vector<2x8x1xf32> to vector<2x8x128xf32>
    %171 = arith.subf %154, %170 : vector<2x8x128xf32>
    %cst_71 = arith.constant 9.99999974E-6 : f32
    %172 = vector.broadcast %cst_71 : f32 to vector<2x8x1xf32>
    %173 = arith.addf %169, %172 : vector<2x8x1xf32>
    %174 = math.rsqrt %173 : vector<2x8x1xf32>
    %175 = vector.broadcast %174 : vector<2x8x1xf32> to vector<2x8x128xf32>
    %176 = arith.mulf %171, %175 : vector<2x8x128xf32>
    %177 = vector.shape_cast %156 : vector<1x128xf32> to vector<1x1x128xf32>
    %178 = vector.broadcast %177 : vector<1x1x128xf32> to vector<2x8x128xf32>
    %179 = arith.mulf %176, %178 : vector<2x8x128xf32>
    %180 = vector.shape_cast %158 : vector<1x128xf32> to vector<1x1x128xf32>
    %181 = vector.broadcast %180 : vector<1x1x128xf32> to vector<2x8x128xf32>
    %182 = arith.addf %179, %181 : vector<2x8x128xf32>
    %183 = vector.shape_cast %182 : vector<2x8x128xf32> to vector<16x128xf32>
    %c0_72 = arith.constant 0 : index
    %c0_73 = arith.constant 0 : index
    %c0_74 = arith.constant 0 : index
    %184 = vector.load %arg16[%c0_72, %c0_73, %c0_74] : memref<1x128x512xbf16, #tpu.memory_space<vmem>>, vector<1x128x512xbf16>
    %185 = vector.shape_cast %184 : vector<1x128x512xbf16> to vector<128x512xbf16>
    %186 = arith.truncf %183 : vector<16x128xf32> to vector<16x128xbf16>
    %cst_75 = arith.constant dense<0.000000e+00> : vector<16x512xf32>
    %187 = tpu.matmul %186, %185, %cst_75 {dimension_numbers = #tpu.dot_dimension_numbers<[1], [0], [0], [1], [0, 0, 1, 1], [], []>} : vector<16x128xbf16>, vector<128x512xbf16>, vector<16x512xf32> -> vector<16x512xf32>
    %c0_76 = arith.constant 0 : index
    %c0_77 = arith.constant 0 : index
    %c0_78 = arith.constant 0 : index
    %188 = vector.load %arg17[%c0_76, %c0_77, %c0_78] : memref<1x1x512xf32, #tpu.memory_space<vmem>>, vector<1x1x512xf32>
    %189 = vector.shape_cast %188 : vector<1x1x512xf32> to vector<1x512xf32>
    %190 = vector.broadcast %189 : vector<1x512xf32> to vector<16x512xf32>
    %191 = arith.addf %187, %190 : vector<16x512xf32>
    %cst_79 = arith.constant 1.702000e+00 : f32
    %192 = vector.broadcast %cst_79 : f32 to vector<16x512xf32>
    %193 = arith.mulf %192, %191 : vector<16x512xf32>
    %194 = arith.negf %193 : vector<16x512xf32>
    %195 = math.exp %194 : vector<16x512xf32>
    %cst_80 = arith.constant 1.000000e+00 : f32
    %196 = vector.broadcast %cst_80 : f32 to vector<16x512xf32>
    %197 = arith.addf %196, %195 : vector<16x512xf32>
    %198 = arith.divf %196, %197 : vector<16x512xf32>
    %199 = arith.mulf %191, %198 : vector<16x512xf32>
    %200 = arith.truncf %199 : vector<16x512xf32> to vector<16x512xbf16>
    %c0_81 = arith.constant 0 : index
    %c0_82 = arith.constant 0 : index
    %c0_83 = arith.constant 0 : index
    %201 = vector.load %arg18[%c0_81, %c0_82, %c0_83] : memref<1x512x128xbf16, #tpu.memory_space<vmem>>, vector<1x512x128xbf16>
    %202 = vector.shape_cast %201 : vector<1x512x128xbf16> to vector<512x128xbf16>
    %cst_84 = arith.constant dense<0.000000e+00> : vector<16x128xf32>
    %203 = tpu.matmul %200, %202, %cst_84 {dimension_numbers = #tpu.dot_dimension_numbers<[1], [0], [0], [1], [0, 0, 1, 1], [], []>} : vector<16x512xbf16>, vector<512x128xbf16>, vector<16x128xf32> -> vector<16x128xf32>
    %c0_85 = arith.constant 0 : index
    %c0_86 = arith.constant 0 : index
    %c0_87 = arith.constant 0 : index
    %204 = vector.load %arg19[%c0_85, %c0_86, %c0_87] : memref<1x1x128xf32, #tpu.memory_space<vmem>>, vector<1x1x128xf32>
    %205 = vector.shape_cast %204 : vector<1x1x128xf32> to vector<1x128xf32>
    %206 = vector.broadcast %205 : vector<1x128xf32> to vector<16x128xf32>
    %207 = arith.addf %203, %206 : vector<16x128xf32>
    %208 = vector.shape_cast %207 : vector<16x128xf32> to vector<2x8x128xf32>
    %209 = arith.addf %154, %208 : vector<2x8x128xf32>
    %c0_88 = arith.constant 0 : index
    %c0_89 = arith.constant 0 : index
    %c0_90 = arith.constant 0 : index
    %210 = vector.load %arg24[%c0_88, %c0_89, %c0_90] : memref<2x8x128xf32, #tpu.memory_space<vmem>>, vector<2x8x128xf32>
    tpu.vector_store %arg24[%c0_88, %c0_89, %c0_90], %209 {strides = array<i32>} : memref<2x8x128xf32, #tpu.memory_space<vmem>>, vector<2x8x128xf32>,
    %c1_i32 = arith.constant 1 : i32
    %211 = arith.cmpi eq, %arg1, %c1_i32 : i32
    %212 = arith.extui %211 : i1 to i32
    %c0_i32_91 = arith.constant 0 : i32
    %213 = arith.cmpi ne, %212, %c0_i32_91 : i32
    scf.if %213 {
      %214 = vector.extract_strided_slice %209 {offsets = [0, 0, 0], sizes = [2, 1, 128], strides = [1, 1, 1]} : vector<2x8x128xf32> to vector<2x1x128xf32>
      %215 = vector.shape_cast %214 : vector<2x1x128xf32> to vector<2x128xf32>
      %c0_92 = arith.constant 0 : index
      %c0_93 = arith.constant 0 : index
      %216 = vector.load %arg20[%c0_92, %c0_93] : memref<1x128xf32, #tpu.memory_space<vmem>>, vector<1x128xf32>
      %c0_94 = arith.constant 0 : index
      %c0_95 = arith.constant 0 : index
      %217 = vector.load %arg21[%c0_94, %c0_95] : memref<1x128xf32, #tpu.memory_space<vmem>>, vector<1x128xf32>
      %cst_96 = arith.constant dense<0.000000e+00> : vector<2xf32>
      %218 = vector.multi_reduction <add>, %215, %cst_96 [1] : vector<2x128xf32> to vector<2xf32>
      %219 = vector.shape_cast %218 : vector<2xf32> to vector<2x1xf32>
      %cst_97 = arith.constant 1.280000e+02 : f32
      %220 = vector.broadcast %cst_97 : f32 to vector<2x1xf32>
      %221 = arith.divf %219, %220 : vector<2x1xf32>
      %222 = vector.broadcast %221 : vector<2x1xf32> to vector<2x128xf32>
      %223 = arith.subf %215, %222 : vector<2x128xf32>
      %224 = arith.mulf %223, %223 : vector<2x128xf32>
      %cst_98 = arith.constant dense<0.000000e+00> : vector<2xf32>
      %225 = vector.multi_reduction <add>, %224, %cst_98 [1] : vector<2x128xf32> to vector<2xf32>
      %226 = vector.shape_cast %225 : vector<2xf32> to vector<2x1xf32>
      %cst_99 = arith.constant 1.280000e+02 : f32
      %227 = vector.broadcast %cst_99 : f32 to vector<2x1xf32>
      %228 = arith.divf %226, %227 : vector<2x1xf32>
      %229 = vector.broadcast %221 : vector<2x1xf32> to vector<2x128xf32>
      %230 = arith.subf %215, %229 : vector<2x128xf32>
      %cst_100 = arith.constant 9.99999974E-6 : f32
      %231 = vector.broadcast %cst_100 : f32 to vector<2x1xf32>
      %232 = arith.addf %228, %231 : vector<2x1xf32>
      %233 = math.rsqrt %232 : vector<2x1xf32>
      %234 = vector.broadcast %233 : vector<2x1xf32> to vector<2x128xf32>
      %235 = arith.mulf %230, %234 : vector<2x128xf32>
      %236 = vector.broadcast %216 : vector<1x128xf32> to vector<2x128xf32>
      %237 = arith.mulf %235, %236 : vector<2x128xf32>
      %238 = vector.broadcast %217 : vector<1x128xf32> to vector<2x128xf32>
      %239 = arith.addf %237, %238 : vector<2x128xf32>
      %c0_101 = arith.constant 0 : index
      %c0_102 = arith.constant 0 : index
      %240 = vector.load %arg22[%c0_101, %c0_102] : memref<128x128xbf16, #tpu.memory_space<vmem>>, vector<128x128xbf16>
      %241 = arith.truncf %239 : vector<2x128xf32> to vector<2x128xbf16>
      %cst_103 = arith.constant dense<0.000000e+00> : vector<2x128xf32>
      %242 = tpu.matmul %241, %240, %cst_103 {dimension_numbers = #tpu.dot_dimension_numbers<[1], [0], [0], [1], [0, 0, 1, 1], [], []>} : vector<2x128xbf16>, vector<128x128xbf16>, vector<2x128xf32> -> vector<2x128xf32>
      %c0_104 = arith.constant 0 : index
      %c0_105 = arith.constant 0 : index
      %243 = vector.load %arg23[%c0_104, %c0_105] : memref<2x128xf32, #tpu.memory_space<vmem>>, vector<2x128xf32>
      tpu.vector_store %arg23[%c0_104, %c0_105], %242 {strides = array<i32>} : memref<2x128xf32, #tpu.memory_space<vmem>>, vector<2x128xf32>,
    } else {
    }
    return
  }
  func.func @transform_0(%arg0: i32, %arg1: i32) -> (i32, i32, i32) {
    %c0_i32 = arith.constant 0 : i32
    %c0_i32_0 = arith.constant 0 : i32
    %c0_i32_1 = arith.constant 0 : i32
    return %arg0, %c0_i32, %c0_i32_0 : i32, i32, i32
  }
  func.func @transform_1(%arg0: i32, %arg1: i32) -> (i32, i32) {
    %c0_i32 = arith.constant 0 : i32
    %c0_i32_0 = arith.constant 0 : i32
    %c0_i32_1 = arith.constant 0 : i32
    return %c0_i32, %c0_i32_0 : i32, i32
  }
  func.func @transform_2(%arg0: i32, %arg1: i32) -> (i32, i32) {
    %c0_i32 = arith.constant 0 : i32
    %c0_i32_0 = arith.constant 0 : i32
    %c0_i32_1 = arith.constant 0 : i32
    return %c0_i32, %c0_i32_0 : i32, i32
  }
  func.func @transform_3(%arg0: i32, %arg1: i32) -> (i32, i32) {
    %c0_i32 = arith.constant 0 : i32
    %c0_i32_0 = arith.constant 0 : i32
    %c0_i32_1 = arith.constant 0 : i32
    return %c0_i32, %c0_i32_0 : i32, i32
  }
  func.func @transform_4(%arg0: i32, %arg1: i32) -> (i32, i32) {
    %c0_i32 = arith.constant 0 : i32
    %c0_i32_0 = arith.constant 0 : i32
    %c0_i32_1 = arith.constant 0 : i32
    return %c0_i32, %c0_i32_0 : i32, i32
  }
  func.func @transform_5(%arg0: i32, %arg1: i32) -> (i32, i32) {
    %c0_i32 = arith.constant 0 : i32
    %c0_i32_0 = arith.constant 0 : i32
    %c0_i32_1 = arith.constant 0 : i32
    return %c0_i32, %c0_i32_0 : i32, i32
  }
  func.func @transform_6(%arg0: i32, %arg1: i32) -> (i32, i32, i32) {
    %c0_i32 = arith.constant 0 : i32
    %c0_i32_0 = arith.constant 0 : i32
    %c0_i32_1 = arith.constant 0 : i32
    return %arg1, %c0_i32, %c0_i32_0 : i32, i32, i32
  }
  func.func @transform_7(%arg0: i32, %arg1: i32) -> (i32, i32, i32) {
    %c0_i32 = arith.constant 0 : i32
    %c0_i32_0 = arith.constant 0 : i32
    %c0_i32_1 = arith.constant 0 : i32
    return %arg1, %c0_i32, %c0_i32_0 : i32, i32, i32
  }
  func.func @transform_8(%arg0: i32, %arg1: i32) -> (i32, i32, i32) {
    %c0_i32 = arith.constant 0 : i32
    %c0_i32_0 = arith.constant 0 : i32
    %c0_i32_1 = arith.constant 0 : i32
    return %arg1, %c0_i32, %c0_i32_0 : i32, i32, i32
  }
  func.func @transform_9(%arg0: i32, %arg1: i32) -> (i32, i32, i32) {
    %c0_i32 = arith.constant 0 : i32
    %c0_i32_0 = arith.constant 0 : i32
    %c0_i32_1 = arith.constant 0 : i32
    return %arg1, %c0_i32, %c0_i32_0 : i32, i32, i32
  }
  func.func @transform_10(%arg0: i32, %arg1: i32) -> (i32, i32, i32) {
    %c0_i32 = arith.constant 0 : i32
    %c0_i32_0 = arith.constant 0 : i32
    %c0_i32_1 = arith.constant 0 : i32
    return %arg1, %c0_i32, %c0_i32_0 : i32, i32, i32
  }
  func.func @transform_11(%arg0: i32, %arg1: i32) -> (i32, i32, i32) {
    %c0_i32 = arith.constant 0 : i32
    %c0_i32_0 = arith.constant 0 : i32
    %c0_i32_1 = arith.constant 0 : i32
    return %arg1, %c0_i32, %c0_i32_0 : i32, i32, i32
  }
  func.func @transform_12(%arg0: i32, %arg1: i32) -> (i32, i32, i32) {
    %c0_i32 = arith.constant 0 : i32
    %c0_i32_0 = arith.constant 0 : i32
    %c0_i32_1 = arith.constant 0 : i32
    return %arg1, %c0_i32, %c0_i32_0 : i32, i32, i32
  }
  func.func @transform_13(%arg0: i32, %arg1: i32) -> (i32, i32, i32) {
    %c0_i32 = arith.constant 0 : i32
    %c0_i32_0 = arith.constant 0 : i32
    %c0_i32_1 = arith.constant 0 : i32
    return %arg1, %c0_i32, %c0_i32_0 : i32, i32, i32
  }
  func.func @transform_14(%arg0: i32, %arg1: i32) -> (i32, i32, i32) {
    %c0_i32 = arith.constant 0 : i32
    %c0_i32_0 = arith.constant 0 : i32
    %c0_i32_1 = arith.constant 0 : i32
    return %arg1, %c0_i32, %c0_i32_0 : i32, i32, i32
  }
  func.func @transform_15(%arg0: i32, %arg1: i32) -> (i32, i32, i32) {
    %c0_i32 = arith.constant 0 : i32
    %c0_i32_0 = arith.constant 0 : i32
    %c0_i32_1 = arith.constant 0 : i32
    return %arg1, %c0_i32, %c0_i32_0 : i32, i32, i32
  }
  func.func @transform_16(%arg0: i32, %arg1: i32) -> (i32, i32, i32) {
    %c0_i32 = arith.constant 0 : i32
    %c0_i32_0 = arith.constant 0 : i32
    %c0_i32_1 = arith.constant 0 : i32
    return %arg1, %c0_i32, %c0_i32_0 : i32, i32, i32
  }
  func.func @transform_17(%arg0: i32, %arg1: i32) -> (i32, i32, i32) {
    %c0_i32 = arith.constant 0 : i32
    %c0_i32_0 = arith.constant 0 : i32
    %c0_i32_1 = arith.constant 0 : i32
    return %arg1, %c0_i32, %c0_i32_0 : i32, i32, i32
  }
  func.func @transform_18(%arg0: i32, %arg1: i32) -> (i32, i32) {
    %c0_i32 = arith.constant 0 : i32
    %c0_i32_0 = arith.constant 0 : i32
    %c0_i32_1 = arith.constant 0 : i32
    return %c0_i32, %c0_i32_0 : i32, i32
  }
  func.func @transform_19(%arg0: i32, %arg1: i32) -> (i32, i32) {
    %c0_i32 = arith.constant 0 : i32
    %c0_i32_0 = arith.constant 0 : i32
    %c0_i32_1 = arith.constant 0 : i32
    return %c0_i32, %c0_i32_0 : i32, i32
  }
  func.func @transform_20(%arg0: i32, %arg1: i32) -> (i32, i32) {
    %c0_i32 = arith.constant 0 : i32
    %c0_i32_0 = arith.constant 0 : i32
    %c0_i32_1 = arith.constant 0 : i32
    return %c0_i32, %c0_i32_0 : i32, i32
  }
  func.func @transform_21(%arg0: i32, %arg1: i32) -> (i32, i32) {
    %c0_i32 = arith.constant 0 : i32
    %c0_i32_0 = arith.constant 0 : i32
    return %arg0, %c0_i32 : i32, i32
  }
}

</mosaic_0001>

<llo_original>
// kernel: tpu_custom_call.1
$region0: #{tpu_custom_call.1}
  #allocation0 [shape = 'u32[]', space=smem, size = 0x4, offset = 0x4, fixed_abs, tag = 'smem constant byte address 0x4 - core index']
  #allocation1 [shape = 'u32[144,128]{1,0:T(1,128)}', space=vmem, size = 0x12000, scoped, tag = 'internal scratch']
  #allocation2 [shape = 'f32[2,8,128]{2,1,0:T(8,128)}', space=vmem, size = 0x2000, scoped, tag = 'scratch operand']
  #allocation3 [shape = 'bf16[2,8,128]{2,1,0:T(8,128)(2,1)}', space=vmem, size = 0x1000, scoped, tag = 'scratch operand']
  %s0 = inlined_call_operand.hbm [shape: f32[2,8,768], index: 0, kind: input, shape index: {}]
  %s1 = inlined_call_operand.hbm [shape: bf16[768,128], index: 1, kind: input, shape index: {}]
  %s2 = inlined_call_operand.hbm [shape: f32[8,128], index: 2, kind: input, shape index: {}]
  %s3 = inlined_call_operand.vmem [shape: f32[1,8], index: 3, kind: input, shape index: {}]
  %s4 = inlined_call_operand.hbm [shape: f32[1,128], index: 4, kind: input, shape index: {}]
  %s5 = inlined_call_operand.hbm [shape: f32[1,128], index: 5, kind: input, shape index: {}]
  %s6 = inlined_call_operand.vmem [shape: f32[2,1,128], index: 6, kind: input, shape index: {}]
  %s7 = inlined_call_operand.hbm [shape: f32[2,1,128], index: 7, kind: input, shape index: {}]
  %s8 = inlined_call_operand.hbm [shape: bf16[2,128,384], index: 8, kind: input, shape index: {}]
  %s9 = inlined_call_operand.hbm [shape: f32[2,1,384], index: 9, kind: input, shape index: {}]
  %s10 = inlined_call_operand.hbm [shape: bf16[2,128,128], index: 10, kind: input, shape index: {}]
  %s11 = inlined_call_operand.hbm [shape: f32[2,1,128], index: 11, kind: input, shape index: {}]
  %s12 = inlined_call_operand.hbm [shape: f32[2,1,128], index: 12, kind: input, shape index: {}]
  %s13 = inlined_call_operand.hbm [shape: f32[2,1,128], index: 13, kind: input, shape index: {}]
  %s14 = inlined_call_operand.hbm [shape: bf16[2,128,512], index: 14, kind: input, shape index: {}]
  %s15 = inlined_call_operand.vmem [shape: f32[2,1,512], index: 15, kind: input, shape index: {}]
  %s16 = inlined_call_operand.hbm [shape: bf16[2,512,128], index: 16, kind: input, shape index: {}]
  %s17 = inlined_call_operand.hbm [shape: f32[2,1,128], index: 17, kind: input, shape index: {}]
  %s18 = inlined_call_operand.hbm [shape: f32[1,128], index: 18, kind: input, shape index: {}]
  %s19 = inlined_call_operand.hbm [shape: f32[1,128], index: 19, kind: input, shape index: {}]
  %s20 = inlined_call_operand.vmem [shape: bf16[128,128], index: 20, kind: input, shape index: {}]
  %s21 = inlined_call_operand.hbm [shape: f32[2,128], index: 21, kind: output, shape index: {}]
  %s22 = sld [smem:[#allocation0]]
  $region193: #{tpu_custom_call.1} parent=0
    _
  %s24 = ssub.s32 1, %s22
  %s25 = scalar_select 0, %s24, %s22
  $region1: #{tpu_custom_call.1} parent=0
    #allocation4 [shape = 'u8[49152]{0}', space=vmem, size = 0xc000, scoped, tag = 'input window, operand 0, single buffered']
    #allocation5 [shape = 's32[2]{0}', space=sflag, size = 0x8, scoped, tag = 'scoped memory for tpu_custom_call.1']
    #allocation6 [shape = 's32[2]{0}', space=sflag, size = 0x8, scoped, tag = 'scoped memory for tpu_custom_call.1']
    #allocation7 [shape = 'u8[196608]{0}', space=vmem, size = 0x30000, scoped, tag = 'input window, operand 1, single buffered']
    #allocation8 [shape = 's32[1]{0}', space=sflag, size = 0x4, scoped, tag = 'scoped memory for tpu_custom_call.1']
    #allocation9 [shape = 'u8[4096]{0}', space=vmem, size = 0x1000, scoped, tag = 'input window, operand 2, single buffered']
    #allocation10 [shape = 'u8[512]{0}', space=vmem, size = 0x400, scoped, tag = 'input window, operand 4, single buffered']
    #allocation11 [shape = 's32[1]{0}', space=sflag, size = 0x4, scoped, tag = 'scoped memory for tpu_custom_call.1']
    #allocation12 [shape = 'u8[512]{0}', space=vmem, size = 0x400, scoped, tag = 'input window, operand 5, single buffered']
    #allocation13 [shape = 'u8[1024]{0}', space=vmem, size = 0x400, scoped, tag = 'input window, operand 7']
    #allocation14 [shape = 's32[2]{0}', space=sflag, size = 0x8, scoped, tag = 'scoped memory for tpu_custom_call.1']
    #allocation15 [shape = 'u8[196608]{0}', space=vmem, size = 0x30000, scoped, tag = 'input window, operand 8']
    #allocation16 [shape = 'u8[3072]{0}', space=vmem, size = 0xc00, scoped, tag = 'input window, operand 9']
    #allocation17 [shape = 's32[2]{0}', space=sflag, size = 0x8, scoped, tag = 'scoped memory for tpu_custom_call.1']
    #allocation18 [shape = 'u8[65536]{0}', space=vmem, size = 0x10000, scoped, tag = 'input window, operand 10']
    #allocation19 [shape = 'u8[1024]{0}', space=vmem, size = 0x400, scoped, tag = 'input window, operand 11']
    #allocation20 [shape = 's32[2]{0}', space=sflag, size = 0x8, scoped, tag = 'scoped memory for tpu_custom_call.1']
    #allocation21 [shape = 'u8[1024]{0}', space=vmem, size = 0x400, scoped, tag = 'input window, operand 12']
    #allocation22 [shape = 'u8[1024]{0}', space=vmem, size = 0x400, scoped, tag = 'input window, operand 13']
    #allocation23 [shape = 's32[2]{0}', space=sflag, size = 0x8, scoped, tag = 'scoped memory for tpu_custom_call.1']
    #allocation24 [shape = 'u8[262144]{0}', space=vmem, size = 0x40000, scoped, tag = 'input window, operand 14']
    #allocation25 [shape = 'u8[262144]{0}', space=vmem, size = 0x40000, scoped, tag = 'input window, operand 16']
    #allocation26 [shape = 's32[2]{0}', space=sflag, size = 0x8, scoped, tag = 'scoped memory for tpu_custom_call.1']
    #allocation27 [shape = 'u8[1024]{0}', space=vmem, size = 0x400, scoped, tag = 'input window, operand 17']
    #allocation28 [shape = 'u8[512]{0}', space=vmem, size = 0x400, scoped, tag = 'input window, operand 18, single buffered']
    #allocation29 [shape = 's32[1]{0}', space=sflag, size = 0x4, scoped, tag = 'scoped memory for tpu_custom_call.1']
    #allocation30 [shape = 'u8[512]{0}', space=vmem, size = 0x400, scoped, tag = 'input window, operand 19, single buffered']
    #allocation31 [shape = 'u8[1024]{0}', space=vmem, size = 0x400, scoped, tag = 'output window, operand 0, single buffered']
    %26 = vsyncpa [#allocation5], 0
    %27 = vsyncpa [#allocation8], 0
    %28 = vsyncpa [#allocation11], 0
    %29 = vsyncpa [#allocation14], 0
    %s30 = scalar_lea.sflag [#allocation14], 1
    %31 = vsyncpa %s30, 0
    %32 = vsyncpa [#allocation17], 0
    %s33 = scalar_lea.sflag [#allocation17], 1
    %34 = vsyncpa %s33, 0
    %35 = vsyncpa [#allocation20], 0
    %s36 = scalar_lea.sflag [#allocation20], 1
    %37 = vsyncpa %s36, 0
    %38 = vsyncpa [#allocation23], 0
    %s39 = scalar_lea.sflag [#allocation23], 1
    %40 = vsyncpa %s39, 0
    %41 = vsyncpa [#allocation26], 0
    %s42 = scalar_lea.sflag [#allocation26], 1
    %43 = vsyncpa %s42, 0
    %44 = vsyncpa [#allocation29], 0
    %45 = vsyncpa [#allocation6], 0
    loop: start=0, step=1, limit=4
    $region2: #{tpu_custom_call.1} parent=1 // loop_pre_header
      _
    $region3: #{tpu_custom_call.1} parent=1 // loop_header
      %s47 = sphi 0, %s51
      %p48 = scmp.ge.s32.totalorder %s47, 4
      %s54 = sphi 0, %s66
      %s55 = sphi 0, %s62
      %s56 = sphi 0, %s54
      %s57 = sphi 0, %s55
      %s58 = sphi 0, %s56
      %s59 = sphi 0, %s57
      %s69 = sphi 0, %s71
      %s72 = sphi 0, %s69
      %s73 = sphi 0, %s72
      %s89 = sphi 0, %s73
      %s93 = sphi 0, %s93
      %s95 = sphi 0, %s93
      %s96 = sphi 0, %s95
      %s110 = sphi 0, %s96
      %s114 = sphi 0, %s114
      %s116 = sphi 0, %s114
      %s117 = sphi 0, %s116
      %s131 = sphi 0, %s117
      %s135 = sphi 0, %s135
      %s137 = sphi 0, %s135
      %s138 = sphi 0, %s137
      %s152 = sphi 0, %s138
      %s156 = sphi 0, %s156
      %s158 = sphi 0, %s156
      %s159 = sphi 0, %s158
      %s173 = sphi 0, %s159
      %s177 = sphi 0, %s177
      %s179 = sphi 0, %s177
      %s180 = sphi 0, %s179
      %s194 = sphi 0, %s180
      %s200 = sphi 0, %s202
      %s203 = sphi 0, %s200
      %s204 = sphi 0, %s203
      %s220 = sphi 0, %s204
      %s226 = sphi 0, %s228
      %s229 = sphi 0, %s226
      %s230 = sphi 0, %s229
      %s246 = sphi 0, %s230
      %s252 = sphi 0, %s254
      %s255 = sphi 0, %s252
      %s256 = sphi 0, %s255
      %s272 = sphi 0, %s256
      %s278 = sphi 0, %s280
      %s281 = sphi 0, %s278
      %s282 = sphi 0, %s281
      %s298 = sphi 0, %s282
      %s304 = sphi 0, %s306
      %s307 = sphi 0, %s304
      %s308 = sphi 0, %s307
      %s324 = sphi 0, %s308
      %s330 = sphi 0, %s332
      %s333 = sphi 0, %s330
      %s334 = sphi 0, %s333
      %s350 = sphi 0, %s334
      %s356 = sphi 0, %s358
      %s359 = sphi 0, %s356
      %s360 = sphi 0, %s359
      %s376 = sphi 0, %s360
      %s382 = sphi 0, %s384
      %s385 = sphi 0, %s382
      %s386 = sphi 0, %s385
      %s402 = sphi 0, %s386
      %s408 = sphi 0, %s410
      %s411 = sphi 0, %s408
      %s412 = sphi 0, %s411
      %s428 = sphi 0, %s412
      %s434 = sphi 0, %s436
      %s437 = sphi 0, %s434
      %s438 = sphi 0, %s437
      %s454 = sphi 0, %s438
      %s460 = sphi 0, %s462
      %s463 = sphi 0, %s460
      %s464 = sphi 0, %s463
      %s480 = sphi 0, %s464
      %s486 = sphi 0, %s488
      %s489 = sphi 0, %s486
      %s490 = sphi 0, %s489
      %s506 = sphi 0, %s490
      %s510 = sphi 0, %s510
      %s512 = sphi 0, %s510
      %s513 = sphi 0, %s512
      %s527 = sphi 0, %s513
      %s531 = sphi 0, %s531
      %s533 = sphi 0, %s531
      %s534 = sphi 0, %s533
      %s548 = sphi 0, %s534
      %s552 = sphi 0, %s552
      %s554 = sphi 0, %s552
      %s555 = sphi 0, %s554
      %s569 = sphi 0, %s555
      %s575 = sphi 0, %s577
      %s578 = sphi 0, %s575
      %s579 = sphi 0, %s578
      %s595 = sphi 0, %s579
    $region4: #{tpu_custom_call.1} parent=1 // loop_header_branch
      %50 = sbr.rel (%p48) target = $region8
    $region5: #{tpu_custom_call.1} parent=1 // loop_body
      %s52 = ssub.s32 %s47, 1
      %s53 = ssub.s32 %s47, 2
      %s60 = sadd.s32 1, %s55
      %p61 = scmp.ge.s32.totalorder %s60, 2
      %s62 = scalar_select %p61, 0, %s60
      %s63 = sadd.s32 1, %s54
      %s64 = scalar_select %p61, %s63, %s54
      %p65 = scmp.ge.s32.totalorder %s64, 1
      %s66 = scalar_select %p65, 0, %s64
      %s67 = ssub.s32 %s54, %s66
      %p68 = scmp.eq.s32.totalorder %s67, 0
      %s70 = sadd.s32 %s69, 1
      %s71 = scalar_select %p68, %s69, %s70
      %p74 = pneg %p68
      %p75 = scmp.eq.s32.totalorder %s47, 1
      %p76 = por %p74, %p75
      %p77 = scmp.ne.s32.totalorder %s69, %s72
      %p78 = scmp.eq.s32.totalorder %s47, 0
      %p79 = por %p77, %p78
      %p80 = scmp.ne.s32.totalorder %s69, %s72
      %p81 = scmp.eq.s32.totalorder %s52, 1
      %p82 = por %p80, %p81
      %p83 = scmp.ne.s32.totalorder %s72, %s73
      %p84 = scmp.eq.s32.totalorder %s52, 0
      %p85 = por %p83, %p84
      %p86 = scmp.ne.s32.totalorder %s72, %s73
      %p87 = scmp.eq.s32.totalorder %s53, 1
      %p88 = por %p86, %p87
      %p90 = scmp.ne.s32.totalorder %s73, %s89
      %p91 = scmp.eq.s32.totalorder %s53, 0
      %p92 = por %p90, %p91
      %s94 = sadd.s32 %s93, 1
      %p97 = scmp.eq.s32.totalorder %s47, 1
      %p98 = scmp.ne.s32.totalorder %s93, %s95
      %p99 = scmp.eq.s32.totalorder %s47, 0
      %p100 = por %p98, %p99
      %p101 = scmp.ne.s32.totalorder %s93, %s95
      %p102 = scmp.eq.s32.totalorder %s52, 1
      %p103 = por %p101, %p102
      %p104 = scmp.ne.s32.totalorder %s95, %s96
      %p105 = scmp.eq.s32.totalorder %s52, 0
      %p106 = por %p104, %p105
      %p107 = scmp.ne.s32.totalorder %s95, %s96
      %p108 = scmp.eq.s32.totalorder %s53, 1
      %p109 = por %p107, %p108
      %p111 = scmp.ne.s32.totalorder %s96, %s110
      %p112 = scmp.eq.s32.totalorder %s53, 0
      %p113 = por %p111, %p112
      %s115 = sadd.s32 %s114, 1
      %p118 = scmp.eq.s32.totalorder %s47, 1
      %p119 = scmp.ne.s32.totalorder %s114, %s116
      %p120 = scmp.eq.s32.totalorder %s47, 0
      %p121 = por %p119, %p120
      %p122 = scmp.ne.s32.totalorder %s114, %s116
      %p123 = scmp.eq.s32.totalorder %s52, 1
      %p124 = por %p122, %p123
      %p125 = scmp.ne.s32.totalorder %s116, %s117
      %p126 = scmp.eq.s32.totalorder %s52, 0
      %p127 = por %p125, %p126
      %p128 = scmp.ne.s32.totalorder %s116, %s117
      %p129 = scmp.eq.s32.totalorder %s53, 1
      %p130 = por %p128, %p129
      %p132 = scmp.ne.s32.totalorder %s117, %s131
      %p133 = scmp.eq.s32.totalorder %s53, 0
      %p134 = por %p132, %p133
      %s136 = sadd.s32 %s135, 1
      %p139 = scmp.eq.s32.totalorder %s47, 1
      %p140 = scmp.ne.s32.totalorder %s135, %s137
      %p141 = scmp.eq.s32.totalorder %s47, 0
      %p142 = por %p140, %p141
      %p143 = scmp.ne.s32.totalorder %s135, %s137
      %p144 = scmp.eq.s32.totalorder %s52, 1
      %p145 = por %p143, %p144
      %p146 = scmp.ne.s32.totalorder %s137, %s138
      %p147 = scmp.eq.s32.totalorder %s52, 0
      %p148 = por %p146, %p147
      %p149 = scmp.ne.s32.totalorder %s137, %s138
      %p150 = scmp.eq.s32.totalorder %s53, 1
      %p151 = por %p149, %p150
      %p153 = scmp.ne.s32.totalorder %s138, %s152
      %p154 = scmp.eq.s32.totalorder %s53, 0
      %p155 = por %p153, %p154
      %s157 = sadd.s32 %s156, 1
      %p160 = scmp.eq.s32.totalorder %s47, 1
      %p161 = scmp.ne.s32.totalorder %s156, %s158
      %p162 = scmp.eq.s32.totalorder %s47, 0
      %p163 = por %p161, %p162
      %p164 = scmp.ne.s32.totalorder %s156, %s158
      %p165 = scmp.eq.s32.totalorder %s52, 1
      %p166 = por %p164, %p165
      %p167 = scmp.ne.s32.totalorder %s158, %s159
      %p168 = scmp.eq.s32.totalorder %s52, 0
      %p169 = por %p167, %p168
      %p170 = scmp.ne.s32.totalorder %s158, %s159
      %p171 = scmp.eq.s32.totalorder %s53, 1
      %p172 = por %p170, %p171
      %p174 = scmp.ne.s32.totalorder %s159, %s173
      %p175 = scmp.eq.s32.totalorder %s53, 0
      %p176 = por %p174, %p175
      %s178 = sadd.s32 %s177, 1
      %p181 = scmp.eq.s32.totalorder %s47, 1
      %p182 = scmp.ne.s32.totalorder %s177, %s179
      %p183 = scmp.eq.s32.totalorder %s47, 0
      %p184 = por %p182, %p183
      %p185 = scmp.ne.s32.totalorder %s177, %s179
      %p186 = scmp.eq.s32.totalorder %s52, 1
      %p187 = por %p185, %p186
      %p188 = scmp.ne.s32.totalorder %s179, %s180
      %p189 = scmp.eq.s32.totalorder %s52, 0
      %p190 = por %p188, %p189
      %p191 = scmp.ne.s32.totalorder %s179, %s180
      %p192 = scmp.eq.s32.totalorder %s53, 1
      %p193 = por %p191, %p192
      %p195 = scmp.ne.s32.totalorder %s180, %s194
      %p196 = scmp.eq.s32.totalorder %s53, 0
      %p197 = por %p195, %p196
      %s198 = ssub.s32 %s55, %s62
      %p199 = scmp.eq.s32.totalorder %s198, 0
      %s201 = sadd.s32 %s200, 1
      %s202 = scalar_select %p199, %s200, %s201
      %p205 = pneg %p199
      %p206 = scmp.eq.s32.totalorder %s47, 1
      %p207 = por %p205, %p206
      %p208 = scmp.ne.s32.totalorder %s200, %s203
      %p209 = scmp.eq.s32.totalorder %s47, 0
      %p210 = por %p208, %p209
      %p211 = scmp.ne.s32.totalorder %s200, %s203
      %p212 = scmp.eq.s32.totalorder %s52, 1
      %p213 = por %p211, %p212
      %p214 = scmp.ne.s32.totalorder %s203, %s204
      %p215 = scmp.eq.s32.totalorder %s52, 0
      %p216 = por %p214, %p215
      %p217 = scmp.ne.s32.totalorder %s203, %s204
      %p218 = scmp.eq.s32.totalorder %s53, 1
      %p219 = por %p217, %p218
      %p221 = scmp.ne.s32.totalorder %s204, %s220
      %p222 = scmp.eq.s32.totalorder %s53, 0
      %p223 = por %p221, %p222
      %s224 = ssub.s32 %s55, %s62
      %p225 = scmp.eq.s32.totalorder %s224, 0
      %s227 = sadd.s32 %s226, 1
      %s228 = scalar_select %p225, %s226, %s227
      %p231 = pneg %p225
      %p232 = scmp.eq.s32.totalorder %s47, 1
      %p233 = por %p231, %p232
      %p234 = scmp.ne.s32.totalorder %s226, %s229
      %p235 = scmp.eq.s32.totalorder %s47, 0
      %p236 = por %p234, %p235
      %p237 = scmp.ne.s32.totalorder %s226, %s229
      %p238 = scmp.eq.s32.totalorder %s52, 1
      %p239 = por %p237, %p238
      %p240 = scmp.ne.s32.totalorder %s229, %s230
      %p241 = scmp.eq.s32.totalorder %s52, 0
      %p242 = por %p240, %p241
      %p243 = scmp.ne.s32.totalorder %s229, %s230
      %p244 = scmp.eq.s32.totalorder %s53, 1
      %p245 = por %p243, %p244
      %p247 = scmp.ne.s32.totalorder %s230, %s246
      %p248 = scmp.eq.s32.totalorder %s53, 0
      %p249 = por %p247, %p248
      %s250 = ssub.s32 %s55, %s62
      %p251 = scmp.eq.s32.totalorder %s250, 0
      %s253 = sadd.s32 %s252, 1
      %s254 = scalar_select %p251, %s252, %s253
      %p257 = pneg %p251
      %p258 = scmp.eq.s32.totalorder %s47, 1
      %p259 = por %p257, %p258
      %p260 = scmp.ne.s32.totalorder %s252, %s255
      %p261 = scmp.eq.s32.totalorder %s47, 0
      %p262 = por %p260, %p261
      %p263 = scmp.ne.s32.totalorder %s252, %s255
      %p264 = scmp.eq.s32.totalorder %s52, 1
      %p265 = por %p263, %p264
      %p266 = scmp.ne.s32.totalorder %s255, %s256
      %p267 = scmp.eq.s32.totalorder %s52, 0
      %p268 = por %p266, %p267
      %p269 = scmp.ne.s32.totalorder %s255, %s256
      %p270 = scmp.eq.s32.totalorder %s53, 1
      %p271 = por %p269, %p270
      %p273 = scmp.ne.s32.totalorder %s256, %s272
      %p274 = scmp.eq.s32.totalorder %s53, 0
      %p275 = por %p273, %p274
      %s276 = ssub.s32 %s55, %s62
      %p277 = scmp.eq.s32.totalorder %s276, 0
      %s279 = sadd.s32 %s278, 1
      %s280 = scalar_select %p277, %s278, %s279
      %p283 = pneg %p277
      %p284 = scmp.eq.s32.totalorder %s47, 1
      %p285 = por %p283, %p284
      %p286 = scmp.ne.s32.totalorder %s278, %s281
      %p287 = scmp.eq.s32.totalorder %s47, 0
      %p288 = por %p286, %p287
      %p289 = scmp.ne.s32.totalorder %s278, %s281
      %p290 = scmp.eq.s32.totalorder %s52, 1
      %p291 = por %p289, %p290
      %p292 = scmp.ne.s32.totalorder %s281, %s282
      %p293 = scmp.eq.s32.totalorder %s52, 0
      %p294 = por %p292, %p293
      %p295 = scmp.ne.s32.totalorder %s281, %s282
      %p296 = scmp.eq.s32.totalorder %s53, 1
      %p297 = por %p295, %p296
      %p299 = scmp.ne.s32.totalorder %s282, %s298
      %p300 = scmp.eq.s32.totalorder %s53, 0
      %p301 = por %p299, %p300
      %s302 = ssub.s32 %s55, %s62
      %p303 = scmp.eq.s32.totalorder %s302, 0
      %s305 = sadd.s32 %s304, 1
      %s306 = scalar_select %p303, %s304, %s305
      %p309 = pneg %p303
      %p310 = scmp.eq.s32.totalorder %s47, 1
      %p311 = por %p309, %p310
      %p312 = scmp.ne.s32.totalorder %s304, %s307
      %p313 = scmp.eq.s32.totalorder %s47, 0
      %p314 = por %p312, %p313
      %p315 = scmp.ne.s32.totalorder %s304, %s307
      %p316 = scmp.eq.s32.totalorder %s52, 1
      %p317 = por %p315, %p316
      %p318 = scmp.ne.s32.totalorder %s307, %s308
      %p319 = scmp.eq.s32.totalorder %s52, 0
      %p320 = por %p318, %p319
      %p321 = scmp.ne.s32.totalorder %s307, %s308
      %p322 = scmp.eq.s32.totalorder %s53, 1
      %p323 = por %p321, %p322
      %p325 = scmp.ne.s32.totalorder %s308, %s324
      %p326 = scmp.eq.s32.totalorder %s53, 0
      %p327 = por %p325, %p326
      %s328 = ssub.s32 %s55, %s62
      %p329 = scmp.eq.s32.totalorder %s328, 0
      %s331 = sadd.s32 %s330, 1
      %s332 = scalar_select %p329, %s330, %s331
      %p335 = pneg %p329
      %p336 = scmp.eq.s32.totalorder %s47, 1
      %p337 = por %p335, %p336
      %p338 = scmp.ne.s32.totalorder %s330, %s333
      %p339 = scmp.eq.s32.totalorder %s47, 0
      %p340 = por %p338, %p339
      %p341 = scmp.ne.s32.totalorder %s330, %s333
      %p342 = scmp.eq.s32.totalorder %s52, 1
      %p343 = por %p341, %p342
      %p344 = scmp.ne.s32.totalorder %s333, %s334
      %p345 = scmp.eq.s32.totalorder %s52, 0
      %p346 = por %p344, %p345
      %p347 = scmp.ne.s32.totalorder %s333, %s334
      %p348 = scmp.eq.s32.totalorder %s53, 1
      %p349 = por %p347, %p348
      %p351 = scmp.ne.s32.totalorder %s334, %s350
      %p352 = scmp.eq.s32.totalorder %s53, 0
      %p353 = por %p351, %p352
      %s354 = ssub.s32 %s55, %s62
      %p355 = scmp.eq.s32.totalorder %s354, 0
      %s357 = sadd.s32 %s356, 1
      %s358 = scalar_select %p355, %s356, %s357
      %p361 = pneg %p355
      %p362 = scmp.eq.s32.totalorder %s47, 1
      %p363 = por %p361, %p362
      %p364 = scmp.ne.s32.totalorder %s356, %s359
      %p365 = scmp.eq.s32.totalorder %s47, 0
      %p366 = por %p364, %p365
      %p367 = scmp.ne.s32.totalorder %s356, %s359
      %p368 = scmp.eq.s32.totalorder %s52, 1
      %p369 = por %p367, %p368
      %p370 = scmp.ne.s32.totalorder %s359, %s360
      %p371 = scmp.eq.s32.totalorder %s52, 0
      %p372 = por %p370, %p371
      %p373 = scmp.ne.s32.totalorder %s359, %s360
      %p374 = scmp.eq.s32.totalorder %s53, 1
      %p375 = por %p373, %p374
      %p377 = scmp.ne.s32.totalorder %s360, %s376
      %p378 = scmp.eq.s32.totalorder %s53, 0
      %p379 = por %p377, %p378
      %s380 = ssub.s32 %s55, %s62
      %p381 = scmp.eq.s32.totalorder %s380, 0
      %s383 = sadd.s32 %s382, 1
      %s384 = scalar_select %p381, %s382, %s383
      %p387 = pneg %p381
      %p388 = scmp.eq.s32.totalorder %s47, 1
      %p389 = por %p387, %p388
      %p390 = scmp.ne.s32.totalorder %s382, %s385
      %p391 = scmp.eq.s32.totalorder %s47, 0
      %p392 = por %p390, %p391
      %p393 = scmp.ne.s32.totalorder %s382, %s385
      %p394 = scmp.eq.s32.totalorder %s52, 1
      %p395 = por %p393, %p394
      %p396 = scmp.ne.s32.totalorder %s385, %s386
      %p397 = scmp.eq.s32.totalorder %s52, 0
      %p398 = por %p396, %p397
      %p399 = scmp.ne.s32.totalorder %s385, %s386
      %p400 = scmp.eq.s32.totalorder %s53, 1
      %p401 = por %p399, %p400
      %p403 = scmp.ne.s32.totalorder %s386, %s402
      %p404 = scmp.eq.s32.totalorder %s53, 0
      %p405 = por %p403, %p404
      %s406 = ssub.s32 %s55, %s62
      %p407 = scmp.eq.s32.totalorder %s406, 0
      %s409 = sadd.s32 %s408, 1
      %s410 = scalar_select %p407, %s408, %s409
      %p413 = pneg %p407
      %p414 = scmp.eq.s32.totalorder %s47, 1
      %p415 = por %p413, %p414
      %p416 = scmp.ne.s32.totalorder %s408, %s411
      %p417 = scmp.eq.s32.totalorder %s47, 0
      %p418 = por %p416, %p417
      %p419 = scmp.ne.s32.totalorder %s408, %s411
      %p420 = scmp.eq.s32.totalorder %s52, 1
      %p421 = por %p419, %p420
      %p422 = scmp.ne.s32.totalorder %s411, %s412
      %p423 = scmp.eq.s32.totalorder %s52, 0
      %p424 = por %p422, %p423
      %p425 = scmp.ne.s32.totalorder %s411, %s412
      %p426 = scmp.eq.s32.totalorder %s53, 1
      %p427 = por %p425, %p426
      %p429 = scmp.ne.s32.totalorder %s412, %s428
      %p430 = scmp.eq.s32.totalorder %s53, 0
      %p431 = por %p429, %p430
      %s432 = ssub.s32 %s55, %s62
      %p433 = scmp.eq.s32.totalorder %s432, 0
      %s435 = sadd.s32 %s434, 1
      %s436 = scalar_select %p433, %s434, %s435
      %p439 = pneg %p433
      %p440 = scmp.eq.s32.totalorder %s47, 1
      %p441 = por %p439, %p440
      %p442 = scmp.ne.s32.totalorder %s434, %s437
      %p443 = scmp.eq.s32.totalorder %s47, 0
      %p444 = por %p442, %p443
      %p445 = scmp.ne.s32.totalorder %s434, %s437
      %p446 = scmp.eq.s32.totalorder %s52, 1
      %p447 = por %p445, %p446
      %p448 = scmp.ne.s32.totalorder %s437, %s438
      %p449 = scmp.eq.s32.totalorder %s52, 0
      %p450 = por %p448, %p449
      %p451 = scmp.ne.s32.totalorder %s437, %s438
      %p452 = scmp.eq.s32.totalorder %s53, 1
      %p453 = por %p451, %p452
      %p455 = scmp.ne.s32.totalorder %s438, %s454
      %p456 = scmp.eq.s32.totalorder %s53, 0
      %p457 = por %p455, %p456
      %s458 = ssub.s32 %s55, %s62
      %p459 = scmp.eq.s32.totalorder %s458, 0
      %s461 = sadd.s32 %s460, 1
      %s462 = scalar_select %p459, %s460, %s461
      %p465 = pneg %p459
      %p466 = scmp.eq.s32.totalorder %s47, 1
      %p467 = por %p465, %p466
      %p468 = scmp.ne.s32.totalorder %s460, %s463
      %p469 = scmp.eq.s32.totalorder %s47, 0
      %p470 = por %p468, %p469
      %p471 = scmp.ne.s32.totalorder %s460, %s463
      %p472 = scmp.eq.s32.totalorder %s52, 1
      %p473 = por %p471, %p472
      %p474 = scmp.ne.s32.totalorder %s463, %s464
      %p475 = scmp.eq.s32.totalorder %s52, 0
      %p476 = por %p474, %p475
      %p477 = scmp.ne.s32.totalorder %s463, %s464
      %p478 = scmp.eq.s32.totalorder %s53, 1
      %p479 = por %p477, %p478
      %p481 = scmp.ne.s32.totalorder %s464, %s480
      %p482 = scmp.eq.s32.totalorder %s53, 0
      %p483 = por %p481, %p482
      %s484 = ssub.s32 %s55, %s62
      %p485 = scmp.eq.s32.totalorder %s484, 0
      %s487 = sadd.s32 %s486, 1
      %s488 = scalar_select %p485, %s486, %s487
      %p491 = pneg %p485
      %p492 = scmp.eq.s32.totalorder %s47, 1
      %p493 = por %p491, %p492
      %p494 = scmp.ne.s32.totalorder %s486, %s489
      %p495 = scmp.eq.s32.totalorder %s47, 0
      %p496 = por %p494, %p495
      %p497 = scmp.ne.s32.totalorder %s486, %s489
      %p498 = scmp.eq.s32.totalorder %s52, 1
      %p499 = por %p497, %p498
      %p500 = scmp.ne.s32.totalorder %s489, %s490
      %p501 = scmp.eq.s32.totalorder %s52, 0
      %p502 = por %p500, %p501
      %p503 = scmp.ne.s32.totalorder %s489, %s490
      %p504 = scmp.eq.s32.totalorder %s53, 1
      %p505 = por %p503, %p504
      %p507 = scmp.ne.s32.totalorder %s490, %s506
      %p508 = scmp.eq.s32.totalorder %s53, 0
      %p509 = por %p507, %p508
      %s511 = sadd.s32 %s510, 1
      %p514 = scmp.eq.s32.totalorder %s47, 1
      %p515 = scmp.ne.s32.totalorder %s510, %s512
      %p516 = scmp.eq.s32.totalorder %s47, 0
      %p517 = por %p515, %p516
      %p518 = scmp.ne.s32.totalorder %s510, %s512
      %p519 = scmp.eq.s32.totalorder %s52, 1
      %p520 = por %p518, %p519
      %p521 = scmp.ne.s32.totalorder %s512, %s513
      %p522 = scmp.eq.s32.totalorder %s52, 0
      %p523 = por %p521, %p522
      %p524 = scmp.ne.s32.totalorder %s512, %s513
      %p525 = scmp.eq.s32.totalorder %s53, 1
      %p526 = por %p524, %p525
      %p528 = scmp.ne.s32.totalorder %s513, %s527
      %p529 = scmp.eq.s32.totalorder %s53, 0
      %p530 = por %p528, %p529
      %s532 = sadd.s32 %s531, 1
      %p535 = scmp.eq.s32.totalorder %s47, 1
      %p536 = scmp.ne.s32.totalorder %s531, %s533
      %p537 = scmp.eq.s32.totalorder %s47, 0
      %p538 = por %p536, %p537
      %p539 = scmp.ne.s32.totalorder %s531, %s533
      %p540 = scmp.eq.s32.totalorder %s52, 1
      %p541 = por %p539, %p540
      %p542 = scmp.ne.s32.totalorder %s533, %s534
      %p543 = scmp.eq.s32.totalorder %s52, 0
      %p544 = por %p542, %p543
      %p545 = scmp.ne.s32.totalorder %s533, %s534
      %p546 = scmp.eq.s32.totalorder %s53, 1
      %p547 = por %p545, %p546
      %p549 = scmp.ne.s32.totalorder %s534, %s548
      %p550 = scmp.eq.s32.totalorder %s53, 0
      %p551 = por %p549, %p550
      %s553 = sadd.s32 %s552, 1
      %p556 = scmp.eq.s32.totalorder %s47, 1
      %p557 = scmp.ne.s32.totalorder %s552, %s554
      %p558 = scmp.eq.s32.totalorder %s47, 0
      %p559 = por %p557, %p558
      %p560 = scmp.ne.s32.totalorder %s552, %s554
      %p561 = scmp.eq.s32.totalorder %s52, 1
      %p562 = por %p560, %p561
      %p563 = scmp.ne.s32.totalorder %s554, %s555
      %p564 = scmp.eq.s32.totalorder %s52, 0
      %p565 = por %p563, %p564
      %p566 = scmp.ne.s32.totalorder %s554, %s555
      %p567 = scmp.eq.s32.totalorder %s53, 1
      %p568 = por %p566, %p567
      %p570 = scmp.ne.s32.totalorder %s555, %s569
      %p571 = scmp.eq.s32.totalorder %s53, 0
      %p572 = por %p570, %p571
      %s573 = ssub.s32 %s54, %s66
      %p574 = scmp.eq.s32.totalorder %s573, 0
      %s576 = sadd.s32 %s575, 1
      %s577 = scalar_select %p574, %s575, %s576
      %p580 = pneg %p574
      %p581 = scmp.eq.s32.totalorder %s47, 1
      %p582 = por %p580, %p581
      %p583 = scmp.ne.s32.totalorder %s575, %s578
      %p584 = scmp.eq.s32.totalorder %s47, 0
      %p585 = por %p583, %p584
      %p586 = scmp.ne.s32.totalorder %s575, %s578
      %p587 = scmp.eq.s32.totalorder %s52, 1
      %p588 = por %p586, %p587
      %p589 = scmp.ne.s32.totalorder %s578, %s579
      %p590 = scmp.eq.s32.totalorder %s52, 0
      %p591 = por %p589, %p590
      %p592 = scmp.ne.s32.totalorder %s578, %s579
      %p593 = scmp.eq.s32.totalorder %s53, 1
      %p594 = por %p592, %p593
      %p596 = scmp.ne.s32.totalorder %s579, %s595
      %p597 = scmp.eq.s32.totalorder %s53, 0
      %p598 = por %p596, %p597
      %p599 = scmp.le.s32.totalorder 1, %s47
      %p600 = scmp.lt.s32.totalorder %s47, 3
      %p601 = pnand %p599, %p600
      %p602 = pneg %p601
      // Predicated region
      $region9: #{tpu_custom_call.1} parent=5 // pred_check
        _
      $region10: #{tpu_custom_call.1} parent=5 // pred_check_branch
        %604 = sbr.rel (%p601) target = $region12
      $region11: #{tpu_custom_call.1} parent=5 // pred_region
        %s605 = ssub.s32 %s47, 1
        // Predicated region
        $region13: #{tpu_custom_call.1} parent=11 // pred_check
          %p606 = pneg %p85
        $region14: #{tpu_custom_call.1} parent=11 // pred_check_branch
          %608 = sbr.rel (%p606) target = $region16
        $region15: #{tpu_custom_call.1} parent=11 // pred_region
          %s609 = smul.u32 2, %s56
          %s611 = ssub.s32 1536, 1536
          %612 = vsyncadd [#allocation5], %s611
          %s613 = smul.addr %s609, 6
          %s614 = smul.addr %s613, 128
          %s615 = scalar_lea.hbm %s0, %s614
          %s616 = sshll.u32 [#allocation4], 4
          %s617 = int_to_ptr.vmem [resolvable:$true] %s616
          %622 = dma.hbm_to_vmem [thread:$0]  %s615, 1536, %s617, [#allocation5], 768, 768, 48
        $region16: #{tpu_custom_call.1} parent=11 // pred_fallthru
          _
        // Predicated region
        $region17: #{tpu_custom_call.1} parent=11 // pred_check
          %p623 = pneg %p106
        $region18: #{tpu_custom_call.1} parent=11 // pred_check_branch
          %625 = sbr.rel (%p623) target = $region20
        $region19: #{tpu_custom_call.1} parent=11 // pred_region
          %s627 = ssub.s32 6144, 6144
          %628 = vsyncadd [#allocation8], %s627
          %s629 = sshll.u32 [#allocation7], 4
          %s630 = int_to_ptr.vmem [resolvable:$true] %s629
          %635 = dma.hbm_to_vmem [thread:$0]  %s1, 6144, %s630, [#allocation8], 64, 64, 4
        $region20: #{tpu_custom_call.1} parent=11 // pred_fallthru
          _
        // Predicated region
        $region21: #{tpu_custom_call.1} parent=11 // pred_check
          %p636 = pneg %p127
        $region22: #{tpu_custom_call.1} parent=11 // pred_check_branch
          %638 = sbr.rel (%p636) target = $region24
        $region23: #{tpu_custom_call.1} parent=11 // pred_region
          %s640 = ssub.s32 128, 128
          %641 = vsyncadd [#allocation8], %s640
          %s643 = sshll.u32 [#allocation9], 4
          %s644 = int_to_ptr.vmem [resolvable:$true] %s643
          %646 = dma.hbm_to_vmem [thread:$0]  %s2, 128, %s644, [#allocation8]
        $region24: #{tpu_custom_call.1} parent=11 // pred_fallthru
          _
        // Predicated region
        $region25: #{tpu_custom_call.1} parent=11 // pred_check
          %p647 = pneg %p148
        $region26: #{tpu_custom_call.1} parent=11 // pred_check_branch
          %649 = sbr.rel (%p647) target = $region28
        $region27: #{tpu_custom_call.1} parent=11 // pred_region
          _
        $region28: #{tpu_custom_call.1} parent=11 // pred_fallthru
          _
        // Predicated region
        $region29: #{tpu_custom_call.1} parent=11 // pred_check
          %p650 = pneg %p169
        $region30: #{tpu_custom_call.1} parent=11 // pred_check_branch
          %652 = sbr.rel (%p650) target = $region32
        $region31: #{tpu_custom_call.1} parent=11 // pred_region
          %s654 = ssub.s32 16, 16
          %655 = vsyncadd [#allocation11], %s654
          %s657 = sshll.u32 [#allocation10], 4
          %s658 = int_to_ptr.vmem [resolvable:$true] %s657
          %660 = dma.hbm_to_vmem [thread:$0]  %s4, 16, %s658, [#allocation11]
        $region32: #{tpu_custom_call.1} parent=11 // pred_fallthru
          _
        // Predicated region
        $region33: #{tpu_custom_call.1} parent=11 // pred_check
          %p661 = pneg %p190
        $region34: #{tpu_custom_call.1} parent=11 // pred_check_branch
          %663 = sbr.rel (%p661) target = $region36
        $region35: #{tpu_custom_call.1} parent=11 // pred_region
          %s665 = ssub.s32 16, 16
          %666 = vsyncadd [#allocation11], %s665
          %s668 = sshll.u32 [#allocation12], 4
          %s669 = int_to_ptr.vmem [resolvable:$true] %s668
          %671 = dma.hbm_to_vmem [thread:$0]  %s5, 16, %s669, [#allocation11]
        $region36: #{tpu_custom_call.1} parent=11 // pred_fallthru
          _
        // Predicated region
        $region37: #{tpu_custom_call.1} parent=11 // pred_check
          %p672 = pneg %p523
        $region38: #{tpu_custom_call.1} parent=11 // pred_check_branch
          %674 = sbr.rel (%p672) target = $region40
        $region39: #{tpu_custom_call.1} parent=11 // pred_region
          %s676 = ssub.s32 16, 16
          %677 = vsyncadd [#allocation29], %s676
          %s679 = sshll.u32 [#allocation28], 4
          %s680 = int_to_ptr.vmem [resolvable:$true] %s679
          %682 = dma.hbm_to_vmem [thread:$0]  %s18, 16, %s680, [#allocation29]
        $region40: #{tpu_custom_call.1} parent=11 // pred_fallthru
          _
        // Predicated region
        $region41: #{tpu_custom_call.1} parent=11 // pred_check
          %p683 = pneg %p544
        $region42: #{tpu_custom_call.1} parent=11 // pred_check_branch
          %685 = sbr.rel (%p683) target = $region44
        $region43: #{tpu_custom_call.1} parent=11 // pred_region
          %s687 = ssub.s32 16, 16
          %688 = vsyncadd [#allocation29], %s687
          %s690 = sshll.u32 [#allocation30], 4
          %s691 = int_to_ptr.vmem [resolvable:$true] %s690
          %693 = dma.hbm_to_vmem [thread:$0]  %s19, 16, %s691, [#allocation29]
        $region44: #{tpu_custom_call.1} parent=11 // pred_fallthru
          _
        // Predicated region
        $region45: #{tpu_custom_call.1} parent=11 // pred_check
          %p694 = pneg %p565
        $region46: #{tpu_custom_call.1} parent=11 // pred_check_branch
          %696 = sbr.rel (%p694) target = $region48
        $region47: #{tpu_custom_call.1} parent=11 // pred_region
          _
        $region48: #{tpu_custom_call.1} parent=11 // pred_fallthru
          _
      $region12: #{tpu_custom_call.1} parent=5 // pred_fallthru
        _
      %p697 = scmp.lt.s32.totalorder %s47, 2
      // Predicated region
      $region49: #{tpu_custom_call.1} parent=5 // pred_check
        %p698 = pneg %p697
      $region50: #{tpu_custom_call.1} parent=5 // pred_check_branch
        %700 = sbr.rel (%p698) target = $region52
      $region51: #{tpu_custom_call.1} parent=5 // pred_region
        // Predicated region
        $region53: #{tpu_custom_call.1} parent=51 // pred_check
          %p701 = pneg %p210
        $region54: #{tpu_custom_call.1} parent=51 // pred_check_branch
          %703 = sbr.rel (%p701) target = $region56
        $region55: #{tpu_custom_call.1} parent=51 // pred_region
          %p704 = scmp.lt.s32.totalorder %s55, 1
          %s705 = scalar_select %p704, %s55, 1
          %s706 = scalar_lea.vmem %s6, %s705
        $region56: #{tpu_custom_call.1} parent=51 // pred_fallthru
          _
        // Predicated region
        $region57: #{tpu_custom_call.1} parent=51 // pred_check
          %p707 = pneg %p236
        $region58: #{tpu_custom_call.1} parent=51 // pred_check_branch
          %709 = sbr.rel (%p707) target = $region60
        $region59: #{tpu_custom_call.1} parent=51 // pred_region
          %s710 = sand.u32 %s47, 1
          %s711 = scalar_lea.sflag [#allocation14], %s710
          %s712 = sand.u32 %s226, 1
          %s713 = scalar_lea.vmem [#allocation13], %s712
          %s715 = ssub.s32 16, 16
          %716 = vsyncadd %s711, %s715
          %s717 = smul.addr %s55, 16
          %s718 = scalar_lea.hbm %s7, %s717
          %s720 = sshll.u32 %s713, 4
          %s721 = int_to_ptr.vmem [resolvable:$true] %s720
          %723 = dma.hbm_to_vmem [thread:$0]  %s718, 16, %s721, %s711
        $region60: #{tpu_custom_call.1} parent=51 // pred_fallthru
          _
        // Predicated region
        $region61: #{tpu_custom_call.1} parent=51 // pred_check
          %p724 = pneg %p262
        $region62: #{tpu_custom_call.1} parent=51 // pred_check_branch
          %726 = sbr.rel (%p724) target = $region64
        $region63: #{tpu_custom_call.1} parent=51 // pred_region
          %s727 = sand.u32 %s47, 1
          %s728 = scalar_lea.sflag [#allocation14], %s727
          %s729 = sand.u32 %s252, 1
          %s730 = smul.addr %s729, 192
          %s731 = scalar_lea.vmem [#allocation15], %s730
          %s733 = ssub.s32 3072, 3072
          %734 = vsyncadd %s728, %s733
          %s735 = smul.addr %s55, 48
          %s736 = smul.addr %s735, 64
          %s737 = scalar_lea.hbm %s8, %s736
          %s738 = sshll.u32 %s731, 4
          %s739 = int_to_ptr.vmem [resolvable:$true] %s738
          %744 = dma.hbm_to_vmem [thread:$0]  %s737, 3072, %s739, %s728, 192, 192, 12
        $region64: #{tpu_custom_call.1} parent=51 // pred_fallthru
          _
        // Predicated region
        $region65: #{tpu_custom_call.1} parent=51 // pred_check
          %p745 = pneg %p288
        $region66: #{tpu_custom_call.1} parent=51 // pred_check_branch
          %747 = sbr.rel (%p745) target = $region68
        $region67: #{tpu_custom_call.1} parent=51 // pred_region
          %s748 = sand.u32 %s47, 1
          %s749 = scalar_lea.sflag [#allocation17], %s748
          %s750 = sand.u32 %s278, 1
          %s751 = smul.addr %s750, 3
          %s752 = scalar_lea.vmem [#allocation16], %s751
          %s754 = ssub.s32 48, 48
          %755 = vsyncadd %s749, %s754
          %s756 = smul.addr %s55, 3
          %s757 = smul.addr %s756, 16
          %s758 = scalar_lea.hbm %s9, %s757
          %s760 = sshll.u32 %s752, 4
          %s761 = int_to_ptr.vmem [resolvable:$true] %s760
          %763 = dma.hbm_to_vmem [thread:$0]  %s758, 48, %s761, %s749
        $region68: #{tpu_custom_call.1} parent=51 // pred_fallthru
          _
        // Predicated region
        $region69: #{tpu_custom_call.1} parent=51 // pred_check
          %p764 = pneg %p314
        $region70: #{tpu_custom_call.1} parent=51 // pred_check_branch
          %766 = sbr.rel (%p764) target = $region72
        $region71: #{tpu_custom_call.1} parent=51 // pred_region
          %s767 = sand.u32 %s47, 1
          %s768 = scalar_lea.sflag [#allocation17], %s767
          %s769 = sand.u32 %s304, 1
          %s770 = smul.addr %s769, 64
          %s771 = scalar_lea.vmem [#allocation18], %s770
          %s773 = ssub.s32 1024, 1024
          %774 = vsyncadd %s768, %s773
          %s775 = smul.addr %s55, 16
          %s776 = smul.addr %s775, 64
          %s777 = scalar_lea.hbm %s10, %s776
          %s778 = sshll.u32 %s771, 4
          %s779 = int_to_ptr.vmem [resolvable:$true] %s778
          %784 = dma.hbm_to_vmem [thread:$0]  %s777, 1024, %s779, %s768, 64, 64, 4
        $region72: #{tpu_custom_call.1} parent=51 // pred_fallthru
          _
        // Predicated region
        $region73: #{tpu_custom_call.1} parent=51 // pred_check
          %p785 = pneg %p340
        $region74: #{tpu_custom_call.1} parent=51 // pred_check_branch
          %787 = sbr.rel (%p785) target = $region76
        $region75: #{tpu_custom_call.1} parent=51 // pred_region
          %s788 = sand.u32 %s47, 1
          %s789 = scalar_lea.sflag [#allocation20], %s788
          %s790 = sand.u32 %s330, 1
          %s791 = scalar_lea.vmem [#allocation19], %s790
          %s793 = ssub.s32 16, 16
          %794 = vsyncadd %s789, %s793
          %s795 = smul.addr %s55, 16
          %s796 = scalar_lea.hbm %s11, %s795
          %s798 = sshll.u32 %s791, 4
          %s799 = int_to_ptr.vmem [resolvable:$true] %s798
          %801 = dma.hbm_to_vmem [thread:$0]  %s796, 16, %s799, %s789
        $region76: #{tpu_custom_call.1} parent=51 // pred_fallthru
          _
        // Predicated region
        $region77: #{tpu_custom_call.1} parent=51 // pred_check
          %p802 = pneg %p366
        $region78: #{tpu_custom_call.1} parent=51 // pred_check_branch
          %804 = sbr.rel (%p802) target = $region80
        $region79: #{tpu_custom_call.1} parent=51 // pred_region
          %s805 = sand.u32 %s47, 1
          %s806 = scalar_lea.sflag [#allocation20], %s805
          %s807 = sand.u32 %s356, 1
          %s808 = scalar_lea.vmem [#allocation21], %s807
          %s810 = ssub.s32 16, 16
          %811 = vsyncadd %s806, %s810
          %s812 = smul.addr %s55, 16
          %s813 = scalar_lea.hbm %s12, %s812
          %s815 = sshll.u32 %s808, 4
          %s816 = int_to_ptr.vmem [resolvable:$true] %s815
          %818 = dma.hbm_to_vmem [thread:$0]  %s813, 16, %s816, %s806
        $region80: #{tpu_custom_call.1} parent=51 // pred_fallthru
          _
        // Predicated region
        $region81: #{tpu_custom_call.1} parent=51 // pred_check
          %p819 = pneg %p392
        $region82: #{tpu_custom_call.1} parent=51 // pred_check_branch
          %821 = sbr.rel (%p819) target = $region84
        $region83: #{tpu_custom_call.1} parent=51 // pred_region
          %s822 = sand.u32 %s47, 1
          %s823 = scalar_lea.sflag [#allocation23], %s822
          %s824 = sand.u32 %s382, 1
          %s825 = scalar_lea.vmem [#allocation22], %s824
          %s827 = ssub.s32 16, 16
          %828 = vsyncadd %s823, %s827
          %s829 = smul.addr %s55, 16
          %s830 = scalar_lea.hbm %s13, %s829
          %s832 = sshll.u32 %s825, 4
          %s833 = int_to_ptr.vmem [resolvable:$true] %s832
          %835 = dma.hbm_to_vmem [thread:$0]  %s830, 16, %s833, %s823
        $region84: #{tpu_custom_call.1} parent=51 // pred_fallthru
          _
        // Predicated region
        $region85: #{tpu_custom_call.1} parent=51 // pred_check
          %p836 = pneg %p418
        $region86: #{tpu_custom_call.1} parent=51 // pred_check_branch
          %838 = sbr.rel (%p836) target = $region88
        $region87: #{tpu_custom_call.1} parent=51 // pred_region
          %s839 = sand.u32 %s47, 1
          %s840 = scalar_lea.sflag [#allocation23], %s839
          %s841 = sand.u32 %s408, 1
          %s842 = smul.addr %s841, 256
          %s843 = scalar_lea.vmem [#allocation24], %s842
          %s845 = ssub.s32 4096, 4096
          %846 = vsyncadd %s840, %s845
          %s847 = smul.addr %s55, 64
          %s848 = smul.addr %s847, 64
          %s849 = scalar_lea.hbm %s14, %s848
          %s850 = sshll.u32 %s843, 4
          %s851 = int_to_ptr.vmem [resolvable:$true] %s850
          %856 = dma.hbm_to_vmem [thread:$0]  %s849, 4096, %s851, %s840, 256, 256, 16
        $region88: #{tpu_custom_call.1} parent=51 // pred_fallthru
          _
        // Predicated region
        $region89: #{tpu_custom_call.1} parent=51 // pred_check
          %p857 = pneg %p444
        $region90: #{tpu_custom_call.1} parent=51 // pred_check_branch
          %859 = sbr.rel (%p857) target = $region92
        $region91: #{tpu_custom_call.1} parent=51 // pred_region
          %p860 = scmp.lt.s32.totalorder %s55, 1
          %s861 = scalar_select %p860, %s55, 1
          %s862 = smul.addr %s861, 4
          %s863 = scalar_lea.vmem %s15, %s862
        $region92: #{tpu_custom_call.1} parent=51 // pred_fallthru
          _
        // Predicated region
        $region93: #{tpu_custom_call.1} parent=51 // pred_check
          %p864 = pneg %p470
        $region94: #{tpu_custom_call.1} parent=51 // pred_check_branch
          %866 = sbr.rel (%p864) target = $region96
        $region95: #{tpu_custom_call.1} parent=51 // pred_region
          %s867 = sand.u32 %s47, 1
          %s868 = scalar_lea.sflag [#allocation26], %s867
          %s869 = sand.u32 %s460, 1
          %s870 = smul.addr %s869, 256
          %s871 = scalar_lea.vmem [#allocation25], %s870
          %s873 = ssub.s32 4096, 4096
          %874 = vsyncadd %s868, %s873
          %s875 = smul.addr %s55, 64
          %s876 = smul.addr %s875, 64
          %s877 = scalar_lea.hbm %s16, %s876
          %s878 = sshll.u32 %s871, 4
          %s879 = int_to_ptr.vmem [resolvable:$true] %s878
          %884 = dma.hbm_to_vmem [thread:$0]  %s877, 4096, %s879, %s868, 64, 64, 4
        $region96: #{tpu_custom_call.1} parent=51 // pred_fallthru
          _
        // Predicated region
        $region97: #{tpu_custom_call.1} parent=51 // pred_check
          %p885 = pneg %p496
        $region98: #{tpu_custom_call.1} parent=51 // pred_check_branch
          %887 = sbr.rel (%p885) target = $region100
        $region99: #{tpu_custom_call.1} parent=51 // pred_region
          %s888 = sand.u32 %s47, 1
          %s889 = scalar_lea.sflag [#allocation26], %s888
          %s890 = sand.u32 %s486, 1
          %s891 = scalar_lea.vmem [#allocation27], %s890
          %s893 = ssub.s32 16, 16
          %894 = vsyncadd %s889, %s893
          %s895 = smul.addr %s55, 16
          %s896 = scalar_lea.hbm %s17, %s895
          %s898 = sshll.u32 %s891, 4
          %s899 = int_to_ptr.vmem [resolvable:$true] %s898
          %901 = dma.hbm_to_vmem [thread:$0]  %s896, 16, %s899, %s889
        $region100: #{tpu_custom_call.1} parent=51 // pred_fallthru
          _
      $region52: #{tpu_custom_call.1} parent=5 // pred_fallthru
        _
      %p902 = scmp.le.s32.totalorder 1, %s47
      %p903 = scmp.lt.s32.totalorder %s47, 3
      %p904 = pnand %p902, %p903
      %p905 = pneg %p904
      // Predicated region
      $region101: #{tpu_custom_call.1} parent=5 // pred_check
        _
      $region102: #{tpu_custom_call.1} parent=5 // pred_check_branch
        %907 = sbr.rel (%p904) target = $region104
      $region103: #{tpu_custom_call.1} parent=5 // pred_region
        %s908 = ssub.s32 %s47, 1
        // Predicated region
        $region105: #{tpu_custom_call.1} parent=103 // pred_check
          %p909 = pneg %p85
        $region106: #{tpu_custom_call.1} parent=103 // pred_check_branch
          %911 = sbr.rel (%p909) target = $region108
        $region107: #{tpu_custom_call.1} parent=103 // pred_region
          %912 = dma.done [#allocation5], 1536
        $region108: #{tpu_custom_call.1} parent=103 // pred_fallthru
          _
        // Predicated region
        $region109: #{tpu_custom_call.1} parent=103 // pred_check
          %p913 = pneg %p106
        $region110: #{tpu_custom_call.1} parent=103 // pred_check_branch
          %915 = sbr.rel (%p913) target = $region112
        $region111: #{tpu_custom_call.1} parent=103 // pred_region
          %916 = dma.done [#allocation8], 6144
        $region112: #{tpu_custom_call.1} parent=103 // pred_fallthru
          _
        // Predicated region
        $region113: #{tpu_custom_call.1} parent=103 // pred_check
          %p917 = pneg %p127
        $region114: #{tpu_custom_call.1} parent=103 // pred_check_branch
          %919 = sbr.rel (%p917) target = $region116
        $region115: #{tpu_custom_call.1} parent=103 // pred_region
          %920 = dma.done [#allocation8], 128
        $region116: #{tpu_custom_call.1} parent=103 // pred_fallthru
          _
        // Predicated region
        $region117: #{tpu_custom_call.1} parent=103 // pred_check
          %p921 = pneg %p169
        $region118: #{tpu_custom_call.1} parent=103 // pred_check_branch
          %923 = sbr.rel (%p921) target = $region120
        $region119: #{tpu_custom_call.1} parent=103 // pred_region
          %924 = dma.done [#allocation11], 16
        $region120: #{tpu_custom_call.1} parent=103 // pred_fallthru
          _
        // Predicated region
        $region121: #{tpu_custom_call.1} parent=103 // pred_check
          %p925 = pneg %p190
        $region122: #{tpu_custom_call.1} parent=103 // pred_check_branch
          %927 = sbr.rel (%p925) target = $region124
        $region123: #{tpu_custom_call.1} parent=103 // pred_region
          %928 = dma.done [#allocation11], 16
        $region124: #{tpu_custom_call.1} parent=103 // pred_fallthru
          _
        %s929 = sand.u32 %s52, 1
        %s930 = scalar_lea.sflag [#allocation14], %s929
        %s931 = sand.u32 %s229, 1
        %s932 = scalar_lea.vmem [#allocation13], %s931
        // Predicated region
        $region125: #{tpu_custom_call.1} parent=103 // pred_check
          %p933 = pneg %p242
        $region126: #{tpu_custom_call.1} parent=103 // pred_check_branch
          %935 = sbr.rel (%p933) target = $region128
        $region127: #{tpu_custom_call.1} parent=103 // pred_region
          %936 = dma.done %s930, 16
        $region128: #{tpu_custom_call.1} parent=103 // pred_fallthru
          _
        %s937 = sand.u32 %s52, 1
        %s938 = scalar_lea.sflag [#allocation14], %s937
        %s939 = sand.u32 %s255, 1
        %s940 = smul.addr %s939, 192
        %s941 = scalar_lea.vmem [#allocation15], %s940
        // Predicated region
        $region129: #{tpu_custom_call.1} parent=103 // pred_check
          %p942 = pneg %p268
        $region130: #{tpu_custom_call.1} parent=103 // pred_check_branch
          %944 = sbr.rel (%p942) target = $region132
        $region131: #{tpu_custom_call.1} parent=103 // pred_region
          %945 = dma.done %s938, 3072
        $region132: #{tpu_custom_call.1} parent=103 // pred_fallthru
          _
        %s946 = sand.u32 %s52, 1
        %s947 = scalar_lea.sflag [#allocation17], %s946
        %s948 = sand.u32 %s281, 1
        %s949 = smul.addr %s948, 3
        %s950 = scalar_lea.vmem [#allocation16], %s949
        // Predicated region
        $region133: #{tpu_custom_call.1} parent=103 // pred_check
          %p951 = pneg %p294
        $region134: #{tpu_custom_call.1} parent=103 // pred_check_branch
          %953 = sbr.rel (%p951) target = $region136
        $region135: #{tpu_custom_call.1} parent=103 // pred_region
          %954 = dma.done %s947, 48
        $region136: #{tpu_custom_call.1} parent=103 // pred_fallthru
          _
        %s955 = sand.u32 %s52, 1
        %s956 = scalar_lea.sflag [#allocation17], %s955
        %s957 = sand.u32 %s307, 1
        %s958 = smul.addr %s957, 64
        %s959 = scalar_lea.vmem [#allocation18], %s958
        // Predicated region
        $region137: #{tpu_custom_call.1} parent=103 // pred_check
          %p960 = pneg %p320
        $region138: #{tpu_custom_call.1} parent=103 // pred_check_branch
          %962 = sbr.rel (%p960) target = $region140
        $region139: #{tpu_custom_call.1} parent=103 // pred_region
          %963 = dma.done %s956, 1024
        $region140: #{tpu_custom_call.1} parent=103 // pred_fallthru
          _
        %s964 = sand.u32 %s52, 1
        %s965 = scalar_lea.sflag [#allocation20], %s964
        %s966 = sand.u32 %s333, 1
        %s967 = scalar_lea.vmem [#allocation19], %s966
        // Predicated region
        $region141: #{tpu_custom_call.1} parent=103 // pred_check
          %p968 = pneg %p346
        $region142: #{tpu_custom_call.1} parent=103 // pred_check_branch
          %970 = sbr.rel (%p968) target = $region144
        $region143: #{tpu_custom_call.1} parent=103 // pred_region
          %971 = dma.done %s965, 16
        $region144: #{tpu_custom_call.1} parent=103 // pred_fallthru
          _
        %s972 = sand.u32 %s52, 1
        %s973 = scalar_lea.sflag [#allocation20], %s972
        %s974 = sand.u32 %s359, 1
        %s975 = scalar_lea.vmem [#allocation21], %s974
        // Predicated region
        $region145: #{tpu_custom_call.1} parent=103 // pred_check
          %p976 = pneg %p372
        $region146: #{tpu_custom_call.1} parent=103 // pred_check_branch
          %978 = sbr.rel (%p976) target = $region148
        $region147: #{tpu_custom_call.1} parent=103 // pred_region
          %979 = dma.done %s973, 16
        $region148: #{tpu_custom_call.1} parent=103 // pred_fallthru
          _
        %s980 = sand.u32 %s52, 1
        %s981 = scalar_lea.sflag [#allocation23], %s980
        %s982 = sand.u32 %s385, 1
        %s983 = scalar_lea.vmem [#allocation22], %s982
        // Predicated region
        $region149: #{tpu_custom_call.1} parent=103 // pred_check
          %p984 = pneg %p398
        $region150: #{tpu_custom_call.1} parent=103 // pred_check_branch
          %986 = sbr.rel (%p984) target = $region152
        $region151: #{tpu_custom_call.1} parent=103 // pred_region
          %987 = dma.done %s981, 16
        $region152: #{tpu_custom_call.1} parent=103 // pred_fallthru
          _
        %s988 = sand.u32 %s52, 1
        %s989 = scalar_lea.sflag [#allocation23], %s988
        %s990 = sand.u32 %s411, 1
        %s991 = smul.addr %s990, 256
        %s992 = scalar_lea.vmem [#allocation24], %s991
        // Predicated region
        $region153: #{tpu_custom_call.1} parent=103 // pred_check
          %p993 = pneg %p424
        $region154: #{tpu_custom_call.1} parent=103 // pred_check_branch
          %995 = sbr.rel (%p993) target = $region156
        $region155: #{tpu_custom_call.1} parent=103 // pred_region
          %996 = dma.done %s989, 4096
        $region156: #{tpu_custom_call.1} parent=103 // pred_fallthru
          _
        %s997 = sand.u32 %s52, 1
        %s998 = scalar_lea.sflag [#allocation26], %s997
        %s999 = sand.u32 %s463, 1
        %s1000 = smul.addr %s999, 256
        %s1001 = scalar_lea.vmem [#allocation25], %s1000
        // Predicated region
        $region157: #{tpu_custom_call.1} parent=103 // pred_check
          %p1002 = pneg %p476
        $region158: #{tpu_custom_call.1} parent=103 // pred_check_branch
          %1004 = sbr.rel (%p1002) target = $region160
        $region159: #{tpu_custom_call.1} parent=103 // pred_region
          %1005 = dma.done %s998, 4096
        $region160: #{tpu_custom_call.1} parent=103 // pred_fallthru
          _
        %s1006 = sand.u32 %s52, 1
        %s1007 = scalar_lea.sflag [#allocation26], %s1006
        %s1008 = sand.u32 %s489, 1
        %s1009 = scalar_lea.vmem [#allocation27], %s1008
        // Predicated region
        $region161: #{tpu_custom_call.1} parent=103 // pred_check
          %p1010 = pneg %p502
        $region162: #{tpu_custom_call.1} parent=103 // pred_check_branch
          %1012 = sbr.rel (%p1010) target = $region164
        $region163: #{tpu_custom_call.1} parent=103 // pred_region
          %1013 = dma.done %s1007, 16
        $region164: #{tpu_custom_call.1} parent=103 // pred_fallthru
          _
        // Predicated region
        $region165: #{tpu_custom_call.1} parent=103 // pred_check
          %p1014 = pneg %p523
        $region166: #{tpu_custom_call.1} parent=103 // pred_check_branch
          %1016 = sbr.rel (%p1014) target = $region168
        $region167: #{tpu_custom_call.1} parent=103 // pred_region
          %1017 = dma.done [#allocation29], 16
        $region168: #{tpu_custom_call.1} parent=103 // pred_fallthru
          _
        // Predicated region
        $region169: #{tpu_custom_call.1} parent=103 // pred_check
          %p1018 = pneg %p544
        $region170: #{tpu_custom_call.1} parent=103 // pred_check_branch
          %1020 = sbr.rel (%p1018) target = $region172
        $region171: #{tpu_custom_call.1} parent=103 // pred_region
          %1021 = dma.done [#allocation29], 16
        $region172: #{tpu_custom_call.1} parent=103 // pred_fallthru
          _
        %p1022 = pneg %p85
        %p1023 = pneg %p82
        %p1024 = pneg %p106
        %p1025 = pneg %p103
        %p1026 = pneg %p127
        %p1027 = pneg %p124
        %p1028 = pneg %p148
        %p1029 = pneg %p145
        %p1030 = pneg %p169
        %p1031 = pneg %p166
        %p1032 = pneg %p190
        %p1033 = pneg %p187
        %p1034 = scmp.lt.s32.totalorder %s57, 1
        %s1035 = scalar_select %p1034, %s57, 1
        %s1036 = scalar_lea.vmem %s6, %s1035
        %p1037 = pneg %p216
        %p1038 = pneg %p213
        %s1039 = sand.u32 %s52, 1
        %s1040 = scalar_lea.sflag [#allocation14], %s1039
        %s1041 = sand.u32 %s229, 1
        %s1042 = scalar_lea.vmem [#allocation13], %s1041
        %p1043 = pneg %p242
        %p1044 = pneg %p239
        %s1045 = sand.u32 %s52, 1
        %s1046 = scalar_lea.sflag [#allocation14], %s1045
        %s1047 = sand.u32 %s255, 1
        %s1048 = smul.addr %s1047, 192
        %s1049 = scalar_lea.vmem [#allocation15], %s1048
        %p1050 = pneg %p268
        %p1051 = pneg %p265
        %s1052 = sand.u32 %s52, 1
        %s1053 = scalar_lea.sflag [#allocation17], %s1052
        %s1054 = sand.u32 %s281, 1
        %s1055 = smul.addr %s1054, 3
        %s1056 = scalar_lea.vmem [#allocation16], %s1055
        %p1057 = pneg %p294
        %p1058 = pneg %p291
        %s1059 = sand.u32 %s52, 1
        %s1060 = scalar_lea.sflag [#allocation17], %s1059
        %s1061 = sand.u32 %s307, 1
        %s1062 = smul.addr %s1061, 64
        %s1063 = scalar_lea.vmem [#allocation18], %s1062
        %p1064 = pneg %p320
        %p1065 = pneg %p317
        %s1066 = sand.u32 %s52, 1
        %s1067 = scalar_lea.sflag [#allocation20], %s1066
        %s1068 = sand.u32 %s333, 1
        %s1069 = scalar_lea.vmem [#allocation19], %s1068
        %p1070 = pneg %p346
        %p1071 = pneg %p343
        %s1072 = sand.u32 %s52, 1
        %s1073 = scalar_lea.sflag [#allocation20], %s1072
        %s1074 = sand.u32 %s359, 1
        %s1075 = scalar_lea.vmem [#allocation21], %s1074
        %p1076 = pneg %p372
        %p1077 = pneg %p369
        %s1078 = sand.u32 %s52, 1
        %s1079 = scalar_lea.sflag [#allocation23], %s1078
        %s1080 = sand.u32 %s385, 1
        %s1081 = scalar_lea.vmem [#allocation22], %s1080
        %p1082 = pneg %p398
        %p1083 = pneg %p395
        %s1084 = sand.u32 %s52, 1
        %s1085 = scalar_lea.sflag [#allocation23], %s1084
        %s1086 = sand.u32 %s411, 1
        %s1087 = smul.addr %s1086, 256
        %s1088 = scalar_lea.vmem [#allocation24], %s1087
        %p1089 = pneg %p424
        %p1090 = pneg %p421
        %p1091 = scmp.lt.s32.totalorder %s57, 1
        %s1092 = scalar_select %p1091, %s57, 1
        %s1093 = smul.addr %s1092, 4
        %s1094 = scalar_lea.vmem %s15, %s1093
        %p1095 = pneg %p450
        %p1096 = pneg %p447
        %s1097 = sand.u32 %s52, 1
        %s1098 = scalar_lea.sflag [#allocation26], %s1097
        %s1099 = sand.u32 %s463, 1
        %s1100 = smul.addr %s1099, 256
        %s1101 = scalar_lea.vmem [#allocation25], %s1100
        %p1102 = pneg %p476
        %p1103 = pneg %p473
        %s1104 = sand.u32 %s52, 1
        %s1105 = scalar_lea.sflag [#allocation26], %s1104
        %s1106 = sand.u32 %s489, 1
        %s1107 = scalar_lea.vmem [#allocation27], %s1106
        %p1108 = pneg %p502
        %p1109 = pneg %p499
        %p1110 = pneg %p523
        %p1111 = pneg %p520
        %p1112 = pneg %p544
        %p1113 = pneg %p541
        %p1114 = pneg %p565
        %p1115 = pneg %p562
        %p1116 = pneg %p591
        %p1117 = pneg %p588
        %s1118 = smul.u32 2, %s56
        %p1119 = scmp.lt.s32.totalorder %s57, 1
        %s1120 = scalar_select %p1119, %s57, 1
        %s1121 = scalar_lea.vmem %s6, %s1120
        %p1122 = scmp.lt.s32.totalorder %s57, 1
        %s1123 = scalar_select %p1122, %s57, 1
        %s1124 = smul.addr %s1123, 4
        %s1125 = scalar_lea.vmem %s15, %s1124
        %p1127 = scmp.eq.s32.totalorder %s57, 0
        // Predicated region
        $region173: #{tpu_custom_call.1} parent=103 // pred_check
          %p1128 = pneg %p1127
        $region174: #{tpu_custom_call.1} parent=103 // pred_check_branch
          %1130 = sbr.rel (%p1128) target = $region176
        $region175: #{tpu_custom_call.1} parent=103 // pred_region
          %v1131 = vld [vmem:[#allocation4] sm:$0xff]
          %v1132 = vld [vmem:[#allocation4 + $0x8] sm:$0xff]
          %v1133 = vld [vmem:[#allocation4 + $0x10] sm:$0xff]
          %v1134 = vld [vmem:[#allocation4 + $0x18] sm:$0xff]
          %v1135 = vld [vmem:[#allocation4 + $0x20] sm:$0xff]
          %v1136 = vld [vmem:[#allocation4 + $0x28] sm:$0xff]
          %v1137 = vld [vmem:[#allocation4 + $0x30] sm:$0xff]
          %v1138 = vld [vmem:[#allocation4 + $0x38] sm:$0xff]
          %v1139 = vld [vmem:[#allocation4 + $0x40] sm:$0xff]
          %v1140 = vld [vmem:[#allocation4 + $0x48] sm:$0xff]
          %v1141 = vld [vmem:[#allocation4 + $0x50] sm:$0xff]
          %v1142 = vld [vmem:[#allocation4 + $0x58] sm:$0xff]
          %v1143 = vld [vmem:[#allocation7] sm:$0xf]
          %v1144 = vld [vmem:[#allocation7 + $0x4] sm:$0xf]
          %v1145 = vld [vmem:[#allocation7 + $0x8] sm:$0xf]
          %v1146 = vld [vmem:[#allocation7 + $0xc] sm:$0xf]
          %v1147 = vld [vmem:[#allocation7 + $0x10] sm:$0xf]
          %v1148 = vld [vmem:[#allocation7 + $0x14] sm:$0xf]
          %v1149 = vld [vmem:[#allocation7 + $0x18] sm:$0xf]
          %v1150 = vld [vmem:[#allocation7 + $0x1c] sm:$0xf]
          %v1151 = vld [vmem:[#allocation7 + $0x20] sm:$0xf]
          %v1152 = vld [vmem:[#allocation7 + $0x24] sm:$0xf]
          %v1153 = vld [vmem:[#allocation7 + $0x28] sm:$0xf]
          %v1154 = vld [vmem:[#allocation7 + $0x2c] sm:$0xf]
          %v1155 = vld [vmem:[#allocation7 + $0x30] sm:$0xf]
          %v1156 = vld [vmem:[#allocation7 + $0x34] sm:$0xf]
          %v1157 = vld [vmem:[#allocation7 + $0x38] sm:$0xf]
          %v1158 = vld [vmem:[#allocation7 + $0x3c] sm:$0xf]
          %v1159 = vld [vmem:[#allocation7 + $0x40] sm:$0xf]
          %v1160 = vld [vmem:[#allocation7 + $0x44] sm:$0xf]
          %v1161 = vld [vmem:[#allocation7 + $0x48] sm:$0xf]
          %v1162 = vld [vmem:[#allocation7 + $0x4c] sm:$0xf]
          %v1163 = vld [vmem:[#allocation7 + $0x50] sm:$0xf]
          %v1164 = vld [vmem:[#allocation7 + $0x54] sm:$0xf]
          %v1165 = vld [vmem:[#allocation7 + $0x58] sm:$0xf]
          %v1166 = vld [vmem:[#allocation7 + $0x5c] sm:$0xf]
          %v1167 = vld [vmem:[#allocation7 + $0x60] sm:$0xf]
          %v1168 = vld [vmem:[#allocation7 + $0x64] sm:$0xf]
          %v1169 = vld [vmem:[#allocation7 + $0x68] sm:$0xf]
          %v1170 = vld [vmem:[#allocation7 + $0x6c] sm:$0xf]
          %v1171 = vld [vmem:[#allocation7 + $0x70] sm:$0xf]
          %v1172 = vld [vmem:[#allocation7 + $0x74] sm:$0xf]
          %v1173 = vld [vmem:[#allocation7 + $0x78] sm:$0xf]
          %v1174 = vld [vmem:[#allocation7 + $0x7c] sm:$0xf]
          %v1175 = vld [vmem:[#allocation7 + $0x80] sm:$0xf]
          %v1176 = vld [vmem:[#allocation7 + $0x84] sm:$0xf]
          %v1177 = vld [vmem:[#allocation7 + $0x88] sm:$0xf]
          %v1178 = vld [vmem:[#allocation7 + $0x8c] sm:$0xf]
          %v1179 = vld [vmem:[#allocation7 + $0x90] sm:$0xf]
          %v1180 = vld [vmem:[#allocation7 + $0x94] sm:$0xf]
          %v1181 = vld [vmem:[#allocation7 + $0x98] sm:$0xf]
          %v1182 = vld [vmem:[#allocation7 + $0x9c] sm:$0xf]
          %v1183 = vld [vmem:[#allocation7 + $0xa0] sm:$0xf]
          %v1184 = vld [vmem:[#allocation7 + $0xa4] sm:$0xf]
          %v1185 = vld [vmem:[#allocation7 + $0xa8] sm:$0xf]
          %v1186 = vld [vmem:[#allocation7 + $0xac] sm:$0xf]
          %v1187 = vld [vmem:[#allocation7 + $0xb0] sm:$0xf]
          %v1188 = vld [vmem:[#allocation7 + $0xb4] sm:$0xf]
          %v1189 = vld [vmem:[#allocation7 + $0xb8] sm:$0xf]
          %v1190 = vld [vmem:[#allocation7 + $0xbc] sm:$0xf]
          %v1191 = vld [vmem:[#allocation7 + $0xc0] sm:$0xf]
          %v1192 = vld [vmem:[#allocation7 + $0xc4] sm:$0xf]
          %v1193 = vld [vmem:[#allocation7 + $0xc8] sm:$0xf]
          %v1194 = vld [vmem:[#allocation7 + $0xcc] sm:$0xf]
          %v1195 = vld [vmem:[#allocation7 + $0xd0] sm:$0xf]
          %v1196 = vld [vmem:[#allocation7 + $0xd4] sm:$0xf]
          %v1197 = vld [vmem:[#allocation7 + $0xd8] sm:$0xf]
          %v1198 = vld [vmem:[#allocation7 + $0xdc] sm:$0xf]
          %v1199 = vld [vmem:[#allocation7 + $0xe0] sm:$0xf]
          %v1200 = vld [vmem:[#allocation7 + $0xe4] sm:$0xf]
          %v1201 = vld [vmem:[#allocation7 + $0xe8] sm:$0xf]
          %v1202 = vld [vmem:[#allocation7 + $0xec] sm:$0xf]
          %v1203 = vld [vmem:[#allocation7 + $0xf0] sm:$0xf]
          %v1204 = vld [vmem:[#allocation7 + $0xf4] sm:$0xf]
          %v1205 = vld [vmem:[#allocation7 + $0xf8] sm:$0xf]
          %v1206 = vld [vmem:[#allocation7 + $0xfc] sm:$0xf]
          %v1207 = vld [vmem:[#allocation7 + $0x100] sm:$0xf]
          %v1208 = vld [vmem:[#allocation7 + $0x104] sm:$0xf]
          %v1209 = vld [vmem:[#allocation7 + $0x108] sm:$0xf]
          %v1210 = vld [vmem:[#allocation7 + $0x10c] sm:$0xf]
          %v1211 = vld [vmem:[#allocation7 + $0x110] sm:$0xf]
          %v1212 = vld [vmem:[#allocation7 + $0x114] sm:$0xf]
          %v1213 = vld [vmem:[#allocation7 + $0x118] sm:$0xf]
          %v1214 = vld [vmem:[#allocation7 + $0x11c] sm:$0xf]
          %v1215 = vld [vmem:[#allocation7 + $0x120] sm:$0xf]
          %v1216 = vld [vmem:[#allocation7 + $0x124] sm:$0xf]
          %v1217 = vld [vmem:[#allocation7 + $0x128] sm:$0xf]
          %v1218 = vld [vmem:[#allocation7 + $0x12c] sm:$0xf]
          %v1219 = vld [vmem:[#allocation7 + $0x130] sm:$0xf]
          %v1220 = vld [vmem:[#allocation7 + $0x134] sm:$0xf]
          %v1221 = vld [vmem:[#allocation7 + $0x138] sm:$0xf]
          %v1222 = vld [vmem:[#allocation7 + $0x13c] sm:$0xf]
          %v1223 = vld [vmem:[#allocation7 + $0x140] sm:$0xf]
          %v1224 = vld [vmem:[#allocation7 + $0x144] sm:$0xf]
          %v1225 = vld [vmem:[#allocation7 + $0x148] sm:$0xf]
          %v1226 = vld [vmem:[#allocation7 + $0x14c] sm:$0xf]
          %v1227 = vld [vmem:[#allocation7 + $0x150] sm:$0xf]
          %v1228 = vld [vmem:[#allocation7 + $0x154] sm:$0xf]
          %v1229 = vld [vmem:[#allocation7 + $0x158] sm:$0xf]
          %v1230 = vld [vmem:[#allocation7 + $0x15c] sm:$0xf]
          %v1231 = vld [vmem:[#allocation7 + $0x160] sm:$0xf]
          %v1232 = vld [vmem:[#allocation7 + $0x164] sm:$0xf]
          %v1233 = vld [vmem:[#allocation7 + $0x168] sm:$0xf]
          %v1234 = vld [vmem:[#allocation7 + $0x16c] sm:$0xf]
          %v1235 = vld [vmem:[#allocation7 + $0x170] sm:$0xf]
          %v1236 = vld [vmem:[#allocation7 + $0x174] sm:$0xf]
          %v1237 = vld [vmem:[#allocation7 + $0x178] sm:$0xf]
          %v1238 = vld [vmem:[#allocation7 + $0x17c] sm:$0xf]
          %v1239 = vpack.c.bf16 %v1137, %v1131
          %v1240 = vpack.c.bf16 %v1138, %v1132
          %v1241 = vpack.c.bf16 %v1139, %v1133
          %v1242 = vpack.c.bf16 %v1140, %v1134
          %v1243 = vpack.c.bf16 %v1141, %v1135
          %v1244 = vpack.c.bf16 %v1142, %v1136
          %v1341 = vunpack.c.l.b16 %v1143
          %v1342 = vunpack.c.l.b16 %v1144
          %v1343 = vunpack.c.l.b16 %v1145
          %v1344 = vunpack.c.l.b16 %v1146
          %v1345 = vunpack.c.l.b16 %v1147
          %v1346 = vunpack.c.l.b16 %v1148
          %v1347 = vunpack.c.l.b16 %v1149
          %v1348 = vunpack.c.l.b16 %v1150
          %v1349 = vunpack.c.l.b16 %v1151
          %v1350 = vunpack.c.l.b16 %v1152
          %v1351 = vunpack.c.l.b16 %v1153
          %v1352 = vunpack.c.l.b16 %v1154
          %v1353 = vunpack.c.l.b16 %v1155
          %v1354 = vunpack.c.l.b16 %v1156
          %v1355 = vunpack.c.l.b16 %v1157
          %v1356 = vunpack.c.l.b16 %v1158
          %v1357 = vunpack.c.l.b16 %v1159
          %v1358 = vunpack.c.l.b16 %v1160
          %v1359 = vunpack.c.l.b16 %v1161
          %v1360 = vunpack.c.l.b16 %v1162
          %v1361 = vunpack.c.l.b16 %v1163
          %v1362 = vunpack.c.l.b16 %v1164
          %v1363 = vunpack.c.l.b16 %v1165
          %v1364 = vunpack.c.l.b16 %v1166
          %v1365 = vunpack.c.l.b16 %v1167
          %v1366 = vunpack.c.l.b16 %v1168
          %v1367 = vunpack.c.l.b16 %v1169
          %v1368 = vunpack.c.l.b16 %v1170
          %v1369 = vunpack.c.l.b16 %v1171
          %v1370 = vunpack.c.l.b16 %v1172
          %v1371 = vunpack.c.l.b16 %v1173
          %v1372 = vunpack.c.l.b16 %v1174
          %v1373 = vunpack.c.l.b16 %v1175
          %v1374 = vunpack.c.l.b16 %v1176
          %v1375 = vunpack.c.l.b16 %v1177
          %v1376 = vunpack.c.l.b16 %v1178
          %v1377 = vunpack.c.l.b16 %v1179
          %v1378 = vunpack.c.l.b16 %v1180
          %v1379 = vunpack.c.l.b16 %v1181
          %v1380 = vunpack.c.l.b16 %v1182
          %v1381 = vunpack.c.l.b16 %v1183
          %v1382 = vunpack.c.l.b16 %v1184
          %v1383 = vunpack.c.l.b16 %v1185
          %v1384 = vunpack.c.l.b16 %v1186
          %v1385 = vunpack.c.l.b16 %v1187
          %v1386 = vunpack.c.l.b16 %v1188
          %v1387 = vunpack.c.l.b16 %v1189
          %v1388 = vunpack.c.l.b16 %v1190
          %v1389 = vunpack.c.l.b16 %v1191
          %v1390 = vunpack.c.l.b16 %v1192
          %v1391 = vunpack.c.l.b16 %v1193
          %v1392 = vunpack.c.l.b16 %v1194
          %v1393 = vunpack.c.l.b16 %v1195
          %v1394 = vunpack.c.l.b16 %v1196
          %v1395 = vunpack.c.l.b16 %v1197
          %v1396 = vunpack.c.l.b16 %v1198
          %v1397 = vunpack.c.l.b16 %v1199
          %v1398 = vunpack.c.l.b16 %v1200
          %v1399 = vunpack.c.l.b16 %v1201
          %v1400 = vunpack.c.l.b16 %v1202
          %v1401 = vunpack.c.l.b16 %v1203
          %v1402 = vunpack.c.l.b16 %v1204
          %v1403 = vunpack.c.l.b16 %v1205
          %v1404 = vunpack.c.l.b16 %v1206
          %v1405 = vunpack.c.l.b16 %v1207
          %v1406 = vunpack.c.l.b16 %v1208
          %v1407 = vunpack.c.l.b16 %v1209
          %v1408 = vunpack.c.l.b16 %v1210
          %v1409 = vunpack.c.l.b16 %v1211
          %v1410 = vunpack.c.l.b16 %v1212
          %v1411 = vunpack.c.l.b16 %v1213
          %v1412 = vunpack.c.l.b16 %v1214
          %v1413 = vunpack.c.l.b16 %v1215
          %v1414 = vunpack.c.l.b16 %v1216
          %v1415 = vunpack.c.l.b16 %v1217
          %v1416 = vunpack.c.l.b16 %v1218
          %v1417 = vunpack.c.l.b16 %v1219
          %v1418 = vunpack.c.l.b16 %v1220
          %v1419 = vunpack.c.l.b16 %v1221
          %v1420 = vunpack.c.l.b16 %v1222
          %v1421 = vunpack.c.l.b16 %v1223
          %v1422 = vunpack.c.l.b16 %v1224
          %v1423 = vunpack.c.l.b16 %v1225
          %v1424 = vunpack.c.l.b16 %v1226
          %v1425 = vunpack.c.l.b16 %v1227
          %v1426 = vunpack.c.l.b16 %v1228
          %v1427 = vunpack.c.l.b16 %v1229
          %v1428 = vunpack.c.l.b16 %v1230
          %v1429 = vunpack.c.l.b16 %v1231
          %v1430 = vunpack.c.l.b16 %v1232
          %v1431 = vunpack.c.l.b16 %v1233
          %v1432 = vunpack.c.l.b16 %v1234
          %v1433 = vunpack.c.l.b16 %v1235
          %v1434 = vunpack.c.l.b16 %v1236
          %v1435 = vunpack.c.l.b16 %v1237
          %v1436 = vunpack.c.l.b16 %v1238
          %v1437 = vpack.c.b16 %v1342, %v1341
          %v1438 = vpack.c.b16 %v1344, %v1343
          %v1439 = vpack.c.b16 %v1346, %v1345
          %v1440 = vpack.c.b16 %v1348, %v1347
          %v1441 = vpack.c.b16 %v1350, %v1349
          %v1442 = vpack.c.b16 %v1352, %v1351
          %v1443 = vpack.c.b16 %v1354, %v1353
          %v1444 = vpack.c.b16 %v1356, %v1355
          %v1445 = vpack.c.b16 %v1358, %v1357
          %v1446 = vpack.c.b16 %v1360, %v1359
          %v1447 = vpack.c.b16 %v1362, %v1361
          %v1448 = vpack.c.b16 %v1364, %v1363
          %v1449 = vpack.c.b16 %v1366, %v1365
          %v1450 = vpack.c.b16 %v1368, %v1367
          %v1451 = vpack.c.b16 %v1370, %v1369
          %v1452 = vpack.c.b16 %v1372, %v1371
          %v1453 = vpack.c.b16 %v1374, %v1373
          %v1454 = vpack.c.b16 %v1376, %v1375
          %v1455 = vpack.c.b16 %v1378, %v1377
          %v1456 = vpack.c.b16 %v1380, %v1379
          %v1457 = vpack.c.b16 %v1382, %v1381
          %v1458 = vpack.c.b16 %v1384, %v1383
          %v1459 = vpack.c.b16 %v1386, %v1385
          %v1460 = vpack.c.b16 %v1388, %v1387
          %v1461 = vpack.c.b16 %v1390, %v1389
          %v1462 = vpack.c.b16 %v1392, %v1391
          %v1463 = vpack.c.b16 %v1394, %v1393
          %v1464 = vpack.c.b16 %v1396, %v1395
          %v1465 = vpack.c.b16 %v1398, %v1397
          %v1466 = vpack.c.b16 %v1400, %v1399
          %v1467 = vpack.c.b16 %v1402, %v1401
          %v1468 = vpack.c.b16 %v1404, %v1403
          %v1469 = vpack.c.b16 %v1406, %v1405
          %v1470 = vpack.c.b16 %v1408, %v1407
          %v1471 = vpack.c.b16 %v1410, %v1409
          %v1472 = vpack.c.b16 %v1412, %v1411
          %v1473 = vpack.c.b16 %v1414, %v1413
          %v1474 = vpack.c.b16 %v1416, %v1415
          %v1475 = vpack.c.b16 %v1418, %v1417
          %v1476 = vpack.c.b16 %v1420, %v1419
          %v1477 = vpack.c.b16 %v1422, %v1421
          %v1478 = vpack.c.b16 %v1424, %v1423
          %v1479 = vpack.c.b16 %v1426, %v1425
          %v1480 = vpack.c.b16 %v1428, %v1427
          %v1481 = vpack.c.b16 %v1430, %v1429
          %v1482 = vpack.c.b16 %v1432, %v1431
          %v1483 = vpack.c.b16 %v1434, %v1433
          %v1484 = vpack.c.b16 %v1436, %v1435
          %1533 = vmatprep.subr.bf16.mxu0 0
          %1534 = vmatpush1.bf16.msra.mxu0 %v1437
          %1535 = vmatprep.subr.bf16.mxu0 0
          %1536 = vmatpush1.bf16.msra.mxu0 %v1438
          %1537 = vmatprep.subr.bf16.mxu0 0
          %1538 = vmatpush1.bf16.msra.mxu0 %v1439
          %1539 = vmatprep.subr.bf16.mxu0 0
          %1540 = vmatpush1.bf16.msra.mxu0 %v1440
          %1541 = vmatprep.subr.bf16.mxu0 0
          %1542 = vmatpush1.bf16.msra.mxu0 %v1441
          %1543 = vmatprep.subr.bf16.mxu0 0
          %1544 = vmatpush1.bf16.msra.mxu0 %v1442
          %1545 = vmatprep.subr.bf16.mxu0 0
          %1546 = vmatpush1.bf16.msra.mxu0 %v1443
          %1547 = vmatprep.subr.bf16.mxu0 0
          %1548 = vmatpush1.bf16.msra.mxu0 %v1444
          %1549 = vmatprep.subr.bf16.mxu0 0
          %1550 = vmatpush1.bf16.msra.mxu0 %v1445
          %1551 = vmatprep.subr.bf16.mxu0 0
          %1552 = vmatpush1.bf16.msra.mxu0 %v1446
          %1553 = vmatprep.subr.bf16.mxu0 0
          %1554 = vmatpush1.bf16.msra.mxu0 %v1447
          %1555 = vmatprep.subr.bf16.mxu0 0
          %1556 = vmatpush1.bf16.msra.mxu0 %v1448
          %1557 = vmatprep.subr.bf16.mxu0 0
          %1558 = vmatpush1.bf16.msra.mxu0 %v1449
          %1559 = vmatprep.subr.bf16.mxu0 0
          %1560 = vmatpush1.bf16.msra.mxu0 %v1450
          %1561 = vmatprep.subr.bf16.mxu0 0
          %1562 = vmatpush1.bf16.msra.mxu0 %v1451
          %1563 = vmatprep.subr.bf16.mxu0 0
          %1564 = vmatpush1.bf16.msra.mxu0 %v1452
          %1565 = vmatprep.mubr.bf16.mxu0 %v1240
          %1566 = vmatmul.mubr.bf16.gmra.mrb[0].mxu0 %v1239
          %v1567 = vpop.f32.mrb[0].mxu0
          %v1568 = vadd.f32 0.0, %v1567
          %v1569 = vpop.f32.mrb[0].mxu0
          %v1570 = vpop.f32.mrb[0].mxu0
          %v1571 = vadd.f32 0.0, %v1570
          %v1572 = vpop.f32.mrb[0].mxu0
          %1573 = vdwg.mxu0
          %1574 = vmatprep.subr.bf16.mxu0 0
          %1575 = vmatpush1.bf16.msra.mxu0 %v1453
          %1576 = vmatprep.subr.bf16.mxu0 0
          %1577 = vmatpush1.bf16.msra.mxu0 %v1454
          %1578 = vmatprep.subr.bf16.mxu0 0
          %1579 = vmatpush1.bf16.msra.mxu0 %v1455
          %1580 = vmatprep.subr.bf16.mxu0 0
          %1581 = vmatpush1.bf16.msra.mxu0 %v1456
          %1582 = vmatprep.subr.bf16.mxu0 0
          %1583 = vmatpush1.bf16.msra.mxu0 %v1457
          %1584 = vmatprep.subr.bf16.mxu0 0
          %1585 = vmatpush1.bf16.msra.mxu0 %v1458
          %1586 = vmatprep.subr.bf16.mxu0 0
          %1587 = vmatpush1.bf16.msra.mxu0 %v1459
          %1588 = vmatprep.subr.bf16.mxu0 0
          %1589 = vmatpush1.bf16.msra.mxu0 %v1460
          %1590 = vmatprep.subr.bf16.mxu0 0
          %1591 = vmatpush1.bf16.msra.mxu0 %v1461
          %1592 = vmatprep.subr.bf16.mxu0 0
          %1593 = vmatpush1.bf16.msra.mxu0 %v1462
          %1594 = vmatprep.subr.bf16.mxu0 0
          %1595 = vmatpush1.bf16.msra.mxu0 %v1463
          %1596 = vmatprep.subr.bf16.mxu0 0
          %1597 = vmatpush1.bf16.msra.mxu0 %v1464
          %1598 = vmatprep.subr.bf16.mxu0 0
          %1599 = vmatpush1.bf16.msra.mxu0 %v1465
          %1600 = vmatprep.subr.bf16.mxu0 0
          %1601 = vmatpush1.bf16.msra.mxu0 %v1466
          %1602 = vmatprep.subr.bf16.mxu0 0
          %1603 = vmatpush1.bf16.msra.mxu0 %v1467
          %1604 = vmatprep.subr.bf16.mxu0 0
          %1605 = vmatpush1.bf16.msra.mxu0 %v1468
          %1606 = vmatprep.mubr.bf16.mxu0 %v1242
          %1607 = vmatmul.mubr.bf16.gmra.mrb[0].mxu0 %v1241
          %v1608 = vpop.f32.mrb[0].mxu0
          %v1609 = vadd.f32 %v1568, %v1608
          %v1610 = vpop.f32.mrb[0].mxu0
          %v1611 = vpop.f32.mrb[0].mxu0
          %v1612 = vadd.f32 %v1571, %v1611
          %v1613 = vpop.f32.mrb[0].mxu0
          %1614 = vdwg.mxu0
          %1615 = vmatprep.subr.bf16.mxu0 0
          %1616 = vmatpush1.bf16.msra.mxu0 %v1469
          %1617 = vmatprep.subr.bf16.mxu0 0
          %1618 = vmatpush1.bf16.msra.mxu0 %v1470
          %1619 = vmatprep.subr.bf16.mxu0 0
          %1620 = vmatpush1.bf16.msra.mxu0 %v1471
          %1621 = vmatprep.subr.bf16.mxu0 0
          %1622 = vmatpush1.bf16.msra.mxu0 %v1472
          %1623 = vmatprep.subr.bf16.mxu0 0
          %1624 = vmatpush1.bf16.msra.mxu0 %v1473
          %1625 = vmatprep.subr.bf16.mxu0 0
          %1626 = vmatpush1.bf16.msra.mxu0 %v1474
          %1627 = vmatprep.subr.bf16.mxu0 0
          %1628 = vmatpush1.bf16.msra.mxu0 %v1475
          %1629 = vmatprep.subr.bf16.mxu0 0
          %1630 = vmatpush1.bf16.msra.mxu0 %v1476
          %1631 = vmatprep.subr.bf16.mxu0 0
          %1632 = vmatpush1.bf16.msra.mxu0 %v1477
          %1633 = vmatprep.subr.bf16.mxu0 0
          %1634 = vmatpush1.bf16.msra.mxu0 %v1478
          %1635 = vmatprep.subr.bf16.mxu0 0
          %1636 = vmatpush1.bf16.msra.mxu0 %v1479
          %1637 = vmatprep.subr.bf16.mxu0 0
          %1638 = vmatpush1.bf16.msra.mxu0 %v1480
          %1639 = vmatprep.subr.bf16.mxu0 0
          %1640 = vmatpush1.bf16.msra.mxu0 %v1481
          %1641 = vmatprep.subr.bf16.mxu0 0
          %1642 = vmatpush1.bf16.msra.mxu0 %v1482
          %1643 = vmatprep.subr.bf16.mxu0 0
          %1644 = vmatpush1.bf16.msra.mxu0 %v1483
          %1645 = vmatprep.subr.bf16.mxu0 0
          %1646 = vmatpush1.bf16.msra.mxu0 %v1484
          %1647 = vmatprep.mubr.bf16.mxu0 %v1244
          %1648 = vmatmul.mubr.bf16.gmra.mrb[0].mxu0 %v1243
          %v1649 = vpop.f32.mrb[0].mxu0
          %v1650 = vadd.f32 %v1609, %v1649
          %v1651 = vpop.f32.mrb[0].mxu0
          %v1652 = vpop.f32.mrb[0].mxu0
          %v1653 = vadd.f32 %v1612, %v1652
          %v1654 = vpop.f32.mrb[0].mxu0
          %1655 = vdwg.mxu0
          %v1656 = vld [vmem:[#allocation9] sm:$0xff]
          %v1657 = vadd.f32 %v1650, %v1656
          %v1658 = vadd.f32 %v1653, %v1656
          %v1659 = vld [vmem:[#allocation10] sm:$0x1]
          %v1660 = vld [vmem:[#allocation12] sm:$0x1]
          %1661 = vadd.xlane.f32.xlu0 %v1657
          %v1662 = vpop.xlane.xlu0 %1661
          %1663 = vadd.xlane.f32.xlu0 %v1658
          %v1664 = vpop.xlane.xlu0 %1663
          %v1665 = vrcp.pop 128.0
          %v1666 = vmul.f32 %v1662, %v1665
          %v1667 = vmul.f32 %v1664, %v1665
          %v1668 = vsub.f32 %v1657, %v1666
          %v1669 = vsub.f32 %v1658, %v1667
          %v1670 = vmul.f32 %v1668, %v1668
          %v1671 = vmul.f32 %v1669, %v1669
          %1672 = vadd.xlane.f32.xlu0 %v1670
          %v1673 = vpop.xlane.xlu0 %1672
          %1674 = vadd.xlane.f32.xlu0 %v1671
          %v1675 = vpop.xlane.xlu0 %1674
          %v1676 = vmul.f32 %v1673, %v1665
          %v1677 = vmul.f32 %v1675, %v1665
          %v1678 = vadd.f32 %v1676, 1e-05
          %v1679 = vadd.f32 %v1677, 1e-05
          %v1680 = vrsqrt.pop %v1678
          %v1681 = vrsqrt.pop %v1679
          %v1682 = vmul.f32 %v1668, %v1680
          %v1683 = vmul.f32 %v1669, %v1681
          %v1685 = vlaneseq
          %v1686 = vshrl.u32 %v1685, 7
          %v1687 = vsub.s32 0, %v1686
          %v1688 = vrot.slane %v1659, %v1687
          %v1690 = vmul.f32 %v1682, %v1688
          %v1691 = vmul.f32 %v1683, %v1688
          %v1693 = vlaneseq
          %v1694 = vshrl.u32 %v1693, 7
          %v1695 = vsub.s32 0, %v1694
          %v1696 = vrot.slane %v1660, %v1695
          %v1698 = vadd.f32 %v1690, %v1696
          %v1699 = vadd.f32 %v1691, %v1696
          %1700 = vst [vmem:[#allocation2] sm:$0xff] %v1698
          %1701 = vst [vmem:[#allocation2 + $0x8] sm:$0xff] %v1699
        $region176: #{tpu_custom_call.1} parent=103 // pred_fallthru
          _
        %v1702 = vld [vmem:[#allocation2] sm:$0xff]
        %v1703 = vld [vmem:[#allocation2 + $0x8] sm:$0xff]
        %v1704 = vld [vmem:[%s1121] sm:$0x1]
        %v1705 = vld [vmem:[%s932] sm:$0x1]
        %1706 = vadd.xlane.f32.xlu0 %v1702
        %v1707 = vpop.xlane.xlu0 %1706
        %1708 = vadd.xlane.f32.xlu0 %v1703
        %v1709 = vpop.xlane.xlu0 %1708
        %v1710 = vrcp.pop 128.0
        %v1711 = vmul.f32 %v1707, %v1710
        %v1712 = vmul.f32 %v1709, %v1710
        %v1713 = vsub.f32 %v1702, %v1711
        %v1714 = vsub.f32 %v1703, %v1712
        %v1715 = vmul.f32 %v1713, %v1713
        %v1716 = vmul.f32 %v1714, %v1714
        %1717 = vadd.xlane.f32.xlu0 %v1715
        %v1718 = vpop.xlane.xlu0 %1717
        %1719 = vadd.xlane.f32.xlu0 %v1716
        %v1720 = vpop.xlane.xlu0 %1719
        %v1721 = vmul.f32 %v1718, %v1710
        %v1722 = vmul.f32 %v1720, %v1710
        %v1723 = vadd.f32 %v1721, 1e-05
        %v1724 = vadd.f32 %v1722, 1e-05
        %v1725 = vrsqrt.pop %v1723
        %v1726 = vrsqrt.pop %v1724
        %v1727 = vmul.f32 %v1713, %v1725
        %v1728 = vmul.f32 %v1714, %v1726
        %v1730 = vlaneseq
        %v1731 = vshrl.u32 %v1730, 7
        %v1732 = vsub.s32 0, %v1731
        %v1733 = vrot.slane %v1704, %v1732
        %v1735 = vmul.f32 %v1727, %v1733
        %v1736 = vmul.f32 %v1728, %v1733
        %v1738 = vlaneseq
        %v1739 = vshrl.u32 %v1738, 7
        %v1740 = vsub.s32 0, %v1739
        %v1741 = vrot.slane %v1705, %v1740
        %v1743 = vadd.f32 %v1735, %v1741
        %v1744 = vadd.f32 %v1736, %v1741
        %v1745 = vld [vmem:[%s941] sm:$0xff]
        %v1746 = vld [vmem:[%s941 + $0x8] sm:$0xf]
        %v1747 = vld [vmem:[%s941 + $0xc] sm:$0xff]
        %v1748 = vld [vmem:[%s941 + $0x14] sm:$0xf]
        %v1749 = vld [vmem:[%s941 + $0x18] sm:$0xff]
        %v1750 = vld [vmem:[%s941 + $0x20] sm:$0xf]
        %v1751 = vld [vmem:[%s941 + $0x24] sm:$0xff]
        %v1752 = vld [vmem:[%s941 + $0x2c] sm:$0xf]
        %v1753 = vld [vmem:[%s941 + $0x30] sm:$0xff]
        %v1754 = vld [vmem:[%s941 + $0x38] sm:$0xf]
        %v1755 = vld [vmem:[%s941 + $0x3c] sm:$0xff]
        %v1756 = vld [vmem:[%s941 + $0x44] sm:$0xf]
        %v1757 = vld [vmem:[%s941 + $0x48] sm:$0xff]
        %v1758 = vld [vmem:[%s941 + $0x50] sm:$0xf]
        %v1759 = vld [vmem:[%s941 + $0x54] sm:$0xff]
        %v1760 = vld [vmem:[%s941 + $0x5c] sm:$0xf]
        %v1761 = vld [vmem:[%s941 + $0x60] sm:$0xff]
        %v1762 = vld [vmem:[%s941 + $0x68] sm:$0xf]
        %v1763 = vld [vmem:[%s941 + $0x6c] sm:$0xff]
        %v1764 = vld [vmem:[%s941 + $0x74] sm:$0xf]
        %v1765 = vld [vmem:[%s941 + $0x78] sm:$0xff]
        %v1766 = vld [vmem:[%s941 + $0x80] sm:$0xf]
        %v1767 = vld [vmem:[%s941 + $0x84] sm:$0xff]
        %v1768 = vld [vmem:[%s941 + $0x8c] sm:$0xf]
        %v1769 = vld [vmem:[%s941 + $0x90] sm:$0xff]
        %v1770 = vld [vmem:[%s941 + $0x98] sm:$0xf]
        %v1771 = vld [vmem:[%s941 + $0x9c] sm:$0xff]
        %v1772 = vld [vmem:[%s941 + $0xa4] sm:$0xf]
        %v1773 = vld [vmem:[%s941 + $0xa8] sm:$0xff]
        %v1774 = vld [vmem:[%s941 + $0xb0] sm:$0xf]
        %v1775 = vld [vmem:[%s941 + $0xb4] sm:$0xff]
        %v1776 = vld [vmem:[%s941 + $0xbc] sm:$0xf]
        %v1777 = vpack.c.bf16 %v1744, %v1743
        %v1778 = vld [vmem:[%s950] sm:$0x7]
        %v1780 = vlaneseq
        %v1781 = vshrl.u32 %v1780, 7
        %v1782 = vsub.s32 0, %v1781
        %v1783 = vrot.slane %v1778, %v1782
        %v1784 = vlaneseq
        %v1785 = vshrl.u32 %v1784, 7
        %v1786 = vsub.s32 1, %v1785
        %v1787 = vrot.slane %v1778, %v1786
        %v1788 = vlaneseq
        %v1789 = vshrl.u32 %v1788, 7
        %v1790 = vsub.s32 2, %v1789
        %v1791 = vrot.slane %v1778, %v1790
        %v1827 = vunpack.c.l.b16 %v1745
        %v1828 = vunpack.c.h.b16 %v1745
        %v1829 = vunpack.c.l.b16 %v1746
        %v1830 = vunpack.c.l.b16 %v1747
        %v1831 = vunpack.c.h.b16 %v1747
        %v1832 = vunpack.c.l.b16 %v1748
        %v1833 = vunpack.c.l.b16 %v1749
        %v1834 = vunpack.c.h.b16 %v1749
        %v1835 = vunpack.c.l.b16 %v1750
        %v1836 = vunpack.c.l.b16 %v1751
        %v1837 = vunpack.c.h.b16 %v1751
        %v1838 = vunpack.c.l.b16 %v1752
        %v1839 = vunpack.c.l.b16 %v1753
        %v1840 = vunpack.c.h.b16 %v1753
        %v1841 = vunpack.c.l.b16 %v1754
        %v1842 = vunpack.c.l.b16 %v1755
        %v1843 = vunpack.c.h.b16 %v1755
        %v1844 = vunpack.c.l.b16 %v1756
        %v1845 = vunpack.c.l.b16 %v1757
        %v1846 = vunpack.c.h.b16 %v1757
        %v1847 = vunpack.c.l.b16 %v1758
        %v1848 = vunpack.c.l.b16 %v1759
        %v1849 = vunpack.c.h.b16 %v1759
        %v1850 = vunpack.c.l.b16 %v1760
        %v1851 = vunpack.c.l.b16 %v1761
        %v1852 = vunpack.c.h.b16 %v1761
        %v1853 = vunpack.c.l.b16 %v1762
        %v1854 = vunpack.c.l.b16 %v1763
        %v1855 = vunpack.c.h.b16 %v1763
        %v1856 = vunpack.c.l.b16 %v1764
        %v1857 = vunpack.c.l.b16 %v1765
        %v1858 = vunpack.c.h.b16 %v1765
        %v1859 = vunpack.c.l.b16 %v1766
        %v1860 = vunpack.c.l.b16 %v1767
        %v1861 = vunpack.c.h.b16 %v1767
        %v1862 = vunpack.c.l.b16 %v1768
        %v1863 = vunpack.c.l.b16 %v1769
        %v1864 = vunpack.c.h.b16 %v1769
        %v1865 = vunpack.c.l.b16 %v1770
        %v1866 = vunpack.c.l.b16 %v1771
        %v1867 = vunpack.c.h.b16 %v1771
        %v1868 = vunpack.c.l.b16 %v1772
        %v1869 = vunpack.c.l.b16 %v1773
        %v1870 = vunpack.c.h.b16 %v1773
        %v1871 = vunpack.c.l.b16 %v1774
        %v1872 = vunpack.c.l.b16 %v1775
        %v1873 = vunpack.c.h.b16 %v1775
        %v1874 = vunpack.c.l.b16 %v1776
        %v1875 = vpack.c.b16 %v1830, %v1827
        %v1876 = vpack.c.b16 %v1831, %v1828
        %v1877 = vpack.c.b16 %v1832, %v1829
        %v1878 = vpack.c.b16 %v1836, %v1833
        %v1879 = vpack.c.b16 %v1837, %v1834
        %v1880 = vpack.c.b16 %v1838, %v1835
        %v1881 = vpack.c.b16 %v1842, %v1839
        %v1882 = vpack.c.b16 %v1843, %v1840
        %v1883 = vpack.c.b16 %v1844, %v1841
        %v1884 = vpack.c.b16 %v1848, %v1845
        %v1885 = vpack.c.b16 %v1849, %v1846
        %v1886 = vpack.c.b16 %v1850, %v1847
        %v1887 = vpack.c.b16 %v1854, %v1851
        %v1888 = vpack.c.b16 %v1855, %v1852
        %v1889 = vpack.c.b16 %v1856, %v1853
        %v1890 = vpack.c.b16 %v1860, %v1857
        %v1891 = vpack.c.b16 %v1861, %v1858
        %v1892 = vpack.c.b16 %v1862, %v1859
        %v1893 = vpack.c.b16 %v1866, %v1863
        %v1894 = vpack.c.b16 %v1867, %v1864
        %v1895 = vpack.c.b16 %v1868, %v1865
        %v1896 = vpack.c.b16 %v1872, %v1869
        %v1897 = vpack.c.b16 %v1873, %v1870
        %v1898 = vpack.c.b16 %v1874, %v1871
        %1923 = vmatprep.subr.bf16.mxu0 %v1876
        %1924 = vmatpush1.bf16.msra.mxu0 %v1875
        %1925 = vmatprep.subr.bf16.mxu0 %v1879
        %1926 = vmatpush1.bf16.msra.mxu0 %v1878
        %1927 = vmatprep.subr.bf16.mxu0 %v1882
        %1928 = vmatpush1.bf16.msra.mxu0 %v1881
        %1929 = vmatprep.subr.bf16.mxu0 %v1885
        %1930 = vmatpush1.bf16.msra.mxu0 %v1884
        %1931 = vmatprep.subr.bf16.mxu0 %v1888
        %1932 = vmatpush1.bf16.msra.mxu0 %v1887
        %1933 = vmatprep.subr.bf16.mxu0 %v1891
        %1934 = vmatpush1.bf16.msra.mxu0 %v1890
        %1935 = vmatprep.subr.bf16.mxu0 %v1894
        %1936 = vmatpush1.bf16.msra.mxu0 %v1893
        %1937 = vmatprep.subr.bf16.mxu0 %v1897
        %1938 = vmatpush1.bf16.msra.mxu0 %v1896
        %1939 = vmatprep.subr.bf16.mxu0 0
        %1940 = vmatpush1.bf16.msra.mxu0 0
        %1941 = vmatprep.subr.bf16.mxu0 0
        %1942 = vmatpush1.bf16.msra.mxu0 0
        %1943 = vmatprep.subr.bf16.mxu0 0
        %1944 = vmatpush1.bf16.msra.mxu0 0
        %1945 = vmatprep.subr.bf16.mxu0 0
        %1946 = vmatpush1.bf16.msra.mxu0 0
        %1947 = vmatprep.subr.bf16.mxu0 0
        %1948 = vmatpush1.bf16.msra.mxu0 0
        %1949 = vmatprep.subr.bf16.mxu0 0
        %1950 = vmatpush1.bf16.msra.mxu0 0
        %1951 = vmatprep.subr.bf16.mxu0 0
        %1952 = vmatpush1.bf16.msra.mxu0 0
        %1953 = vmatprep.subr.bf16.mxu0 0
        %1954 = vmatpush1.bf16.msra.mxu0 0
        %1955 = vmatprep.mubr.bf16.mxu0 0
        %1956 = vmatmul.mubr.bf16.gmra.mrb[0].mxu0 %v1777
        %v1957 = vpop.f32.mrb[0].mxu0
        %v1958 = vadd.f32 %v1783, %v1957
        %v1959 = vpop.f32.mrb[0].mxu0
        %v1960 = vadd.f32 %v1787, %v1959
        %v1961 = vpop.f32.mrb[0].mxu0
        %v1962 = vadd.f32 %v1783, %v1961
        %v1963 = vpop.f32.mrb[0].mxu0
        %v1964 = vadd.f32 %v1787, %v1963
        %1965 = vdwg.mxu0
        %1966 = vmatprep.subr.bf16.mxu0 0
        %1967 = vmatpush1.bf16.msra.mxu0 %v1877
        %1968 = vmatprep.subr.bf16.mxu0 0
        %1969 = vmatpush1.bf16.msra.mxu0 %v1880
        %1970 = vmatprep.subr.bf16.mxu0 0
        %1971 = vmatpush1.bf16.msra.mxu0 %v1883
        %1972 = vmatprep.subr.bf16.mxu0 0
        %1973 = vmatpush1.bf16.msra.mxu0 %v1886
        %1974 = vmatprep.subr.bf16.mxu0 0
        %1975 = vmatpush1.bf16.msra.mxu0 %v1889
        %1976 = vmatprep.subr.bf16.mxu0 0
        %1977 = vmatpush1.bf16.msra.mxu0 %v1892
        %1978 = vmatprep.subr.bf16.mxu0 0
        %1979 = vmatpush1.bf16.msra.mxu0 %v1895
        %1980 = vmatprep.subr.bf16.mxu0 0
        %1981 = vmatpush1.bf16.msra.mxu0 %v1898
        %1982 = vmatprep.subr.bf16.mxu0 0
        %1983 = vmatpush1.bf16.msra.mxu0 0
        %1984 = vmatprep.subr.bf16.mxu0 0
        %1985 = vmatpush1.bf16.msra.mxu0 0
        %1986 = vmatprep.subr.bf16.mxu0 0
        %1987 = vmatpush1.bf16.msra.mxu0 0
        %1988 = vmatprep.subr.bf16.mxu0 0
        %1989 = vmatpush1.bf16.msra.mxu0 0
        %1990 = vmatprep.subr.bf16.mxu0 0
        %1991 = vmatpush1.bf16.msra.mxu0 0
        %1992 = vmatprep.subr.bf16.mxu0 0
        %1993 = vmatpush1.bf16.msra.mxu0 0
        %1994 = vmatprep.subr.bf16.mxu0 0
        %1995 = vmatpush1.bf16.msra.mxu0 0
        %1996 = vmatprep.subr.bf16.mxu0 0
        %1997 = vmatpush1.bf16.msra.mxu0 0
        %1998 = vmatprep.mubr.bf16.mxu0 0
        %1999 = vmatmul.mubr.bf16.gmra.mrb[0].mxu0 %v1777
        %v2000 = vpop.f32.mrb[0].mxu0
        %v2001 = vadd.f32 %v1791, %v2000
        %v2002 = vpop.f32.mrb[0].mxu0
        %v2003 = vpop.f32.mrb[0].mxu0
        %v2004 = vadd.f32 %v1791, %v2003
        %v2005 = vpop.f32.mrb[0].mxu0
        %2006 = vdwg.mxu0
        %v2007 = vld [vmem:[%s3] sm:$0x1]
        %v2008 = vpack.c.bf16 %v1958, %v1958
        %v2009 = vpack.c.bf16 %v1962, %v1962
        %v2010 = vpack.c.bf16 %v1960, %v1960
        %v2011 = vpack.c.bf16 %v1964, %v1964
        %v2012 = vpack.c.bf16 %v2001, %v2001
        %v2013 = vpack.c.bf16 %v2004, %v2004
        %vm2014 = vcmask 261120
        %v2016 = vsel %vm2014, %v2008, 0
        %v2019 = vsel %vm2014, %v2010, 0
        %2021 = vmatprep.subr.bf16.mxu0 0
        %2022 = vmatpush1.bf16.xpose.msra.mxu0 %v2019
        %2023 = vmatprep.subr.bf16.mxu0 0
        %2024 = vmatpush1.bf16.xpose.msra.mxu0 0
        %2025 = vmatprep.subr.bf16.mxu0 0
        %2026 = vmatpush1.bf16.xpose.msra.mxu0 0
        %2027 = vmatprep.subr.bf16.mxu0 0
        %2028 = vmatpush1.bf16.xpose.msra.mxu0 0
        %2029 = vmatprep.subr.bf16.mxu0 0
        %2030 = vmatpush1.bf16.xpose.msra.mxu0 0
        %2031 = vmatprep.subr.bf16.mxu0 0
        %2032 = vmatpush1.bf16.xpose.msra.mxu0 0
        %2033 = vmatprep.subr.bf16.mxu0 0
        %2034 = vmatpush1.bf16.xpose.msra.mxu0 0
        %2035 = vmatprep.subr.bf16.mxu0 0
        %2036 = vmatpush1.bf16.xpose.msra.mxu0 0
        %2037 = vmatprep.subr.bf16.mxu0 0
        %2038 = vmatpush1.bf16.xpose.msra.mxu0 0
        %2039 = vmatprep.subr.bf16.mxu0 0
        %2040 = vmatpush1.bf16.xpose.msra.mxu0 0
        %2041 = vmatprep.subr.bf16.mxu0 0
        %2042 = vmatpush1.bf16.xpose.msra.mxu0 0
        %2043 = vmatprep.subr.bf16.mxu0 0
        %2044 = vmatpush1.bf16.xpose.msra.mxu0 0
        %2045 = vmatprep.subr.bf16.mxu0 0
        %2046 = vmatpush1.bf16.xpose.msra.mxu0 0
        %2047 = vmatprep.subr.bf16.mxu0 0
        %2048 = vmatpush1.bf16.xpose.msra.mxu0 0
        %2049 = vmatprep.subr.bf16.mxu0 0
        %2050 = vmatpush1.bf16.xpose.msra.mxu0 0
        %2051 = vmatprep.subr.bf16.mxu0 0
        %2052 = vmatpush1.bf16.xpose.msra.mxu0 0
        %2053 = vmatprep.mubr.bf16.mxu0 0
        %2054 = vmatmul.mubr.bf16.gmra.mrb[0].mxu0 %v2016
        %v2055 = vpop.f32.mrb[0].mxu0
        %v2056 = vadd.f32 0.0, %v2055
        %v2057 = vpop.f32.mrb[0].mxu0
        %v2058 = vpop.f32.mrb[0].mxu0
        %v2059 = vpop.f32.mrb[0].mxu0
        %2060 = vdwg.mxu0
        %v2062 = vsel %vm2014, %v2009, 0
        %v2065 = vsel %vm2014, %v2011, 0
        %2067 = vmatprep.subr.bf16.mxu0 0
        %2068 = vmatpush1.bf16.xpose.msra.mxu0 %v2065
        %2069 = vmatprep.subr.bf16.mxu0 0
        %2070 = vmatpush1.bf16.xpose.msra.mxu0 0
        %2071 = vmatprep.subr.bf16.mxu0 0
        %2072 = vmatpush1.bf16.xpose.msra.mxu0 0
        %2073 = vmatprep.subr.bf16.mxu0 0
        %2074 = vmatpush1.bf16.xpose.msra.mxu0 0
        %2075 = vmatprep.subr.bf16.mxu0 0
        %2076 = vmatpush1.bf16.xpose.msra.mxu0 0
        %2077 = vmatprep.subr.bf16.mxu0 0
        %2078 = vmatpush1.bf16.xpose.msra.mxu0 0
        %2079 = vmatprep.subr.bf16.mxu0 0
        %2080 = vmatpush1.bf16.xpose.msra.mxu0 0
        %2081 = vmatprep.subr.bf16.mxu0 0
        %2082 = vmatpush1.bf16.xpose.msra.mxu0 0
        %2083 = vmatprep.subr.bf16.mxu0 0
        %2084 = vmatpush1.bf16.xpose.msra.mxu0 0
        %2085 = vmatprep.subr.bf16.mxu0 0
        %2086 = vmatpush1.bf16.xpose.msra.mxu0 0
        %2087 = vmatprep.subr.bf16.mxu0 0
        %2088 = vmatpush1.bf16.xpose.msra.mxu0 0
        %2089 = vmatprep.subr.bf16.mxu0 0
        %2090 = vmatpush1.bf16.xpose.msra.mxu0 0
        %2091 = vmatprep.subr.bf16.mxu0 0
        %2092 = vmatpush1.bf16.xpose.msra.mxu0 0
        %2093 = vmatprep.subr.bf16.mxu0 0
        %2094 = vmatpush1.bf16.xpose.msra.mxu0 0
        %2095 = vmatprep.subr.bf16.mxu0 0
        %2096 = vmatpush1.bf16.xpose.msra.mxu0 0
        %2097 = vmatprep.subr.bf16.mxu0 0
        %2098 = vmatpush1.bf16.xpose.msra.mxu0 0
        %2099 = vmatprep.mubr.bf16.mxu0 0
        %2100 = vmatmul.mubr.bf16.gmra.mrb[0].mxu0 %v2062
        %v2101 = vpop.f32.mrb[0].mxu0
        %v2102 = vadd.f32 0.0, %v2101
        %v2103 = vpop.f32.mrb[0].mxu0
        %v2104 = vpop.f32.mrb[0].mxu0
        %v2105 = vpop.f32.mrb[0].mxu0
        %2106 = vdwg.mxu0
        %v2107 = vmul.f32 %v2056, 0.17677669
        %v2108 = vmul.f32 %v2102, 0.17677669
        %v2110 = vlaneseq
        %v2111 = vshrl.u32 %v2110, 7
        %v2112 = vsub.s32 0, %v2111
        %v2113 = vrot.slane %v2007, %v2112
        %v2115 = vadd.f32 %v2107, %v2113
        %v2116 = vadd.f32 %v2108, %v2113
        %vm2117 = vcmask 64512
        %v2118 = vsel %vm2117, %v2115, -inf
        %2119 = vmax.xlane.f32.xlu0 %v2118
        %v2120 = vpop.xlane.xlu0 %2119
        %v2121 = vsel %vm2117, %v2116, -inf
        %2122 = vmax.xlane.f32.xlu0 %v2121
        %v2123 = vpop.xlane.xlu0 %2122
        %v2124 = vsub.f32 %v2115, %v2120
        %v2125 = vsub.f32 %v2116, %v2123
        %v2126 = vmul.f32 %v2124, 1.442695
        %v2127 = vpow.pop %v2126
        %v2128 = vmul.f32 %v2125, 1.442695
        %v2129 = vpow.pop %v2128
        %v2130 = vsel %vm2117, %v2127, 0.0
        %2131 = vadd.xlane.f32.xlu0 %v2130
        %v2132 = vpop.xlane.xlu0 %2131
        %v2133 = vsel %vm2117, %v2129, 0.0
        %2134 = vadd.xlane.f32.xlu0 %v2133
        %v2135 = vpop.xlane.xlu0 %2134
        %v2136 = vrcp.pop %v2132
        %v2137 = vrcp.pop %v2135
        %v2138 = vmul.f32 %v2127, %v2136
        %v2139 = vmul.f32 %v2129, %v2137
        %v2140 = vpack.c.bf16 %v2138, %v2138
        %v2141 = vpack.c.bf16 %v2139, %v2139
        %v2143 = vsel %vm2117, %v2140, 0
        %vm2145 = vcmask 1043456
        %v2147 = vsel %vm2145, %v2012, 0
        %2149 = vmatprep.subr.bf16.mxu0 0
        %2150 = vmatpush1.bf16.msra.mxu0 %v2147
        %2151 = vmatprep.subr.bf16.mxu0 0
        %2152 = vmatpush1.bf16.msra.mxu0 0
        %2153 = vmatprep.subr.bf16.mxu0 0
        %2154 = vmatpush1.bf16.msra.mxu0 0
        %2155 = vmatprep.subr.bf16.mxu0 0
        %2156 = vmatpush1.bf16.msra.mxu0 0
        %2157 = vmatprep.subr.bf16.mxu0 0
        %2158 = vmatpush1.bf16.msra.mxu0 0
        %2159 = vmatprep.subr.bf16.mxu0 0
        %2160 = vmatpush1.bf16.msra.mxu0 0
        %2161 = vmatprep.subr.bf16.mxu0 0
        %2162 = vmatpush1.bf16.msra.mxu0 0
        %2163 = vmatprep.subr.bf16.mxu0 0
        %2164 = vmatpush1.bf16.msra.mxu0 0
        %2165 = vmatprep.subr.bf16.mxu0 0
        %2166 = vmatpush1.bf16.msra.mxu0 0
        %2167 = vmatprep.subr.bf16.mxu0 0
        %2168 = vmatpush1.bf16.msra.mxu0 0
        %2169 = vmatprep.subr.bf16.mxu0 0
        %2170 = vmatpush1.bf16.msra.mxu0 0
        %2171 = vmatprep.subr.bf16.mxu0 0
        %2172 = vmatpush1.bf16.msra.mxu0 0
        %2173 = vmatprep.subr.bf16.mxu0 0
        %2174 = vmatpush1.bf16.msra.mxu0 0
        %2175 = vmatprep.subr.bf16.mxu0 0
        %2176 = vmatpush1.bf16.msra.mxu0 0
        %2177 = vmatprep.subr.bf16.mxu0 0
        %2178 = vmatpush1.bf16.msra.mxu0 0
        %2179 = vmatprep.subr.bf16.mxu0 0
        %2180 = vmatpush1.bf16.msra.mxu0 0
        %2181 = vmatprep.mubr.bf16.mxu0 0
        %2182 = vmatmul.mubr.bf16.gmra.mrb[0].mxu0 %v2143
        %v2183 = vpop.f32.mrb[0].mxu0
        %v2184 = vadd.f32 0.0, %v2183
        %v2185 = vpop.f32.mrb[0].mxu0
        %v2186 = vpop.f32.mrb[0].mxu0
        %v2187 = vpop.f32.mrb[0].mxu0
        %2188 = vdwg.mxu0
        %v2190 = vsel %vm2117, %v2141, 0
        %v2193 = vsel %vm2145, %v2013, 0
        %2195 = vmatprep.subr.bf16.mxu0 0
        %2196 = vmatpush1.bf16.msra.mxu0 %v2193
        %2197 = vmatprep.subr.bf16.mxu0 0
        %2198 = vmatpush1.bf16.msra.mxu0 0
        %2199 = vmatprep.subr.bf16.mxu0 0
        %2200 = vmatpush1.bf16.msra.mxu0 0
        %2201 = vmatprep.subr.bf16.mxu0 0
        %2202 = vmatpush1.bf16.msra.mxu0 0
        %2203 = vmatprep.subr.bf16.mxu0 0
        %2204 = vmatpush1.bf16.msra.mxu0 0
        %2205 = vmatprep.subr.bf16.mxu0 0
        %2206 = vmatpush1.bf16.msra.mxu0 0
        %2207 = vmatprep.subr.bf16.mxu0 0
        %2208 = vmatpush1.bf16.msra.mxu0 0
        %2209 = vmatprep.subr.bf16.mxu0 0
        %2210 = vmatpush1.bf16.msra.mxu0 0
        %2211 = vmatprep.subr.bf16.mxu0 0
        %2212 = vmatpush1.bf16.msra.mxu0 0
        %2213 = vmatprep.subr.bf16.mxu0 0
        %2214 = vmatpush1.bf16.msra.mxu0 0
        %2215 = vmatprep.subr.bf16.mxu0 0
        %2216 = vmatpush1.bf16.msra.mxu0 0
        %2217 = vmatprep.subr.bf16.mxu0 0
        %2218 = vmatpush1.bf16.msra.mxu0 0
        %2219 = vmatprep.subr.bf16.mxu0 0
        %2220 = vmatpush1.bf16.msra.mxu0 0
        %2221 = vmatprep.subr.bf16.mxu0 0
        %2222 = vmatpush1.bf16.msra.mxu0 0
        %2223 = vmatprep.subr.bf16.mxu0 0
        %2224 = vmatpush1.bf16.msra.mxu0 0
        %2225 = vmatprep.subr.bf16.mxu0 0
        %2226 = vmatpush1.bf16.msra.mxu0 0
        %2227 = vmatprep.mubr.bf16.mxu0 0
        %2228 = vmatmul.mubr.bf16.gmra.mrb[0].mxu0 %v2190
        %v2229 = vpop.f32.mrb[0].mxu0
        %v2230 = vadd.f32 0.0, %v2229
        %v2231 = vpop.f32.mrb[0].mxu0
        %v2232 = vpop.f32.mrb[0].mxu0
        %v2233 = vpop.f32.mrb[0].mxu0
        %2234 = vdwg.mxu0
        %v2235 = vpack.c.bf16 %v2184, %v2184
        %v2236 = vpack.c.bf16 %v2230, %v2230
        %vm2237 = vcmask 257024
        %2238 = vst.msk [vmem:[#allocation3] sm:$0xf] %vm2237, %v2235
        %2239 = vst.msk [vmem:[#allocation3 + $0x4] sm:$0xf] %vm2237, %v2236
        %2241 = vrot.lane.b32.xlu0 %v2008, 96
        %v2242 = vpop.permute.xlu0 %2241
        %2244 = vrot.lane.b32.xlu0 %v2010, 96
        %v2245 = vpop.permute.xlu0 %2244
        %v2247 = vsel %vm2014, %v2242, 0
        %v2250 = vsel %vm2014, %v2245, 0
        %2252 = vmatprep.subr.bf16.mxu0 0
        %2253 = vmatpush1.bf16.xpose.msra.mxu0 %v2250
        %2254 = vmatprep.subr.bf16.mxu0 0
        %2255 = vmatpush1.bf16.xpose.msra.mxu0 0
        %2256 = vmatprep.subr.bf16.mxu0 0
        %2257 = vmatpush1.bf16.xpose.msra.mxu0 0
        %2258 = vmatprep.subr.bf16.mxu0 0
        %2259 = vmatpush1.bf16.xpose.msra.mxu0 0
        %2260 = vmatprep.subr.bf16.mxu0 0
        %2261 = vmatpush1.bf16.xpose.msra.mxu0 0
        %2262 = vmatprep.subr.bf16.mxu0 0
        %2263 = vmatpush1.bf16.xpose.msra.mxu0 0
        %2264 = vmatprep.subr.bf16.mxu0 0
        %2265 = vmatpush1.bf16.xpose.msra.mxu0 0
        %2266 = vmatprep.subr.bf16.mxu0 0
        %2267 = vmatpush1.bf16.xpose.msra.mxu0 0
        %2268 = vmatprep.subr.bf16.mxu0 0
        %2269 = vmatpush1.bf16.xpose.msra.mxu0 0
        %2270 = vmatprep.subr.bf16.mxu0 0
        %2271 = vmatpush1.bf16.xpose.msra.mxu0 0
        %2272 = vmatprep.subr.bf16.mxu0 0
        %2273 = vmatpush1.bf16.xpose.msra.mxu0 0
        %2274 = vmatprep.subr.bf16.mxu0 0
        %2275 = vmatpush1.bf16.xpose.msra.mxu0 0
        %2276 = vmatprep.subr.bf16.mxu0 0
        %2277 = vmatpush1.bf16.xpose.msra.mxu0 0
        %2278 = vmatprep.subr.bf16.mxu0 0
        %2279 = vmatpush1.bf16.xpose.msra.mxu0 0
        %2280 = vmatprep.subr.bf16.mxu0 0
        %2281 = vmatpush1.bf16.xpose.msra.mxu0 0
        %2282 = vmatprep.subr.bf16.mxu0 0
        %2283 = vmatpush1.bf16.xpose.msra.mxu0 0
        %2284 = vmatprep.mubr.bf16.mxu0 0
        %2285 = vmatmul.mubr.bf16.gmra.mrb[0].mxu0 %v2247
        %v2286 = vpop.f32.mrb[0].mxu0
        %v2287 = vadd.f32 0.0, %v2286
        %v2288 = vpop.f32.mrb[0].mxu0
        %v2289 = vpop.f32.mrb[0].mxu0
        %v2290 = vpop.f32.mrb[0].mxu0
        %2291 = vdwg.mxu0
        %2293 = vrot.lane.b32.xlu0 %v2009, 96
        %v2294 = vpop.permute.xlu0 %2293
        %2296 = vrot.lane.b32.xlu0 %v2011, 96
        %v2297 = vpop.permute.xlu0 %2296
        %v2299 = vsel %vm2014, %v2294, 0
        %v2302 = vsel %vm2014, %v2297, 0
        %2304 = vmatprep.subr.bf16.mxu0 0
        %2305 = vmatpush1.bf16.xpose.msra.mxu0 %v2302
        %2306 = vmatprep.subr.bf16.mxu0 0
        %2307 = vmatpush1.bf16.xpose.msra.mxu0 0
        %2308 = vmatprep.subr.bf16.mxu0 0
        %2309 = vmatpush1.bf16.xpose.msra.mxu0 0
        %2310 = vmatprep.subr.bf16.mxu0 0
        %2311 = vmatpush1.bf16.xpose.msra.mxu0 0
        %2312 = vmatprep.subr.bf16.mxu0 0
        %2313 = vmatpush1.bf16.xpose.msra.mxu0 0
        %2314 = vmatprep.subr.bf16.mxu0 0
        %2315 = vmatpush1.bf16.xpose.msra.mxu0 0
        %2316 = vmatprep.subr.bf16.mxu0 0
        %2317 = vmatpush1.bf16.xpose.msra.mxu0 0
        %2318 = vmatprep.subr.bf16.mxu0 0
        %2319 = vmatpush1.bf16.xpose.msra.mxu0 0
        %2320 = vmatprep.subr.bf16.mxu0 0
        %2321 = vmatpush1.bf16.xpose.msra.mxu0 0
        %2322 = vmatprep.subr.bf16.mxu0 0
        %2323 = vmatpush1.bf16.xpose.msra.mxu0 0
        %2324 = vmatprep.subr.bf16.mxu0 0
        %2325 = vmatpush1.bf16.xpose.msra.mxu0 0
        %2326 = vmatprep.subr.bf16.mxu0 0
        %2327 = vmatpush1.bf16.xpose.msra.mxu0 0
        %2328 = vmatprep.subr.bf16.mxu0 0
        %2329 = vmatpush1.bf16.xpose.msra.mxu0 0
        %2330 = vmatprep.subr.bf16.mxu0 0
        %2331 = vmatpush1.bf16.xpose.msra.mxu0 0
        %2332 = vmatprep.subr.bf16.mxu0 0
        %2333 = vmatpush1.bf16.xpose.msra.mxu0 0
        %2334 = vmatprep.subr.bf16.mxu0 0
        %2335 = vmatpush1.bf16.xpose.msra.mxu0 0
        %2336 = vmatprep.mubr.bf16.mxu0 0
        %2337 = vmatmul.mubr.bf16.gmra.mrb[0].mxu0 %v2299
        %v2338 = vpop.f32.mrb[0].mxu0
        %v2339 = vadd.f32 0.0, %v2338
        %v2340 = vpop.f32.mrb[0].mxu0
        %v2341 = vpop.f32.mrb[0].mxu0
        %v2342 = vpop.f32.mrb[0].mxu0
        %2343 = vdwg.mxu0
        %v2344 = vmul.f32 %v2287, 0.17677669
        %v2345 = vmul.f32 %v2339, 0.17677669
        %v2346 = vadd.f32 %v2344, %v2113
        %v2347 = vadd.f32 %v2345, %v2113
        %v2348 = vsel %vm2117, %v2346, -inf
        %2349 = vmax.xlane.f32.xlu0 %v2348
        %v2350 = vpop.xlane.xlu0 %2349
        %v2351 = vsel %vm2117, %v2347, -inf
        %2352 = vmax.xlane.f32.xlu0 %v2351
        %v2353 = vpop.xlane.xlu0 %2352
        %v2354 = vsub.f32 %v2346, %v2350
        %v2355 = vsub.f32 %v2347, %v2353
        %v2356 = vmul.f32 %v2354, 1.442695
        %v2357 = vpow.pop %v2356
        %v2358 = vmul.f32 %v2355, 1.442695
        %v2359 = vpow.pop %v2358
        %v2360 = vsel %vm2117, %v2357, 0.0
        %2361 = vadd.xlane.f32.xlu0 %v2360
        %v2362 = vpop.xlane.xlu0 %2361
        %v2363 = vsel %vm2117, %v2359, 0.0
        %2364 = vadd.xlane.f32.xlu0 %v2363
        %v2365 = vpop.xlane.xlu0 %2364
        %v2366 = vrcp.pop %v2362
        %v2367 = vrcp.pop %v2365
        %v2368 = vmul.f32 %v2357, %v2366
        %v2369 = vmul.f32 %v2359, %v2367
        %v2370 = vpack.c.bf16 %v2368, %v2368
        %v2371 = vpack.c.bf16 %v2369, %v2369
        %2373 = vrot.lane.b32.xlu0 %v2012, 96
        %v2374 = vpop.permute.xlu0 %2373
        %v2376 = vsel %vm2117, %v2370, 0
        %v2379 = vsel %vm2145, %v2374, 0
        %2381 = vmatprep.subr.bf16.mxu0 0
        %2382 = vmatpush1.bf16.msra.mxu0 %v2379
        %2383 = vmatprep.subr.bf16.mxu0 0
        %2384 = vmatpush1.bf16.msra.mxu0 0
        %2385 = vmatprep.subr.bf16.mxu0 0
        %2386 = vmatpush1.bf16.msra.mxu0 0
        %2387 = vmatprep.subr.bf16.mxu0 0
        %2388 = vmatpush1.bf16.msra.mxu0 0
        %2389 = vmatprep.subr.bf16.mxu0 0
        %2390 = vmatpush1.bf16.msra.mxu0 0
        %2391 = vmatprep.subr.bf16.mxu0 0
        %2392 = vmatpush1.bf16.msra.mxu0 0
        %2393 = vmatprep.subr.bf16.mxu0 0
        %2394 = vmatpush1.bf16.msra.mxu0 0
        %2395 = vmatprep.subr.bf16.mxu0 0
        %2396 = vmatpush1.bf16.msra.mxu0 0
        %2397 = vmatprep.subr.bf16.mxu0 0
        %2398 = vmatpush1.bf16.msra.mxu0 0
        %2399 = vmatprep.subr.bf16.mxu0 0
        %2400 = vmatpush1.bf16.msra.mxu0 0
        %2401 = vmatprep.subr.bf16.mxu0 0
        %2402 = vmatpush1.bf16.msra.mxu0 0
        %2403 = vmatprep.subr.bf16.mxu0 0
        %2404 = vmatpush1.bf16.msra.mxu0 0
        %2405 = vmatprep.subr.bf16.mxu0 0
        %2406 = vmatpush1.bf16.msra.mxu0 0
        %2407 = vmatprep.subr.bf16.mxu0 0
        %2408 = vmatpush1.bf16.msra.mxu0 0
        %2409 = vmatprep.subr.bf16.mxu0 0
        %2410 = vmatpush1.bf16.msra.mxu0 0
        %2411 = vmatprep.subr.bf16.mxu0 0
        %2412 = vmatpush1.bf16.msra.mxu0 0
        %2413 = vmatprep.mubr.bf16.mxu0 0
        %2414 = vmatmul.mubr.bf16.gmra.mrb[0].mxu0 %v2376
        %v2415 = vpop.f32.mrb[0].mxu0
        %v2416 = vadd.f32 0.0, %v2415
        %v2417 = vpop.f32.mrb[0].mxu0
        %v2418 = vpop.f32.mrb[0].mxu0
        %v2419 = vpop.f32.mrb[0].mxu0
        %2420 = vdwg.mxu0
        %2422 = vrot.lane.b32.xlu0 %v2013, 96
        %v2423 = vpop.permute.xlu0 %2422
        %v2425 = vsel %vm2117, %v2371, 0
        %v2428 = vsel %vm2145, %v2423, 0
        %2430 = vmatprep.subr.bf16.mxu0 0
        %2431 = vmatpush1.bf16.msra.mxu0 %v2428
        %2432 = vmatprep.subr.bf16.mxu0 0
        %2433 = vmatpush1.bf16.msra.mxu0 0
        %2434 = vmatprep.subr.bf16.mxu0 0
        %2435 = vmatpush1.bf16.msra.mxu0 0
        %2436 = vmatprep.subr.bf16.mxu0 0
        %2437 = vmatpush1.bf16.msra.mxu0 0
        %2438 = vmatprep.subr.bf16.mxu0 0
        %2439 = vmatpush1.bf16.msra.mxu0 0
        %2440 = vmatprep.subr.bf16.mxu0 0
        %2441 = vmatpush1.bf16.msra.mxu0 0
        %2442 = vmatprep.subr.bf16.mxu0 0
        %2443 = vmatpush1.bf16.msra.mxu0 0
        %2444 = vmatprep.subr.bf16.mxu0 0
        %2445 = vmatpush1.bf16.msra.mxu0 0
        %2446 = vmatprep.subr.bf16.mxu0 0
        %2447 = vmatpush1.bf16.msra.mxu0 0
        %2448 = vmatprep.subr.bf16.mxu0 0
        %2449 = vmatpush1.bf16.msra.mxu0 0
        %2450 = vmatprep.subr.bf16.mxu0 0
        %2451 = vmatpush1.bf16.msra.mxu0 0
        %2452 = vmatprep.subr.bf16.mxu0 0
        %2453 = vmatpush1.bf16.msra.mxu0 0
        %2454 = vmatprep.subr.bf16.mxu0 0
        %2455 = vmatpush1.bf16.msra.mxu0 0
        %2456 = vmatprep.subr.bf16.mxu0 0
        %2457 = vmatpush1.bf16.msra.mxu0 0
        %2458 = vmatprep.subr.bf16.mxu0 0
        %2459 = vmatpush1.bf16.msra.mxu0 0
        %2460 = vmatprep.subr.bf16.mxu0 0
        %2461 = vmatpush1.bf16.msra.mxu0 0
        %2462 = vmatprep.mubr.bf16.mxu0 0
        %2463 = vmatmul.mubr.bf16.gmra.mrb[0].mxu0 %v2425
        %v2464 = vpop.f32.mrb[0].mxu0
        %v2465 = vadd.f32 0.0, %v2464
        %v2466 = vpop.f32.mrb[0].mxu0
        %v2467 = vpop.f32.mrb[0].mxu0
        %v2468 = vpop.f32.mrb[0].mxu0
        %2469 = vdwg.mxu0
        %v2470 = vpack.c.bf16 %v2416, %v2416
        %v2471 = vpack.c.bf16 %v2465, %v2465
        %v2474 = vunpack.c.l.b16 %v2470
        %v2475 = vunpack.c.l.b16 %v2471
        %v2476 = vpack.c.b16 %v2474, %v2474
        %v2477 = vpack.c.b16 %v2475, %v2475
        %2478 = vrot.lane.b32.xlu0 %v2476, 32
        %v2479 = vpop.permute.xlu0 %2478
        %2480 = vrot.lane.b32.xlu0 %v2477, 32
        %v2481 = vpop.permute.xlu0 %2480
        %vm2484 = vcmask 519424
        %2485 = vst.msk [vmem:[#allocation3] sm:$0xf] %vm2484, %v2479
        %2486 = vst.msk [vmem:[#allocation3 + $0x4] sm:$0xf] %vm2484, %v2481
        %2487 = vrot.lane.b32.xlu0 %v2008, 64
        %v2488 = vpop.permute.xlu0 %2487
        %2489 = vrot.lane.b32.xlu0 %v2010, 64
        %v2490 = vpop.permute.xlu0 %2489
        %v2492 = vsel %vm2014, %v2488, 0
        %v2495 = vsel %vm2014, %v2490, 0
        %2497 = vmatprep.subr.bf16.mxu0 0
        %2498 = vmatpush1.bf16.xpose.msra.mxu0 %v2495
        %2499 = vmatprep.subr.bf16.mxu0 0
        %2500 = vmatpush1.bf16.xpose.msra.mxu0 0
        %2501 = vmatprep.subr.bf16.mxu0 0
        %2502 = vmatpush1.bf16.xpose.msra.mxu0 0
        %2503 = vmatprep.subr.bf16.mxu0 0
        %2504 = vmatpush1.bf16.xpose.msra.mxu0 0
        %2505 = vmatprep.subr.bf16.mxu0 0
        %2506 = vmatpush1.bf16.xpose.msra.mxu0 0
        %2507 = vmatprep.subr.bf16.mxu0 0
        %2508 = vmatpush1.bf16.xpose.msra.mxu0 0
        %2509 = vmatprep.subr.bf16.mxu0 0
        %2510 = vmatpush1.bf16.xpose.msra.mxu0 0
        %2511 = vmatprep.subr.bf16.mxu0 0
        %2512 = vmatpush1.bf16.xpose.msra.mxu0 0
        %2513 = vmatprep.subr.bf16.mxu0 0
        %2514 = vmatpush1.bf16.xpose.msra.mxu0 0
        %2515 = vmatprep.subr.bf16.mxu0 0
        %2516 = vmatpush1.bf16.xpose.msra.mxu0 0
        %2517 = vmatprep.subr.bf16.mxu0 0
        %2518 = vmatpush1.bf16.xpose.msra.mxu0 0
        %2519 = vmatprep.subr.bf16.mxu0 0
        %2520 = vmatpush1.bf16.xpose.msra.mxu0 0
        %2521 = vmatprep.subr.bf16.mxu0 0
        %2522 = vmatpush1.bf16.xpose.msra.mxu0 0
        %2523 = vmatprep.subr.bf16.mxu0 0
        %2524 = vmatpush1.bf16.xpose.msra.mxu0 0
        %2525 = vmatprep.subr.bf16.mxu0 0
        %2526 = vmatpush1.bf16.xpose.msra.mxu0 0
        %2527 = vmatprep.subr.bf16.mxu0 0
        %2528 = vmatpush1.bf16.xpose.msra.mxu0 0
        %2529 = vmatprep.mubr.bf16.mxu0 0
        %2530 = vmatmul.mubr.bf16.gmra.mrb[0].mxu0 %v2492
        %v2531 = vpop.f32.mrb[0].mxu0
        %v2532 = vadd.f32 0.0, %v2531
        %v2533 = vpop.f32.mrb[0].mxu0
        %v2534 = vpop.f32.mrb[0].mxu0
        %v2535 = vpop.f32.mrb[0].mxu0
        %2536 = vdwg.mxu0
        %2537 = vrot.lane.b32.xlu0 %v2009, 64
        %v2538 = vpop.permute.xlu0 %2537
        %2539 = vrot.lane.b32.xlu0 %v2011, 64
        %v2540 = vpop.permute.xlu0 %2539
        %v2542 = vsel %vm2014, %v2538, 0
        %v2545 = vsel %vm2014, %v2540, 0
        %2547 = vmatprep.subr.bf16.mxu0 0
        %2548 = vmatpush1.bf16.xpose.msra.mxu0 %v2545
        %2549 = vmatprep.subr.bf16.mxu0 0
        %2550 = vmatpush1.bf16.xpose.msra.mxu0 0
        %2551 = vmatprep.subr.bf16.mxu0 0
        %2552 = vmatpush1.bf16.xpose.msra.mxu0 0
        %2553 = vmatprep.subr.bf16.mxu0 0
        %2554 = vmatpush1.bf16.xpose.msra.mxu0 0
        %2555 = vmatprep.subr.bf16.mxu0 0
        %2556 = vmatpush1.bf16.xpose.msra.mxu0 0
        %2557 = vmatprep.subr.bf16.mxu0 0
        %2558 = vmatpush1.bf16.xpose.msra.mxu0 0
        %2559 = vmatprep.subr.bf16.mxu0 0
        %2560 = vmatpush1.bf16.xpose.msra.mxu0 0
        %2561 = vmatprep.subr.bf16.mxu0 0
        %2562 = vmatpush1.bf16.xpose.msra.mxu0 0
        %2563 = vmatprep.subr.bf16.mxu0 0
        %2564 = vmatpush1.bf16.xpose.msra.mxu0 0
        %2565 = vmatprep.subr.bf16.mxu0 0
        %2566 = vmatpush1.bf16.xpose.msra.mxu0 0
        %2567 = vmatprep.subr.bf16.mxu0 0
        %2568 = vmatpush1.bf16.xpose.msra.mxu0 0
        %2569 = vmatprep.subr.bf16.mxu0 0
        %2570 = vmatpush1.bf16.xpose.msra.mxu0 0
        %2571 = vmatprep.subr.bf16.mxu0 0
        %2572 = vmatpush1.bf16.xpose.msra.mxu0 0
        %2573 = vmatprep.subr.bf16.mxu0 0
        %2574 = vmatpush1.bf16.xpose.msra.mxu0 0
        %2575 = vmatprep.subr.bf16.mxu0 0
        %2576 = vmatpush1.bf16.xpose.msra.mxu0 0
        %2577 = vmatprep.subr.bf16.mxu0 0
        %2578 = vmatpush1.bf16.xpose.msra.mxu0 0
        %2579 = vmatprep.mubr.bf16.mxu0 0
        %2580 = vmatmul.mubr.bf16.gmra.mrb[0].mxu0 %v2542
        %v2581 = vpop.f32.mrb[0].mxu0
        %v2582 = vadd.f32 0.0, %v2581
        %v2583 = vpop.f32.mrb[0].mxu0
        %v2584 = vpop.f32.mrb[0].mxu0
        %v2585 = vpop.f32.mrb[0].mxu0
        %2586 = vdwg.mxu0
        %v2587 = vmul.f32 %v2532, 0.17677669
        %v2588 = vmul.f32 %v2582, 0.17677669
        %v2589 = vadd.f32 %v2587, %v2113
        %v2590 = vadd.f32 %v2588, %v2113
        %v2591 = vsel %vm2117, %v2589, -inf
        %2592 = vmax.xlane.f32.xlu0 %v2591
        %v2593 = vpop.xlane.xlu0 %2592
        %v2594 = vsel %vm2117, %v2590, -inf
        %2595 = vmax.xlane.f32.xlu0 %v2594
        %v2596 = vpop.xlane.xlu0 %2595
        %v2597 = vsub.f32 %v2589, %v2593
        %v2598 = vsub.f32 %v2590, %v2596
        %v2599 = vmul.f32 %v2597, 1.442695
        %v2600 = vpow.pop %v2599
        %v2601 = vmul.f32 %v2598, 1.442695
        %v2602 = vpow.pop %v2601
        %v2603 = vsel %vm2117, %v2600, 0.0
        %2604 = vadd.xlane.f32.xlu0 %v2603
        %v2605 = vpop.xlane.xlu0 %2604
        %v2606 = vsel %vm2117, %v2602, 0.0
        %2607 = vadd.xlane.f32.xlu0 %v2606
        %v2608 = vpop.xlane.xlu0 %2607
        %v2609 = vrcp.pop %v2605
        %v2610 = vrcp.pop %v2608
        %v2611 = vmul.f32 %v2600, %v2609
        %v2612 = vmul.f32 %v2602, %v2610
        %v2613 = vpack.c.bf16 %v2611, %v2611
        %v2614 = vpack.c.bf16 %v2612, %v2612
        %2615 = vrot.lane.b32.xlu0 %v2012, 64
        %v2616 = vpop.permute.xlu0 %2615
        %v2618 = vsel %vm2117, %v2613, 0
        %v2621 = vsel %vm2145, %v2616, 0
        %2623 = vmatprep.subr.bf16.mxu0 0
        %2624 = vmatpush1.bf16.msra.mxu0 %v2621
        %2625 = vmatprep.subr.bf16.mxu0 0
        %2626 = vmatpush1.bf16.msra.mxu0 0
        %2627 = vmatprep.subr.bf16.mxu0 0
        %2628 = vmatpush1.bf16.msra.mxu0 0
        %2629 = vmatprep.subr.bf16.mxu0 0
        %2630 = vmatpush1.bf16.msra.mxu0 0
        %2631 = vmatprep.subr.bf16.mxu0 0
        %2632 = vmatpush1.bf16.msra.mxu0 0
        %2633 = vmatprep.subr.bf16.mxu0 0
        %2634 = vmatpush1.bf16.msra.mxu0 0
        %2635 = vmatprep.subr.bf16.mxu0 0
        %2636 = vmatpush1.bf16.msra.mxu0 0
        %2637 = vmatprep.subr.bf16.mxu0 0
        %2638 = vmatpush1.bf16.msra.mxu0 0
        %2639 = vmatprep.subr.bf16.mxu0 0
        %2640 = vmatpush1.bf16.msra.mxu0 0
        %2641 = vmatprep.subr.bf16.mxu0 0
        %2642 = vmatpush1.bf16.msra.mxu0 0
        %2643 = vmatprep.subr.bf16.mxu0 0
        %2644 = vmatpush1.bf16.msra.mxu0 0
        %2645 = vmatprep.subr.bf16.mxu0 0
        %2646 = vmatpush1.bf16.msra.mxu0 0
        %2647 = vmatprep.subr.bf16.mxu0 0
        %2648 = vmatpush1.bf16.msra.mxu0 0
        %2649 = vmatprep.subr.bf16.mxu0 0
        %2650 = vmatpush1.bf16.msra.mxu0 0
        %2651 = vmatprep.subr.bf16.mxu0 0
        %2652 = vmatpush1.bf16.msra.mxu0 0
        %2653 = vmatprep.subr.bf16.mxu0 0
        %2654 = vmatpush1.bf16.msra.mxu0 0
        %2655 = vmatprep.mubr.bf16.mxu0 0
        %2656 = vmatmul.mubr.bf16.gmra.mrb[0].mxu0 %v2618
        %v2657 = vpop.f32.mrb[0].mxu0
        %v2658 = vadd.f32 0.0, %v2657
        %v2659 = vpop.f32.mrb[0].mxu0
        %v2660 = vpop.f32.mrb[0].mxu0
        %v2661 = vpop.f32.mrb[0].mxu0
        %2662 = vdwg.mxu0
        %2663 = vrot.lane.b32.xlu0 %v2013, 64
        %v2664 = vpop.permute.xlu0 %2663
        %v2666 = vsel %vm2117, %v2614, 0
        %v2669 = vsel %vm2145, %v2664, 0
        %2671 = vmatprep.subr.bf16.mxu0 0
        %2672 = vmatpush1.bf16.msra.mxu0 %v2669
        %2673 = vmatprep.subr.bf16.mxu0 0
        %2674 = vmatpush1.bf16.msra.mxu0 0
        %2675 = vmatprep.subr.bf16.mxu0 0
        %2676 = vmatpush1.bf16.msra.mxu0 0
        %2677 = vmatprep.subr.bf16.mxu0 0
        %2678 = vmatpush1.bf16.msra.mxu0 0
        %2679 = vmatprep.subr.bf16.mxu0 0
        %2680 = vmatpush1.bf16.msra.mxu0 0
        %2681 = vmatprep.subr.bf16.mxu0 0
        %2682 = vmatpush1.bf16.msra.mxu0 0
        %2683 = vmatprep.subr.bf16.mxu0 0
        %2684 = vmatpush1.bf16.msra.mxu0 0
        %2685 = vmatprep.subr.bf16.mxu0 0
        %2686 = vmatpush1.bf16.msra.mxu0 0
        %2687 = vmatprep.subr.bf16.mxu0 0
        %2688 = vmatpush1.bf16.msra.mxu0 0
        %2689 = vmatprep.subr.bf16.mxu0 0
        %2690 = vmatpush1.bf16.msra.mxu0 0
        %2691 = vmatprep.subr.bf16.mxu0 0
        %2692 = vmatpush1.bf16.msra.mxu0 0
        %2693 = vmatprep.subr.bf16.mxu0 0
        %2694 = vmatpush1.bf16.msra.mxu0 0
        %2695 = vmatprep.subr.bf16.mxu0 0
        %2696 = vmatpush1.bf16.msra.mxu0 0
        %2697 = vmatprep.subr.bf16.mxu0 0
        %2698 = vmatpush1.bf16.msra.mxu0 0
        %2699 = vmatprep.subr.bf16.mxu0 0
        %2700 = vmatpush1.bf16.msra.mxu0 0
        %2701 = vmatprep.subr.bf16.mxu0 0
        %2702 = vmatpush1.bf16.msra.mxu0 0
        %2703 = vmatprep.mubr.bf16.mxu0 0
        %2704 = vmatmul.mubr.bf16.gmra.mrb[0].mxu0 %v2666
        %v2705 = vpop.f32.mrb[0].mxu0
        %v2706 = vadd.f32 0.0, %v2705
        %v2707 = vpop.f32.mrb[0].mxu0
        %v2708 = vpop.f32.mrb[0].mxu0
        %v2709 = vpop.f32.mrb[0].mxu0
        %2710 = vdwg.mxu0
        %v2711 = vpack.c.bf16 %v2658, %v2658
        %v2712 = vpack.c.bf16 %v2706, %v2706
        %v2715 = vunpack.c.l.b16 %v2711
        %v2716 = vunpack.c.l.b16 %v2712
        %v2717 = vpack.c.b16 %v2715, %v2715
        %v2718 = vpack.c.b16 %v2716, %v2716
        %2719 = vrot.lane.b32.xlu0 %v2717, 64
        %v2720 = vpop.permute.xlu0 %2719
        %2721 = vrot.lane.b32.xlu0 %v2718, 64
        %v2722 = vpop.permute.xlu0 %2721
        %vm2725 = vcmask 781824
        %2726 = vst.msk [vmem:[#allocation3] sm:$0xf] %vm2725, %v2720
        %2727 = vst.msk [vmem:[#allocation3 + $0x4] sm:$0xf] %vm2725, %v2722
        %2728 = vrot.lane.b32.xlu0 %v2008, 32
        %v2729 = vpop.permute.xlu0 %2728
        %2730 = vrot.lane.b32.xlu0 %v2010, 32
        %v2731 = vpop.permute.xlu0 %2730
        %v2733 = vsel %vm2014, %v2729, 0
        %v2736 = vsel %vm2014, %v2731, 0
        %2738 = vmatprep.subr.bf16.mxu0 0
        %2739 = vmatpush1.bf16.xpose.msra.mxu0 %v2736
        %2740 = vmatprep.subr.bf16.mxu0 0
        %2741 = vmatpush1.bf16.xpose.msra.mxu0 0
        %2742 = vmatprep.subr.bf16.mxu0 0
        %2743 = vmatpush1.bf16.xpose.msra.mxu0 0
        %2744 = vmatprep.subr.bf16.mxu0 0
        %2745 = vmatpush1.bf16.xpose.msra.mxu0 0
        %2746 = vmatprep.subr.bf16.mxu0 0
        %2747 = vmatpush1.bf16.xpose.msra.mxu0 0
        %2748 = vmatprep.subr.bf16.mxu0 0
        %2749 = vmatpush1.bf16.xpose.msra.mxu0 0
        %2750 = vmatprep.subr.bf16.mxu0 0
        %2751 = vmatpush1.bf16.xpose.msra.mxu0 0
        %2752 = vmatprep.subr.bf16.mxu0 0
        %2753 = vmatpush1.bf16.xpose.msra.mxu0 0
        %2754 = vmatprep.subr.bf16.mxu0 0
        %2755 = vmatpush1.bf16.xpose.msra.mxu0 0
        %2756 = vmatprep.subr.bf16.mxu0 0
        %2757 = vmatpush1.bf16.xpose.msra.mxu0 0
        %2758 = vmatprep.subr.bf16.mxu0 0
        %2759 = vmatpush1.bf16.xpose.msra.mxu0 0
        %2760 = vmatprep.subr.bf16.mxu0 0
        %2761 = vmatpush1.bf16.xpose.msra.mxu0 0
        %2762 = vmatprep.subr.bf16.mxu0 0
        %2763 = vmatpush1.bf16.xpose.msra.mxu0 0
        %2764 = vmatprep.subr.bf16.mxu0 0
        %2765 = vmatpush1.bf16.xpose.msra.mxu0 0
        %2766 = vmatprep.subr.bf16.mxu0 0
        %2767 = vmatpush1.bf16.xpose.msra.mxu0 0
        %2768 = vmatprep.subr.bf16.mxu0 0
        %2769 = vmatpush1.bf16.xpose.msra.mxu0 0
        %2770 = vmatprep.mubr.bf16.mxu0 0
        %2771 = vmatmul.mubr.bf16.gmra.mrb[0].mxu0 %v2733
        %v2772 = vpop.f32.mrb[0].mxu0
        %v2773 = vadd.f32 0.0, %v2772
        %v2774 = vpop.f32.mrb[0].mxu0
        %v2775 = vpop.f32.mrb[0].mxu0
        %v2776 = vpop.f32.mrb[0].mxu0
        %2777 = vdwg.mxu0
        %2778 = vrot.lane.b32.xlu0 %v2009, 32
        %v2779 = vpop.permute.xlu0 %2778
        %2780 = vrot.lane.b32.xlu0 %v2011, 32
        %v2781 = vpop.permute.xlu0 %2780
        %v2783 = vsel %vm2014, %v2779, 0
        %v2786 = vsel %vm2014, %v2781, 0
        %2788 = vmatprep.subr.bf16.mxu0 0
        %2789 = vmatpush1.bf16.xpose.msra.mxu0 %v2786
        %2790 = vmatprep.subr.bf16.mxu0 0
        %2791 = vmatpush1.bf16.xpose.msra.mxu0 0
        %2792 = vmatprep.subr.bf16.mxu0 0
        %2793 = vmatpush1.bf16.xpose.msra.mxu0 0
        %2794 = vmatprep.subr.bf16.mxu0 0
        %2795 = vmatpush1.bf16.xpose.msra.mxu0 0
        %2796 = vmatprep.subr.bf16.mxu0 0
        %2797 = vmatpush1.bf16.xpose.msra.mxu0 0
        %2798 = vmatprep.subr.bf16.mxu0 0
        %2799 = vmatpush1.bf16.xpose.msra.mxu0 0
        %2800 = vmatprep.subr.bf16.mxu0 0
        %2801 = vmatpush1.bf16.xpose.msra.mxu0 0
        %2802 = vmatprep.subr.bf16.mxu0 0
        %2803 = vmatpush1.bf16.xpose.msra.mxu0 0
        %2804 = vmatprep.subr.bf16.mxu0 0
        %2805 = vmatpush1.bf16.xpose.msra.mxu0 0
        %2806 = vmatprep.subr.bf16.mxu0 0
        %2807 = vmatpush1.bf16.xpose.msra.mxu0 0
        %2808 = vmatprep.subr.bf16.mxu0 0
        %2809 = vmatpush1.bf16.xpose.msra.mxu0 0
        %2810 = vmatprep.subr.bf16.mxu0 0
        %2811 = vmatpush1.bf16.xpose.msra.mxu0 0
        %2812 = vmatprep.subr.bf16.mxu0 0
        %2813 = vmatpush1.bf16.xpose.msra.mxu0 0
        %2814 = vmatprep.subr.bf16.mxu0 0
        %2815 = vmatpush1.bf16.xpose.msra.mxu0 0
        %2816 = vmatprep.subr.bf16.mxu0 0
        %2817 = vmatpush1.bf16.xpose.msra.mxu0 0
        %2818 = vmatprep.subr.bf16.mxu0 0
        %2819 = vmatpush1.bf16.xpose.msra.mxu0 0
        %2820 = vmatprep.mubr.bf16.mxu0 0
        %2821 = vmatmul.mubr.bf16.gmra.mrb[0].mxu0 %v2783
        %v2822 = vpop.f32.mrb[0].mxu0
        %v2823 = vadd.f32 0.0, %v2822
        %v2824 = vpop.f32.mrb[0].mxu0
        %v2825 = vpop.f32.mrb[0].mxu0
        %v2826 = vpop.f32.mrb[0].mxu0
        %2827 = vdwg.mxu0
        %v2828 = vmul.f32 %v2773, 0.17677669
        %v2829 = vmul.f32 %v2823, 0.17677669
        %v2830 = vadd.f32 %v2828, %v2113
        %v2831 = vadd.f32 %v2829, %v2113
        %v2832 = vsel %vm2117, %v2830, -inf
        %2833 = vmax.xlane.f32.xlu0 %v2832
        %v2834 = vpop.xlane.xlu0 %2833
        %v2835 = vsel %vm2117, %v2831, -inf
        %2836 = vmax.xlane.f32.xlu0 %v2835
        %v2837 = vpop.xlane.xlu0 %2836
        %v2838 = vsub.f32 %v2830, %v2834
        %v2839 = vsub.f32 %v2831, %v2837
        %v2840 = vmul.f32 %v2838, 1.442695
        %v2841 = vpow.pop %v2840
        %v2842 = vmul.f32 %v2839, 1.442695
        %v2843 = vpow.pop %v2842
        %v2844 = vsel %vm2117, %v2841, 0.0
        %2845 = vadd.xlane.f32.xlu0 %v2844
        %v2846 = vpop.xlane.xlu0 %2845
        %v2847 = vsel %vm2117, %v2843, 0.0
        %2848 = vadd.xlane.f32.xlu0 %v2847
        %v2849 = vpop.xlane.xlu0 %2848
        %v2850 = vrcp.pop %v2846
        %v2851 = vrcp.pop %v2849
        %v2852 = vmul.f32 %v2841, %v2850
        %v2853 = vmul.f32 %v2843, %v2851
        %v2854 = vpack.c.bf16 %v2852, %v2852
        %v2855 = vpack.c.bf16 %v2853, %v2853
        %2856 = vrot.lane.b32.xlu0 %v2012, 32
        %v2857 = vpop.permute.xlu0 %2856
        %v2859 = vsel %vm2117, %v2854, 0
        %v2862 = vsel %vm2145, %v2857, 0
        %2864 = vmatprep.subr.bf16.mxu0 0
        %2865 = vmatpush1.bf16.msra.mxu0 %v2862
        %2866 = vmatprep.subr.bf16.mxu0 0
        %2867 = vmatpush1.bf16.msra.mxu0 0
        %2868 = vmatprep.subr.bf16.mxu0 0
        %2869 = vmatpush1.bf16.msra.mxu0 0
        %2870 = vmatprep.subr.bf16.mxu0 0
        %2871 = vmatpush1.bf16.msra.mxu0 0
        %2872 = vmatprep.subr.bf16.mxu0 0
        %2873 = vmatpush1.bf16.msra.mxu0 0
        %2874 = vmatprep.subr.bf16.mxu0 0
        %2875 = vmatpush1.bf16.msra.mxu0 0
        %2876 = vmatprep.subr.bf16.mxu0 0
        %2877 = vmatpush1.bf16.msra.mxu0 0
        %2878 = vmatprep.subr.bf16.mxu0 0
        %2879 = vmatpush1.bf16.msra.mxu0 0
        %2880 = vmatprep.subr.bf16.mxu0 0
        %2881 = vmatpush1.bf16.msra.mxu0 0
        %2882 = vmatprep.subr.bf16.mxu0 0
        %2883 = vmatpush1.bf16.msra.mxu0 0
        %2884 = vmatprep.subr.bf16.mxu0 0
        %2885 = vmatpush1.bf16.msra.mxu0 0
        %2886 = vmatprep.subr.bf16.mxu0 0
        %2887 = vmatpush1.bf16.msra.mxu0 0
        %2888 = vmatprep.subr.bf16.mxu0 0
        %2889 = vmatpush1.bf16.msra.mxu0 0
        %2890 = vmatprep.subr.bf16.mxu0 0
        %2891 = vmatpush1.bf16.msra.mxu0 0
        %2892 = vmatprep.subr.bf16.mxu0 0
        %2893 = vmatpush1.bf16.msra.mxu0 0
        %2894 = vmatprep.subr.bf16.mxu0 0
        %2895 = vmatpush1.bf16.msra.mxu0 0
        %2896 = vmatprep.mubr.bf16.mxu0 0
        %2897 = vmatmul.mubr.bf16.gmra.mrb[0].mxu0 %v2859
        %v2898 = vpop.f32.mrb[0].mxu0
        %v2899 = vadd.f32 0.0, %v2898
        %v2900 = vpop.f32.mrb[0].mxu0
        %v2901 = vpop.f32.mrb[0].mxu0
        %v2902 = vpop.f32.mrb[0].mxu0
        %2903 = vdwg.mxu0
        %2904 = vrot.lane.b32.xlu0 %v2013, 32
        %v2905 = vpop.permute.xlu0 %2904
        %v2907 = vsel %vm2117, %v2855, 0
        %v2910 = vsel %vm2145, %v2905, 0
        %2912 = vmatprep.subr.bf16.mxu0 0
        %2913 = vmatpush1.bf16.msra.mxu0 %v2910
        %2914 = vmatprep.subr.bf16.mxu0 0
        %2915 = vmatpush1.bf16.msra.mxu0 0
        %2916 = vmatprep.subr.bf16.mxu0 0
        %2917 = vmatpush1.bf16.msra.mxu0 0
        %2918 = vmatprep.subr.bf16.mxu0 0
        %2919 = vmatpush1.bf16.msra.mxu0 0
        %2920 = vmatprep.subr.bf16.mxu0 0
        %2921 = vmatpush1.bf16.msra.mxu0 0
        %2922 = vmatprep.subr.bf16.mxu0 0
        %2923 = vmatpush1.bf16.msra.mxu0 0
        %2924 = vmatprep.subr.bf16.mxu0 0
        %2925 = vmatpush1.bf16.msra.mxu0 0
        %2926 = vmatprep.subr.bf16.mxu0 0
        %2927 = vmatpush1.bf16.msra.mxu0 0
        %2928 = vmatprep.subr.bf16.mxu0 0
        %2929 = vmatpush1.bf16.msra.mxu0 0
        %2930 = vmatprep.subr.bf16.mxu0 0
        %2931 = vmatpush1.bf16.msra.mxu0 0
        %2932 = vmatprep.subr.bf16.mxu0 0
        %2933 = vmatpush1.bf16.msra.mxu0 0
        %2934 = vmatprep.subr.bf16.mxu0 0
        %2935 = vmatpush1.bf16.msra.mxu0 0
        %2936 = vmatprep.subr.bf16.mxu0 0
        %2937 = vmatpush1.bf16.msra.mxu0 0
        %2938 = vmatprep.subr.bf16.mxu0 0
        %2939 = vmatpush1.bf16.msra.mxu0 0
        %2940 = vmatprep.subr.bf16.mxu0 0
        %2941 = vmatpush1.bf16.msra.mxu0 0
        %2942 = vmatprep.subr.bf16.mxu0 0
        %2943 = vmatpush1.bf16.msra.mxu0 0
        %2944 = vmatprep.mubr.bf16.mxu0 0
        %2945 = vmatmul.mubr.bf16.gmra.mrb[0].mxu0 %v2907
        %v2946 = vpop.f32.mrb[0].mxu0
        %v2947 = vadd.f32 0.0, %v2946
        %v2948 = vpop.f32.mrb[0].mxu0
        %v2949 = vpop.f32.mrb[0].mxu0
        %v2950 = vpop.f32.mrb[0].mxu0
        %2951 = vdwg.mxu0
        %v2952 = vpack.c.bf16 %v2899, %v2899
        %v2953 = vpack.c.bf16 %v2947, %v2947
        %v2956 = vunpack.c.l.b16 %v2952
        %v2957 = vunpack.c.l.b16 %v2953
        %v2958 = vpack.c.b16 %v2956, %v2956
        %v2959 = vpack.c.b16 %v2957, %v2957
        %2960 = vrot.lane.b32.xlu0 %v2958, 96
        %v2961 = vpop.permute.xlu0 %2960
        %2962 = vrot.lane.b32.xlu0 %v2959, 96
        %v2963 = vpop.permute.xlu0 %2962
        %vm2966 = vcmask 1044224
        %2967 = vst.msk [vmem:[#allocation3] sm:$0xf] %vm2966, %v2961
        %2968 = vst.msk [vmem:[#allocation3 + $0x4] sm:$0xf] %vm2966, %v2963
        %v2969 = vld [vmem:[#allocation3] sm:$0xf]
        %v2970 = vld [vmem:[#allocation3 + $0x4] sm:$0xf]
        %v2971 = vld [vmem:[%s959] sm:$0xf]
        %v2972 = vld [vmem:[%s959 + $0x4] sm:$0xf]
        %v2973 = vld [vmem:[%s959 + $0x8] sm:$0xf]
        %v2974 = vld [vmem:[%s959 + $0xc] sm:$0xf]
        %v2975 = vld [vmem:[%s959 + $0x10] sm:$0xf]
        %v2976 = vld [vmem:[%s959 + $0x14] sm:$0xf]
        %v2977 = vld [vmem:[%s959 + $0x18] sm:$0xf]
        %v2978 = vld [vmem:[%s959 + $0x1c] sm:$0xf]
        %v2979 = vld [vmem:[%s959 + $0x20] sm:$0xf]
        %v2980 = vld [vmem:[%s959 + $0x24] sm:$0xf]
        %v2981 = vld [vmem:[%s959 + $0x28] sm:$0xf]
        %v2982 = vld [vmem:[%s959 + $0x2c] sm:$0xf]
        %v2983 = vld [vmem:[%s959 + $0x30] sm:$0xf]
        %v2984 = vld [vmem:[%s959 + $0x34] sm:$0xf]
        %v2985 = vld [vmem:[%s959 + $0x38] sm:$0xf]
        %v2986 = vld [vmem:[%s959 + $0x3c] sm:$0xf]
        %v2987 = vld [vmem:[%s967] sm:$0x1]
        %v2989 = vlaneseq
        %v2990 = vshrl.u32 %v2989, 7
        %v2991 = vsub.s32 0, %v2990
        %v2992 = vrot.slane %v2987, %v2991
        %v2996 = vunpack.c.l.b16 %v2969
        %v2997 = vunpack.c.l.b16 %v2970
        %v2998 = vpack.c.b16 %v2997, %v2996
        %v3016 = vunpack.c.l.b16 %v2971
        %v3017 = vunpack.c.l.b16 %v2972
        %v3018 = vunpack.c.l.b16 %v2973
        %v3019 = vunpack.c.l.b16 %v2974
        %v3020 = vunpack.c.l.b16 %v2975
        %v3021 = vunpack.c.l.b16 %v2976
        %v3022 = vunpack.c.l.b16 %v2977
        %v3023 = vunpack.c.l.b16 %v2978
        %v3024 = vunpack.c.l.b16 %v2979
        %v3025 = vunpack.c.l.b16 %v2980
        %v3026 = vunpack.c.l.b16 %v2981
        %v3027 = vunpack.c.l.b16 %v2982
        %v3028 = vunpack.c.l.b16 %v2983
        %v3029 = vunpack.c.l.b16 %v2984
        %v3030 = vunpack.c.l.b16 %v2985
        %v3031 = vunpack.c.l.b16 %v2986
        %v3032 = vpack.c.b16 %v3017, %v3016
        %v3033 = vpack.c.b16 %v3019, %v3018
        %v3034 = vpack.c.b16 %v3021, %v3020
        %v3035 = vpack.c.b16 %v3023, %v3022
        %v3036 = vpack.c.b16 %v3025, %v3024
        %v3037 = vpack.c.b16 %v3027, %v3026
        %v3038 = vpack.c.b16 %v3029, %v3028
        %v3039 = vpack.c.b16 %v3031, %v3030
        %3048 = vmatprep.subr.bf16.mxu0 0
        %3049 = vmatpush1.bf16.msra.mxu0 %v3032
        %3050 = vmatprep.subr.bf16.mxu0 0
        %3051 = vmatpush1.bf16.msra.mxu0 %v3033
        %3052 = vmatprep.subr.bf16.mxu0 0
        %3053 = vmatpush1.bf16.msra.mxu0 %v3034
        %3054 = vmatprep.subr.bf16.mxu0 0
        %3055 = vmatpush1.bf16.msra.mxu0 %v3035
        %3056 = vmatprep.subr.bf16.mxu0 0
        %3057 = vmatpush1.bf16.msra.mxu0 %v3036
        %3058 = vmatprep.subr.bf16.mxu0 0
        %3059 = vmatpush1.bf16.msra.mxu0 %v3037
        %3060 = vmatprep.subr.bf16.mxu0 0
        %3061 = vmatpush1.bf16.msra.mxu0 %v3038
        %3062 = vmatprep.subr.bf16.mxu0 0
        %3063 = vmatpush1.bf16.msra.mxu0 %v3039
        %3064 = vmatprep.subr.bf16.mxu0 0
        %3065 = vmatpush1.bf16.msra.mxu0 0
        %3066 = vmatprep.subr.bf16.mxu0 0
        %3067 = vmatpush1.bf16.msra.mxu0 0
        %3068 = vmatprep.subr.bf16.mxu0 0
        %3069 = vmatpush1.bf16.msra.mxu0 0
        %3070 = vmatprep.subr.bf16.mxu0 0
        %3071 = vmatpush1.bf16.msra.mxu0 0
        %3072 = vmatprep.subr.bf16.mxu0 0
        %3073 = vmatpush1.bf16.msra.mxu0 0
        %3074 = vmatprep.subr.bf16.mxu0 0
        %3075 = vmatpush1.bf16.msra.mxu0 0
        %3076 = vmatprep.subr.bf16.mxu0 0
        %3077 = vmatpush1.bf16.msra.mxu0 0
        %3078 = vmatprep.subr.bf16.mxu0 0
        %3079 = vmatpush1.bf16.msra.mxu0 0
        %3080 = vmatprep.mubr.bf16.mxu0 0
        %3081 = vmatmul.mubr.bf16.gmra.mrb[0].mxu0 %v2998
        %v3082 = vpop.f32.mrb[0].mxu0
        %v3083 = vadd.f32 %v2992, %v3082
        %v3084 = vpop.f32.mrb[0].mxu0
        %v3085 = vpop.f32.mrb[0].mxu0
        %v3086 = vadd.f32 %v2992, %v3085
        %v3087 = vpop.f32.mrb[0].mxu0
        %3088 = vdwg.mxu0
        %v3089 = vadd.f32 %v1702, %v3083
        %v3090 = vadd.f32 %v1703, %v3086
        %v3091 = vld [vmem:[%s975] sm:$0x1]
        %v3092 = vld [vmem:[%s983] sm:$0x1]
        %3093 = vadd.xlane.f32.xlu0 %v3089
        %v3094 = vpop.xlane.xlu0 %3093
        %3095 = vadd.xlane.f32.xlu0 %v3090
        %v3096 = vpop.xlane.xlu0 %3095
        %v3097 = vmul.f32 %v3094, %v1710
        %v3098 = vmul.f32 %v3096, %v1710
        %v3099 = vsub.f32 %v3089, %v3097
        %v3100 = vsub.f32 %v3090, %v3098
        %v3101 = vmul.f32 %v3099, %v3099
        %v3102 = vmul.f32 %v3100, %v3100
        %3103 = vadd.xlane.f32.xlu0 %v3101
        %v3104 = vpop.xlane.xlu0 %3103
        %3105 = vadd.xlane.f32.xlu0 %v3102
        %v3106 = vpop.xlane.xlu0 %3105
        %v3107 = vmul.f32 %v3104, %v1710
        %v3108 = vmul.f32 %v3106, %v1710
        %v3109 = vadd.f32 %v3107, 1e-05
        %v3110 = vadd.f32 %v3108, 1e-05
        %v3111 = vrsqrt.pop %v3109
        %v3112 = vrsqrt.pop %v3110
        %v3113 = vmul.f32 %v3099, %v3111
        %v3114 = vmul.f32 %v3100, %v3112
        %v3116 = vlaneseq
        %v3117 = vshrl.u32 %v3116, 7
        %v3118 = vsub.s32 0, %v3117
        %v3119 = vrot.slane %v3091, %v3118
        %v3121 = vmul.f32 %v3113, %v3119
        %v3122 = vmul.f32 %v3114, %v3119
        %v3124 = vlaneseq
        %v3125 = vshrl.u32 %v3124, 7
        %v3126 = vsub.s32 0, %v3125
        %v3127 = vrot.slane %v3092, %v3126
        %v3129 = vadd.f32 %v3121, %v3127
        %v3130 = vadd.f32 %v3122, %v3127
        %v3131 = vld [vmem:[%s992] sm:$0xff]
        %v3132 = vld [vmem:[%s992 + $0x8] sm:$0xff]
        %v3133 = vld [vmem:[%s992 + $0x10] sm:$0xff]
        %v3134 = vld [vmem:[%s992 + $0x18] sm:$0xff]
        %v3135 = vld [vmem:[%s992 + $0x20] sm:$0xff]
        %v3136 = vld [vmem:[%s992 + $0x28] sm:$0xff]
        %v3137 = vld [vmem:[%s992 + $0x30] sm:$0xff]
        %v3138 = vld [vmem:[%s992 + $0x38] sm:$0xff]
        %v3139 = vld [vmem:[%s992 + $0x40] sm:$0xff]
        %v3140 = vld [vmem:[%s992 + $0x48] sm:$0xff]
        %v3141 = vld [vmem:[%s992 + $0x50] sm:$0xff]
        %v3142 = vld [vmem:[%s992 + $0x58] sm:$0xff]
        %v3143 = vld [vmem:[%s992 + $0x60] sm:$0xff]
        %v3144 = vld [vmem:[%s992 + $0x68] sm:$0xff]
        %v3145 = vld [vmem:[%s992 + $0x70] sm:$0xff]
        %v3146 = vld [vmem:[%s992 + $0x78] sm:$0xff]
        %v3147 = vld [vmem:[%s992 + $0x80] sm:$0xff]
        %v3148 = vld [vmem:[%s992 + $0x88] sm:$0xff]
        %v3149 = vld [vmem:[%s992 + $0x90] sm:$0xff]
        %v3150 = vld [vmem:[%s992 + $0x98] sm:$0xff]
        %v3151 = vld [vmem:[%s992 + $0xa0] sm:$0xff]
        %v3152 = vld [vmem:[%s992 + $0xa8] sm:$0xff]
        %v3153 = vld [vmem:[%s992 + $0xb0] sm:$0xff]
        %v3154 = vld [vmem:[%s992 + $0xb8] sm:$0xff]
        %v3155 = vld [vmem:[%s992 + $0xc0] sm:$0xff]
        %v3156 = vld [vmem:[%s992 + $0xc8] sm:$0xff]
        %v3157 = vld [vmem:[%s992 + $0xd0] sm:$0xff]
        %v3158 = vld [vmem:[%s992 + $0xd8] sm:$0xff]
        %v3159 = vld [vmem:[%s992 + $0xe0] sm:$0xff]
        %v3160 = vld [vmem:[%s992 + $0xe8] sm:$0xff]
        %v3161 = vld [vmem:[%s992 + $0xf0] sm:$0xff]
        %v3162 = vld [vmem:[%s992 + $0xf8] sm:$0xff]
        %v3163 = vpack.c.bf16 %v3130, %v3129
        %v3164 = vld [vmem:[%s1125] sm:$0xf]
        %v3166 = vlaneseq
        %v3167 = vshrl.u32 %v3166, 7
        %v3168 = vsub.s32 0, %v3167
        %v3169 = vrot.slane %v3164, %v3168
        %v3170 = vlaneseq
        %v3171 = vshrl.u32 %v3170, 7
        %v3172 = vsub.s32 1, %v3171
        %v3173 = vrot.slane %v3164, %v3172
        %v3174 = vlaneseq
        %v3175 = vshrl.u32 %v3174, 7
        %v3176 = vsub.s32 2, %v3175
        %v3177 = vrot.slane %v3164, %v3176
        %v3178 = vlaneseq
        %v3179 = vshrl.u32 %v3178, 7
        %v3180 = vsub.s32 3, %v3179
        %v3181 = vrot.slane %v3164, %v3180
        %v3218 = vunpack.c.l.b16 %v3131
        %v3219 = vunpack.c.h.b16 %v3131
        %v3220 = vunpack.c.l.b16 %v3132
        %v3221 = vunpack.c.h.b16 %v3132
        %v3222 = vunpack.c.l.b16 %v3133
        %v3223 = vunpack.c.h.b16 %v3133
        %v3224 = vunpack.c.l.b16 %v3134
        %v3225 = vunpack.c.h.b16 %v3134
        %v3226 = vunpack.c.l.b16 %v3135
        %v3227 = vunpack.c.h.b16 %v3135
        %v3228 = vunpack.c.l.b16 %v3136
        %v3229 = vunpack.c.h.b16 %v3136
        %v3230 = vunpack.c.l.b16 %v3137
        %v3231 = vunpack.c.h.b16 %v3137
        %v3232 = vunpack.c.l.b16 %v3138
        %v3233 = vunpack.c.h.b16 %v3138
        %v3234 = vunpack.c.l.b16 %v3139
        %v3235 = vunpack.c.h.b16 %v3139
        %v3236 = vunpack.c.l.b16 %v3140
        %v3237 = vunpack.c.h.b16 %v3140
        %v3238 = vunpack.c.l.b16 %v3141
        %v3239 = vunpack.c.h.b16 %v3141
        %v3240 = vunpack.c.l.b16 %v3142
        %v3241 = vunpack.c.h.b16 %v3142
        %v3242 = vunpack.c.l.b16 %v3143
        %v3243 = vunpack.c.h.b16 %v3143
        %v3244 = vunpack.c.l.b16 %v3144
        %v3245 = vunpack.c.h.b16 %v3144
        %v3246 = vunpack.c.l.b16 %v3145
        %v3247 = vunpack.c.h.b16 %v3145
        %v3248 = vunpack.c.l.b16 %v3146
        %v3249 = vunpack.c.h.b16 %v3146
        %v3250 = vunpack.c.l.b16 %v3147
        %v3251 = vunpack.c.h.b16 %v3147
        %v3252 = vunpack.c.l.b16 %v3148
        %v3253 = vunpack.c.h.b16 %v3148
        %v3254 = vunpack.c.l.b16 %v3149
        %v3255 = vunpack.c.h.b16 %v3149
        %v3256 = vunpack.c.l.b16 %v3150
        %v3257 = vunpack.c.h.b16 %v3150
        %v3258 = vunpack.c.l.b16 %v3151
        %v3259 = vunpack.c.h.b16 %v3151
        %v3260 = vunpack.c.l.b16 %v3152
        %v3261 = vunpack.c.h.b16 %v3152
        %v3262 = vunpack.c.l.b16 %v3153
        %v3263 = vunpack.c.h.b16 %v3153
        %v3264 = vunpack.c.l.b16 %v3154
        %v3265 = vunpack.c.h.b16 %v3154
        %v3266 = vunpack.c.l.b16 %v3155
        %v3267 = vunpack.c.h.b16 %v3155
        %v3268 = vunpack.c.l.b16 %v3156
        %v3269 = vunpack.c.h.b16 %v3156
        %v3270 = vunpack.c.l.b16 %v3157
        %v3271 = vunpack.c.h.b16 %v3157
        %v3272 = vunpack.c.l.b16 %v3158
        %v3273 = vunpack.c.h.b16 %v3158
        %v3274 = vunpack.c.l.b16 %v3159
        %v3275 = vunpack.c.h.b16 %v3159
        %v3276 = vunpack.c.l.b16 %v3160
        %v3277 = vunpack.c.h.b16 %v3160
        %v3278 = vunpack.c.l.b16 %v3161
        %v3279 = vunpack.c.h.b16 %v3161
        %v3280 = vunpack.c.l.b16 %v3162
        %v3281 = vunpack.c.h.b16 %v3162
        %v3282 = vpack.c.b16 %v3222, %v3218
        %v3283 = vpack.c.b16 %v3223, %v3219
        %v3284 = vpack.c.b16 %v3224, %v3220
        %v3285 = vpack.c.b16 %v3225, %v3221
        %v3286 = vpack.c.b16 %v3230, %v3226
        %v3287 = vpack.c.b16 %v3231, %v3227
        %v3288 = vpack.c.b16 %v3232, %v3228
        %v3289 = vpack.c.b16 %v3233, %v3229
        %v3290 = vpack.c.b16 %v3238, %v3234
        %v3291 = vpack.c.b16 %v3239, %v3235
        %v3292 = vpack.c.b16 %v3240, %v3236
        %v3293 = vpack.c.b16 %v3241, %v3237
        %v3294 = vpack.c.b16 %v3246, %v3242
        %v3295 = vpack.c.b16 %v3247, %v3243
        %v3296 = vpack.c.b16 %v3248, %v3244
        %v3297 = vpack.c.b16 %v3249, %v3245
        %v3298 = vpack.c.b16 %v3254, %v3250
        %v3299 = vpack.c.b16 %v3255, %v3251
        %v3300 = vpack.c.b16 %v3256, %v3252
        %v3301 = vpack.c.b16 %v3257, %v3253
        %v3302 = vpack.c.b16 %v3262, %v3258
        %v3303 = vpack.c.b16 %v3263, %v3259
        %v3304 = vpack.c.b16 %v3264, %v3260
        %v3305 = vpack.c.b16 %v3265, %v3261
        %v3306 = vpack.c.b16 %v3270, %v3266
        %v3307 = vpack.c.b16 %v3271, %v3267
        %v3308 = vpack.c.b16 %v3272, %v3268
        %v3309 = vpack.c.b16 %v3273, %v3269
        %v3310 = vpack.c.b16 %v3278, %v3274
        %v3311 = vpack.c.b16 %v3279, %v3275
        %v3312 = vpack.c.b16 %v3280, %v3276
        %v3313 = vpack.c.b16 %v3281, %v3277
        %3346 = vmatprep.subr.bf16.mxu0 %v3283
        %3347 = vmatpush1.bf16.msra.mxu0 %v3282
        %3348 = vmatprep.subr.bf16.mxu0 %v3287
        %3349 = vmatpush1.bf16.msra.mxu0 %v3286
        %3350 = vmatprep.subr.bf16.mxu0 %v3291
        %3351 = vmatpush1.bf16.msra.mxu0 %v3290
        %3352 = vmatprep.subr.bf16.mxu0 %v3295
        %3353 = vmatpush1.bf16.msra.mxu0 %v3294
        %3354 = vmatprep.subr.bf16.mxu0 %v3299
        %3355 = vmatpush1.bf16.msra.mxu0 %v3298
        %3356 = vmatprep.subr.bf16.mxu0 %v3303
        %3357 = vmatpush1.bf16.msra.mxu0 %v3302
        %3358 = vmatprep.subr.bf16.mxu0 %v3307
        %3359 = vmatpush1.bf16.msra.mxu0 %v3306
        %3360 = vmatprep.subr.bf16.mxu0 %v3311
        %3361 = vmatpush1.bf16.msra.mxu0 %v3310
        %3362 = vmatprep.subr.bf16.mxu0 0
        %3363 = vmatpush1.bf16.msra.mxu0 0
        %3364 = vmatprep.subr.bf16.mxu0 0
        %3365 = vmatpush1.bf16.msra.mxu0 0
        %3366 = vmatprep.subr.bf16.mxu0 0
        %3367 = vmatpush1.bf16.msra.mxu0 0
        %3368 = vmatprep.subr.bf16.mxu0 0
        %3369 = vmatpush1.bf16.msra.mxu0 0
        %3370 = vmatprep.subr.bf16.mxu0 0
        %3371 = vmatpush1.bf16.msra.mxu0 0
        %3372 = vmatprep.subr.bf16.mxu0 0
        %3373 = vmatpush1.bf16.msra.mxu0 0
        %3374 = vmatprep.subr.bf16.mxu0 0
        %3375 = vmatpush1.bf16.msra.mxu0 0
        %3376 = vmatprep.subr.bf16.mxu0 0
        %3377 = vmatpush1.bf16.msra.mxu0 0
        %3378 = vmatprep.mubr.bf16.mxu0 0
        %3379 = vmatmul.mubr.bf16.gmra.mrb[0].mxu0 %v3163
        %v3380 = vpop.f32.mrb[0].mxu0
        %v3381 = vadd.f32 %v3169, %v3380
        %v3382 = vpop.f32.mrb[0].mxu0
        %v3383 = vadd.f32 %v3173, %v3382
        %v3384 = vpop.f32.mrb[0].mxu0
        %v3385 = vadd.f32 %v3169, %v3384
        %v3386 = vpop.f32.mrb[0].mxu0
        %v3387 = vadd.f32 %v3173, %v3386
        %3388 = vdwg.mxu0
        %3389 = vmatprep.subr.bf16.mxu0 %v3285
        %3390 = vmatpush1.bf16.msra.mxu0 %v3284
        %3391 = vmatprep.subr.bf16.mxu0 %v3289
        %3392 = vmatpush1.bf16.msra.mxu0 %v3288
        %3393 = vmatprep.subr.bf16.mxu0 %v3293
        %3394 = vmatpush1.bf16.msra.mxu0 %v3292
        %3395 = vmatprep.subr.bf16.mxu0 %v3297
        %3396 = vmatpush1.bf16.msra.mxu0 %v3296
        %3397 = vmatprep.subr.bf16.mxu0 %v3301
        %3398 = vmatpush1.bf16.msra.mxu0 %v3300
        %3399 = vmatprep.subr.bf16.mxu0 %v3305
        %3400 = vmatpush1.bf16.msra.mxu0 %v3304
        %3401 = vmatprep.subr.bf16.mxu0 %v3309
        %3402 = vmatpush1.bf16.msra.mxu0 %v3308
        %3403 = vmatprep.subr.bf16.mxu0 %v3313
        %3404 = vmatpush1.bf16.msra.mxu0 %v3312
        %3405 = vmatprep.subr.bf16.mxu0 0
        %3406 = vmatpush1.bf16.msra.mxu0 0
        %3407 = vmatprep.subr.bf16.mxu0 0
        %3408 = vmatpush1.bf16.msra.mxu0 0
        %3409 = vmatprep.subr.bf16.mxu0 0
        %3410 = vmatpush1.bf16.msra.mxu0 0
        %3411 = vmatprep.subr.bf16.mxu0 0
        %3412 = vmatpush1.bf16.msra.mxu0 0
        %3413 = vmatprep.subr.bf16.mxu0 0
        %3414 = vmatpush1.bf16.msra.mxu0 0
        %3415 = vmatprep.subr.bf16.mxu0 0
        %3416 = vmatpush1.bf16.msra.mxu0 0
        %3417 = vmatprep.subr.bf16.mxu0 0
        %3418 = vmatpush1.bf16.msra.mxu0 0
        %3419 = vmatprep.subr.bf16.mxu0 0
        %3420 = vmatpush1.bf16.msra.mxu0 0
        %3421 = vmatprep.mubr.bf16.mxu0 0
        %3422 = vmatmul.mubr.bf16.gmra.mrb[0].mxu0 %v3163
        %v3423 = vpop.f32.mrb[0].mxu0
        %v3424 = vadd.f32 %v3177, %v3423
        %v3425 = vpop.f32.mrb[0].mxu0
        %v3426 = vadd.f32 %v3181, %v3425
        %v3427 = vpop.f32.mrb[0].mxu0
        %v3428 = vadd.f32 %v3177, %v3427
        %v3429 = vpop.f32.mrb[0].mxu0
        %v3430 = vadd.f32 %v3181, %v3429
        %3431 = vdwg.mxu0
        %v3432 = vmul.f32 %v3381, 1.702
        %v3433 = vmul.f32 %v3383, 1.702
        %v3434 = vmul.f32 %v3424, 1.702
        %v3435 = vmul.f32 %v3426, 1.702
        %v3436 = vmul.f32 %v3385, 1.702
        %v3437 = vmul.f32 %v3387, 1.702
        %v3438 = vmul.f32 %v3428, 1.702
        %v3439 = vmul.f32 %v3430, 1.702
        %v3440 = vxor.u32 %v3432, 2147483648
        %v3441 = vxor.u32 %v3433, 2147483648
        %v3442 = vxor.u32 %v3434, 2147483648
        %v3443 = vxor.u32 %v3435, 2147483648
        %v3444 = vxor.u32 %v3436, 2147483648
        %v3445 = vxor.u32 %v3437, 2147483648
        %v3446 = vxor.u32 %v3438, 2147483648
        %v3447 = vxor.u32 %v3439, 2147483648
        %v3448 = vmul.f32 %v3440, 1.442695
        %v3449 = vpow.pop %v3448
        %v3450 = vmul.f32 %v3441, 1.442695
        %v3451 = vpow.pop %v3450
        %v3452 = vmul.f32 %v3442, 1.442695
        %v3453 = vpow.pop %v3452
        %v3454 = vmul.f32 %v3443, 1.442695
        %v3455 = vpow.pop %v3454
        %v3456 = vmul.f32 %v3444, 1.442695
        %v3457 = vpow.pop %v3456
        %v3458 = vmul.f32 %v3445, 1.442695
        %v3459 = vpow.pop %v3458
        %v3460 = vmul.f32 %v3446, 1.442695
        %v3461 = vpow.pop %v3460
        %v3462 = vmul.f32 %v3447, 1.442695
        %v3463 = vpow.pop %v3462
        %v3464 = vadd.f32 %v3449, 1.0
        %v3465 = vadd.f32 %v3451, 1.0
        %v3466 = vadd.f32 %v3453, 1.0
        %v3467 = vadd.f32 %v3455, 1.0
        %v3468 = vadd.f32 %v3457, 1.0
        %v3469 = vadd.f32 %v3459, 1.0
        %v3470 = vadd.f32 %v3461, 1.0
        %v3471 = vadd.f32 %v3463, 1.0
        %v3472 = vrcp.pop %v3464
        %v3473 = vmul.f32 1.0, %v3472
        %v3474 = vrcp.pop %v3465
        %v3475 = vmul.f32 1.0, %v3474
        %v3476 = vrcp.pop %v3466
        %v3477 = vmul.f32 1.0, %v3476
        %v3478 = vrcp.pop %v3467
        %v3479 = vmul.f32 1.0, %v3478
        %v3480 = vrcp.pop %v3468
        %v3481 = vmul.f32 1.0, %v3480
        %v3482 = vrcp.pop %v3469
        %v3483 = vmul.f32 1.0, %v3482
        %v3484 = vrcp.pop %v3470
        %v3485 = vmul.f32 1.0, %v3484
        %v3486 = vrcp.pop %v3471
        %v3487 = vmul.f32 1.0, %v3486
        %v3488 = vmul.f32 %v3381, %v3473
        %v3489 = vmul.f32 %v3383, %v3475
        %v3490 = vmul.f32 %v3424, %v3477
        %v3491 = vmul.f32 %v3426, %v3479
        %v3492 = vmul.f32 %v3385, %v3481
        %v3493 = vmul.f32 %v3387, %v3483
        %v3494 = vmul.f32 %v3428, %v3485
        %v3495 = vmul.f32 %v3430, %v3487
        %v3496 = vpack.c.bf16 %v3492, %v3488
        %v3497 = vpack.c.bf16 %v3493, %v3489
        %v3498 = vpack.c.bf16 %v3494, %v3490
        %v3499 = vpack.c.bf16 %v3495, %v3491
        %v3500 = vld [vmem:[%s1001] sm:$0xf]
        %v3501 = vld [vmem:[%s1001 + $0x4] sm:$0xf]
        %v3502 = vld [vmem:[%s1001 + $0x8] sm:$0xf]
        %v3503 = vld [vmem:[%s1001 + $0xc] sm:$0xf]
        %v3504 = vld [vmem:[%s1001 + $0x10] sm:$0xf]
        %v3505 = vld [vmem:[%s1001 + $0x14] sm:$0xf]
        %v3506 = vld [vmem:[%s1001 + $0x18] sm:$0xf]
        %v3507 = vld [vmem:[%s1001 + $0x1c] sm:$0xf]
        %v3508 = vld [vmem:[%s1001 + $0x20] sm:$0xf]
        %v3509 = vld [vmem:[%s1001 + $0x24] sm:$0xf]
        %v3510 = vld [vmem:[%s1001 + $0x28] sm:$0xf]
        %v3511 = vld [vmem:[%s1001 + $0x2c] sm:$0xf]
        %v3512 = vld [vmem:[%s1001 + $0x30] sm:$0xf]
        %v3513 = vld [vmem:[%s1001 + $0x34] sm:$0xf]
        %v3514 = vld [vmem:[%s1001 + $0x38] sm:$0xf]
        %v3515 = vld [vmem:[%s1001 + $0x3c] sm:$0xf]
        %v3516 = vld [vmem:[%s1001 + $0x40] sm:$0xf]
        %v3517 = vld [vmem:[%s1001 + $0x44] sm:$0xf]
        %v3518 = vld [vmem:[%s1001 + $0x48] sm:$0xf]
        %v3519 = vld [vmem:[%s1001 + $0x4c] sm:$0xf]
        %v3520 = vld [vmem:[%s1001 + $0x50] sm:$0xf]
        %v3521 = vld [vmem:[%s1001 + $0x54] sm:$0xf]
        %v3522 = vld [vmem:[%s1001 + $0x58] sm:$0xf]
        %v3523 = vld [vmem:[%s1001 + $0x5c] sm:$0xf]
        %v3524 = vld [vmem:[%s1001 + $0x60] sm:$0xf]
        %v3525 = vld [vmem:[%s1001 + $0x64] sm:$0xf]
        %v3526 = vld [vmem:[%s1001 + $0x68] sm:$0xf]
        %v3527 = vld [vmem:[%s1001 + $0x6c] sm:$0xf]
        %v3528 = vld [vmem:[%s1001 + $0x70] sm:$0xf]
        %v3529 = vld [vmem:[%s1001 + $0x74] sm:$0xf]
        %v3530 = vld [vmem:[%s1001 + $0x78] sm:$0xf]
        %v3531 = vld [vmem:[%s1001 + $0x7c] sm:$0xf]
        %v3532 = vld [vmem:[%s1001 + $0x80] sm:$0xf]
        %v3533 = vld [vmem:[%s1001 + $0x84] sm:$0xf]
        %v3534 = vld [vmem:[%s1001 + $0x88] sm:$0xf]
        %v3535 = vld [vmem:[%s1001 + $0x8c] sm:$0xf]
        %v3536 = vld [vmem:[%s1001 + $0x90] sm:$0xf]
        %v3537 = vld [vmem:[%s1001 + $0x94] sm:$0xf]
        %v3538 = vld [vmem:[%s1001 + $0x98] sm:$0xf]
        %v3539 = vld [vmem:[%s1001 + $0x9c] sm:$0xf]
        %v3540 = vld [vmem:[%s1001 + $0xa0] sm:$0xf]
        %v3541 = vld [vmem:[%s1001 + $0xa4] sm:$0xf]
        %v3542 = vld [vmem:[%s1001 + $0xa8] sm:$0xf]
        %v3543 = vld [vmem:[%s1001 + $0xac] sm:$0xf]
        %v3544 = vld [vmem:[%s1001 + $0xb0] sm:$0xf]
        %v3545 = vld [vmem:[%s1001 + $0xb4] sm:$0xf]
        %v3546 = vld [vmem:[%s1001 + $0xb8] sm:$0xf]
        %v3547 = vld [vmem:[%s1001 + $0xbc] sm:$0xf]
        %v3548 = vld [vmem:[%s1001 + $0xc0] sm:$0xf]
        %v3549 = vld [vmem:[%s1001 + $0xc4] sm:$0xf]
        %v3550 = vld [vmem:[%s1001 + $0xc8] sm:$0xf]
        %v3551 = vld [vmem:[%s1001 + $0xcc] sm:$0xf]
        %v3552 = vld [vmem:[%s1001 + $0xd0] sm:$0xf]
        %v3553 = vld [vmem:[%s1001 + $0xd4] sm:$0xf]
        %v3554 = vld [vmem:[%s1001 + $0xd8] sm:$0xf]
        %v3555 = vld [vmem:[%s1001 + $0xdc] sm:$0xf]
        %v3556 = vld [vmem:[%s1001 + $0xe0] sm:$0xf]
        %v3557 = vld [vmem:[%s1001 + $0xe4] sm:$0xf]
        %v3558 = vld [vmem:[%s1001 + $0xe8] sm:$0xf]
        %v3559 = vld [vmem:[%s1001 + $0xec] sm:$0xf]
        %v3560 = vld [vmem:[%s1001 + $0xf0] sm:$0xf]
        %v3561 = vld [vmem:[%s1001 + $0xf4] sm:$0xf]
        %v3562 = vld [vmem:[%s1001 + $0xf8] sm:$0xf]
        %v3563 = vld [vmem:[%s1001 + $0xfc] sm:$0xf]
        %v3564 = vld [vmem:[%s1009] sm:$0x1]
        %v3566 = vlaneseq
        %v3567 = vshrl.u32 %v3566, 7
        %v3568 = vsub.s32 0, %v3567
        %v3569 = vrot.slane %v3564, %v3568
        %v3635 = vunpack.c.l.b16 %v3500
        %v3636 = vunpack.c.l.b16 %v3501
        %v3637 = vunpack.c.l.b16 %v3502
        %v3638 = vunpack.c.l.b16 %v3503
        %v3639 = vunpack.c.l.b16 %v3504
        %v3640 = vunpack.c.l.b16 %v3505
        %v3641 = vunpack.c.l.b16 %v3506
        %v3642 = vunpack.c.l.b16 %v3507
        %v3643 = vunpack.c.l.b16 %v3508
        %v3644 = vunpack.c.l.b16 %v3509
        %v3645 = vunpack.c.l.b16 %v3510
        %v3646 = vunpack.c.l.b16 %v3511
        %v3647 = vunpack.c.l.b16 %v3512
        %v3648 = vunpack.c.l.b16 %v3513
        %v3649 = vunpack.c.l.b16 %v3514
        %v3650 = vunpack.c.l.b16 %v3515
        %v3651 = vunpack.c.l.b16 %v3516
        %v3652 = vunpack.c.l.b16 %v3517
        %v3653 = vunpack.c.l.b16 %v3518
        %v3654 = vunpack.c.l.b16 %v3519
        %v3655 = vunpack.c.l.b16 %v3520
        %v3656 = vunpack.c.l.b16 %v3521
        %v3657 = vunpack.c.l.b16 %v3522
        %v3658 = vunpack.c.l.b16 %v3523
        %v3659 = vunpack.c.l.b16 %v3524
        %v3660 = vunpack.c.l.b16 %v3525
        %v3661 = vunpack.c.l.b16 %v3526
        %v3662 = vunpack.c.l.b16 %v3527
        %v3663 = vunpack.c.l.b16 %v3528
        %v3664 = vunpack.c.l.b16 %v3529
        %v3665 = vunpack.c.l.b16 %v3530
        %v3666 = vunpack.c.l.b16 %v3531
        %v3667 = vunpack.c.l.b16 %v3532
        %v3668 = vunpack.c.l.b16 %v3533
        %v3669 = vunpack.c.l.b16 %v3534
        %v3670 = vunpack.c.l.b16 %v3535
        %v3671 = vunpack.c.l.b16 %v3536
        %v3672 = vunpack.c.l.b16 %v3537
        %v3673 = vunpack.c.l.b16 %v3538
        %v3674 = vunpack.c.l.b16 %v3539
        %v3675 = vunpack.c.l.b16 %v3540
        %v3676 = vunpack.c.l.b16 %v3541
        %v3677 = vunpack.c.l.b16 %v3542
        %v3678 = vunpack.c.l.b16 %v3543
        %v3679 = vunpack.c.l.b16 %v3544
        %v3680 = vunpack.c.l.b16 %v3545
        %v3681 = vunpack.c.l.b16 %v3546
        %v3682 = vunpack.c.l.b16 %v3547
        %v3683 = vunpack.c.l.b16 %v3548
        %v3684 = vunpack.c.l.b16 %v3549
        %v3685 = vunpack.c.l.b16 %v3550
        %v3686 = vunpack.c.l.b16 %v3551
        %v3687 = vunpack.c.l.b16 %v3552
        %v3688 = vunpack.c.l.b16 %v3553
        %v3689 = vunpack.c.l.b16 %v3554
        %v3690 = vunpack.c.l.b16 %v3555
        %v3691 = vunpack.c.l.b16 %v3556
        %v3692 = vunpack.c.l.b16 %v3557
        %v3693 = vunpack.c.l.b16 %v3558
        %v3694 = vunpack.c.l.b16 %v3559
        %v3695 = vunpack.c.l.b16 %v3560
        %v3696 = vunpack.c.l.b16 %v3561
        %v3697 = vunpack.c.l.b16 %v3562
        %v3698 = vunpack.c.l.b16 %v3563
        %v3699 = vpack.c.b16 %v3636, %v3635
        %v3700 = vpack.c.b16 %v3638, %v3637
        %v3701 = vpack.c.b16 %v3640, %v3639
        %v3702 = vpack.c.b16 %v3642, %v3641
        %v3703 = vpack.c.b16 %v3644, %v3643
        %v3704 = vpack.c.b16 %v3646, %v3645
        %v3705 = vpack.c.b16 %v3648, %v3647
        %v3706 = vpack.c.b16 %v3650, %v3649
        %v3707 = vpack.c.b16 %v3652, %v3651
        %v3708 = vpack.c.b16 %v3654, %v3653
        %v3709 = vpack.c.b16 %v3656, %v3655
        %v3710 = vpack.c.b16 %v3658, %v3657
        %v3711 = vpack.c.b16 %v3660, %v3659
        %v3712 = vpack.c.b16 %v3662, %v3661
        %v3713 = vpack.c.b16 %v3664, %v3663
        %v3714 = vpack.c.b16 %v3666, %v3665
        %v3715 = vpack.c.b16 %v3668, %v3667
        %v3716 = vpack.c.b16 %v3670, %v3669
        %v3717 = vpack.c.b16 %v3672, %v3671
        %v3718 = vpack.c.b16 %v3674, %v3673
        %v3719 = vpack.c.b16 %v3676, %v3675
        %v3720 = vpack.c.b16 %v3678, %v3677
        %v3721 = vpack.c.b16 %v3680, %v3679
        %v3722 = vpack.c.b16 %v3682, %v3681
        %v3723 = vpack.c.b16 %v3684, %v3683
        %v3724 = vpack.c.b16 %v3686, %v3685
        %v3725 = vpack.c.b16 %v3688, %v3687
        %v3726 = vpack.c.b16 %v3690, %v3689
        %v3727 = vpack.c.b16 %v3692, %v3691
        %v3728 = vpack.c.b16 %v3694, %v3693
        %v3729 = vpack.c.b16 %v3696, %v3695
        %v3730 = vpack.c.b16 %v3698, %v3697
        %3763 = vmatprep.subr.bf16.mxu0 0
        %3764 = vmatpush1.bf16.msra.mxu0 %v3699
        %3765 = vmatprep.subr.bf16.mxu0 0
        %3766 = vmatpush1.bf16.msra.mxu0 %v3700
        %3767 = vmatprep.subr.bf16.mxu0 0
        %3768 = vmatpush1.bf16.msra.mxu0 %v3701
        %3769 = vmatprep.subr.bf16.mxu0 0
        %3770 = vmatpush1.bf16.msra.mxu0 %v3702
        %3771 = vmatprep.subr.bf16.mxu0 0
        %3772 = vmatpush1.bf16.msra.mxu0 %v3703
        %3773 = vmatprep.subr.bf16.mxu0 0
        %3774 = vmatpush1.bf16.msra.mxu0 %v3704
        %3775 = vmatprep.subr.bf16.mxu0 0
        %3776 = vmatpush1.bf16.msra.mxu0 %v3705
        %3777 = vmatprep.subr.bf16.mxu0 0
        %3778 = vmatpush1.bf16.msra.mxu0 %v3706
        %3779 = vmatprep.subr.bf16.mxu0 0
        %3780 = vmatpush1.bf16.msra.mxu0 %v3707
        %3781 = vmatprep.subr.bf16.mxu0 0
        %3782 = vmatpush1.bf16.msra.mxu0 %v3708
        %3783 = vmatprep.subr.bf16.mxu0 0
        %3784 = vmatpush1.bf16.msra.mxu0 %v3709
        %3785 = vmatprep.subr.bf16.mxu0 0
        %3786 = vmatpush1.bf16.msra.mxu0 %v3710
        %3787 = vmatprep.subr.bf16.mxu0 0
        %3788 = vmatpush1.bf16.msra.mxu0 %v3711
        %3789 = vmatprep.subr.bf16.mxu0 0
        %3790 = vmatpush1.bf16.msra.mxu0 %v3712
        %3791 = vmatprep.subr.bf16.mxu0 0
        %3792 = vmatpush1.bf16.msra.mxu0 %v3713
        %3793 = vmatprep.subr.bf16.mxu0 0
        %3794 = vmatpush1.bf16.msra.mxu0 %v3714
        %3795 = vmatprep.mubr.bf16.mxu0 %v3497
        %3796 = vmatmul.mubr.bf16.gmra.mrb[0].mxu0 %v3496
        %v3797 = vpop.f32.mrb[0].mxu0
        %v3798 = vadd.f32 %v3569, %v3797
        %v3799 = vpop.f32.mrb[0].mxu0
        %v3800 = vpop.f32.mrb[0].mxu0
        %v3801 = vadd.f32 %v3569, %v3800
        %v3802 = vpop.f32.mrb[0].mxu0
        %3803 = vdwg.mxu0
        %3804 = vmatprep.subr.bf16.mxu0 0
        %3805 = vmatpush1.bf16.msra.mxu0 %v3715
        %3806 = vmatprep.subr.bf16.mxu0 0
        %3807 = vmatpush1.bf16.msra.mxu0 %v3716
        %3808 = vmatprep.subr.bf16.mxu0 0
        %3809 = vmatpush1.bf16.msra.mxu0 %v3717
        %3810 = vmatprep.subr.bf16.mxu0 0
        %3811 = vmatpush1.bf16.msra.mxu0 %v3718
        %3812 = vmatprep.subr.bf16.mxu0 0
        %3813 = vmatpush1.bf16.msra.mxu0 %v3719
        %3814 = vmatprep.subr.bf16.mxu0 0
        %3815 = vmatpush1.bf16.msra.mxu0 %v3720
        %3816 = vmatprep.subr.bf16.mxu0 0
        %3817 = vmatpush1.bf16.msra.mxu0 %v3721
        %3818 = vmatprep.subr.bf16.mxu0 0
        %3819 = vmatpush1.bf16.msra.mxu0 %v3722
        %3820 = vmatprep.subr.bf16.mxu0 0
        %3821 = vmatpush1.bf16.msra.mxu0 %v3723
        %3822 = vmatprep.subr.bf16.mxu0 0
        %3823 = vmatpush1.bf16.msra.mxu0 %v3724
        %3824 = vmatprep.subr.bf16.mxu0 0
        %3825 = vmatpush1.bf16.msra.mxu0 %v3725
        %3826 = vmatprep.subr.bf16.mxu0 0
        %3827 = vmatpush1.bf16.msra.mxu0 %v3726
        %3828 = vmatprep.subr.bf16.mxu0 0
        %3829 = vmatpush1.bf16.msra.mxu0 %v3727
        %3830 = vmatprep.subr.bf16.mxu0 0
        %3831 = vmatpush1.bf16.msra.mxu0 %v3728
        %3832 = vmatprep.subr.bf16.mxu0 0
        %3833 = vmatpush1.bf16.msra.mxu0 %v3729
        %3834 = vmatprep.subr.bf16.mxu0 0
        %3835 = vmatpush1.bf16.msra.mxu0 %v3730
        %3836 = vmatprep.mubr.bf16.mxu0 %v3499
        %3837 = vmatmul.mubr.bf16.gmra.mrb[0].mxu0 %v3498
        %v3838 = vpop.f32.mrb[0].mxu0
        %v3839 = vadd.f32 %v3798, %v3838
        %v3840 = vpop.f32.mrb[0].mxu0
        %v3841 = vpop.f32.mrb[0].mxu0
        %v3842 = vadd.f32 %v3801, %v3841
        %v3843 = vpop.f32.mrb[0].mxu0
        %3844 = vdwg.mxu0
        %v3845 = vadd.f32 %v3089, %v3839
        %v3846 = vadd.f32 %v3090, %v3842
        %3847 = vst [vmem:[#allocation2] sm:$0xff] %v3845
        %3848 = vst [vmem:[#allocation2 + $0x8] sm:$0xff] %v3846
        %p3849 = scmp.eq.s32.totalorder %s57, 1
        // Predicated region
        $region177: #{tpu_custom_call.1} parent=103 // pred_check
          %p3850 = pneg %p3849
        $region178: #{tpu_custom_call.1} parent=103 // pred_check_branch
          %3852 = sbr.rel (%p3850) target = $region180
        $region179: #{tpu_custom_call.1} parent=103 // pred_region
          %v3853 = vld [vmem:[#allocation28] sm:$0x1]
          %v3854 = vld [vmem:[#allocation30] sm:$0x1]
          %v3857 = vrot.slane %v3846, 7
          %vm3858 = vcmask 1041409
          %v3859 = vsel %vm3858, %v3857, %v3845
          %vm3861 = vcmask 1041408
          %v3862 = vsel %vm3861, %v3859, 0.0
          %3863 = vadd.xlane.f32.xlu0 %v3862
          %v3864 = vpop.xlane.xlu0 %3863
          %v3865 = vmul.f32 %v3864, %v1710
          %v3867 = vrot.slane %v3865, 1
          %v3870 = vsub.f32 %v3845, %v3865
          %v3871 = vsub.f32 %v3846, %v3867
          %v3872 = vmul.f32 %v3870, %v3870
          %v3873 = vmul.f32 %v3871, %v3871
          %v3876 = vrot.slane %v3873, 7
          %v3877 = vsel %vm3858, %v3876, %v3872
          %v3879 = vsel %vm3861, %v3877, 0.0
          %3880 = vadd.xlane.f32.xlu0 %v3879
          %v3881 = vpop.xlane.xlu0 %3880
          %v3882 = vmul.f32 %v3881, %v1710
          %v3883 = vadd.f32 %v3882, 1e-05
          %v3884 = vrsqrt.pop %v3883
          %v3886 = vrot.slane %v3884, 1
          %v3889 = vmul.f32 %v3870, %v3884
          %v3890 = vmul.f32 %v3871, %v3886
          %v3892 = vlaneseq
          %v3893 = vshrl.u32 %v3892, 7
          %v3894 = vsub.s32 0, %v3893
          %v3895 = vrot.slane %v3853, %v3894
          %v3897 = vmul.f32 %v3889, %v3895
          %v3898 = vmul.f32 %v3890, %v3895
          %v3900 = vlaneseq
          %v3901 = vshrl.u32 %v3900, 7
          %v3902 = vsub.s32 0, %v3901
          %v3903 = vrot.slane %v3854, %v3902
          %v3905 = vadd.f32 %v3897, %v3903
          %v3906 = vadd.f32 %v3898, %v3903
          %v3907 = vld [vmem:[%s20] sm:$0xf]
          %v3908 = vld [vmem:[%s20 + $0x4] sm:$0xf]
          %v3909 = vld [vmem:[%s20 + $0x8] sm:$0xf]
          %v3910 = vld [vmem:[%s20 + $0xc] sm:$0xf]
          %v3911 = vld [vmem:[%s20 + $0x10] sm:$0xf]
          %v3912 = vld [vmem:[%s20 + $0x14] sm:$0xf]
          %v3913 = vld [vmem:[%s20 + $0x18] sm:$0xf]
          %v3914 = vld [vmem:[%s20 + $0x1c] sm:$0xf]
          %v3915 = vld [vmem:[%s20 + $0x20] sm:$0xf]
          %v3916 = vld [vmem:[%s20 + $0x24] sm:$0xf]
          %v3917 = vld [vmem:[%s20 + $0x28] sm:$0xf]
          %v3918 = vld [vmem:[%s20 + $0x2c] sm:$0xf]
          %v3919 = vld [vmem:[%s20 + $0x30] sm:$0xf]
          %v3920 = vld [vmem:[%s20 + $0x34] sm:$0xf]
          %v3921 = vld [vmem:[%s20 + $0x38] sm:$0xf]
          %v3922 = vld [vmem:[%s20 + $0x3c] sm:$0xf]
          %v3923 = vpack.c.bf16 %v3905, %v3905
          %v3924 = vpack.c.bf16 %v3906, %v3906
          %v3927 = vunpack.c.l.b16 %v3923
          %v3928 = vunpack.c.l.b16 %v3924
          %v3929 = vrot.slane %v3928, 7
          %v3930 = vsel %vm3858, %v3929, %v3927
          %v3931 = vpack.c.b16 %v3930, %v3930
          %v3949 = vunpack.c.l.b16 %v3907
          %v3950 = vunpack.c.l.b16 %v3908
          %v3951 = vunpack.c.l.b16 %v3909
          %v3952 = vunpack.c.l.b16 %v3910
          %v3953 = vunpack.c.l.b16 %v3911
          %v3954 = vunpack.c.l.b16 %v3912
          %v3955 = vunpack.c.l.b16 %v3913
          %v3956 = vunpack.c.l.b16 %v3914
          %v3957 = vunpack.c.l.b16 %v3915
          %v3958 = vunpack.c.l.b16 %v3916
          %v3959 = vunpack.c.l.b16 %v3917
          %v3960 = vunpack.c.l.b16 %v3918
          %v3961 = vunpack.c.l.b16 %v3919
          %v3962 = vunpack.c.l.b16 %v3920
          %v3963 = vunpack.c.l.b16 %v3921
          %v3964 = vunpack.c.l.b16 %v3922
          %v3965 = vpack.c.b16 %v3950, %v3949
          %v3966 = vpack.c.b16 %v3952, %v3951
          %v3967 = vpack.c.b16 %v3954, %v3953
          %v3968 = vpack.c.b16 %v3956, %v3955
          %v3969 = vpack.c.b16 %v3958, %v3957
          %v3970 = vpack.c.b16 %v3960, %v3959
          %v3971 = vpack.c.b16 %v3962, %v3961
          %v3972 = vpack.c.b16 %v3964, %v3963
          %3981 = vmatprep.subr.bf16.mxu0 0
          %3982 = vmatpush1.bf16.msra.mxu0 %v3965
          %3983 = vmatprep.subr.bf16.mxu0 0
          %3984 = vmatpush1.bf16.msra.mxu0 %v3966
          %3985 = vmatprep.subr.bf16.mxu0 0
          %3986 = vmatpush1.bf16.msra.mxu0 %v3967
          %3987 = vmatprep.subr.bf16.mxu0 0
          %3988 = vmatpush1.bf16.msra.mxu0 %v3968
          %3989 = vmatprep.subr.bf16.mxu0 0
          %3990 = vmatpush1.bf16.msra.mxu0 %v3969
          %3991 = vmatprep.subr.bf16.mxu0 0
          %3992 = vmatpush1.bf16.msra.mxu0 %v3970
          %3993 = vmatprep.subr.bf16.mxu0 0
          %3994 = vmatpush1.bf16.msra.mxu0 %v3971
          %3995 = vmatprep.subr.bf16.mxu0 0
          %3996 = vmatpush1.bf16.msra.mxu0 %v3972
          %3997 = vmatprep.subr.bf16.mxu0 0
          %3998 = vmatpush1.bf16.msra.mxu0 0
          %3999 = vmatprep.subr.bf16.mxu0 0
          %4000 = vmatpush1.bf16.msra.mxu0 0
          %4001 = vmatprep.subr.bf16.mxu0 0
          %4002 = vmatpush1.bf16.msra.mxu0 0
          %4003 = vmatprep.subr.bf16.mxu0 0
          %4004 = vmatpush1.bf16.msra.mxu0 0
          %4005 = vmatprep.subr.bf16.mxu0 0
          %4006 = vmatpush1.bf16.msra.mxu0 0
          %4007 = vmatprep.subr.bf16.mxu0 0
          %4008 = vmatpush1.bf16.msra.mxu0 0
          %4009 = vmatprep.subr.bf16.mxu0 0
          %4010 = vmatpush1.bf16.msra.mxu0 0
          %4011 = vmatprep.subr.bf16.mxu0 0
          %4012 = vmatpush1.bf16.msra.mxu0 0
          %4013 = vmatprep.mubr.bf16.mxu0 0
          %4014 = vmatmul.mubr.bf16.gmra.mrb[0].mxu0 %v3931
          %v4015 = vpop.f32.mrb[0].mxu0
          %v4016 = vadd.f32 0.0, %v4015
          %v4017 = vpop.f32.mrb[0].mxu0
          %v4018 = vpop.f32.mrb[0].mxu0
          %v4019 = vpop.f32.mrb[0].mxu0
          %4020 = vdwg.mxu0
          %4021 = vst [vmem:[#allocation31] sm:$0x3] %v4016
        $region180: #{tpu_custom_call.1} parent=103 // pred_fallthru
          _
        // Predicated region
        $region181: #{tpu_custom_call.1} parent=103 // pred_check
          %p4022 = pneg %p588
        $region182: #{tpu_custom_call.1} parent=103 // pred_check_branch
          %4024 = sbr.rel (%p4022) target = $region184
        $region183: #{tpu_custom_call.1} parent=103 // pred_region
          %s4026 = ssub.s32 32, 32
          %4027 = vsyncadd [#allocation6], %s4026
          %s4028 = smul.addr %s56, 32
          %s4029 = scalar_lea.hbm %s21, %s4028
          %s4031 = sshll.u32 [#allocation31], 4
          %s4032 = int_to_ptr.vmem [resolvable:$true] %s4031
          %4034 = dma.vmem_to_hbm [thread:$0]  %s4032, 32, %s4029, [#allocation6]
        $region184: #{tpu_custom_call.1} parent=103 // pred_fallthru
          _
        // Predicated region
        $region185: #{tpu_custom_call.1} parent=103 // pred_check
          %p4035 = pneg %p588
        $region186: #{tpu_custom_call.1} parent=103 // pred_check_branch
          %4037 = sbr.rel (%p4035) target = $region188
        $region187: #{tpu_custom_call.1} parent=103 // pred_region
          %4038 = dma.done [#allocation6], 32
        $region188: #{tpu_custom_call.1} parent=103 // pred_fallthru
          _
      $region104: #{tpu_custom_call.1} parent=5 // pred_fallthru
        _
      %p4039 = scmp.le.s32.totalorder 2, %s47
      // Predicated region
      $region189: #{tpu_custom_call.1} parent=5 // pred_check
        %p4040 = pneg %p4039
      $region190: #{tpu_custom_call.1} parent=5 // pred_check_branch
        %4042 = sbr.rel (%p4040) target = $region192
      $region191: #{tpu_custom_call.1} parent=5 // pred_region
        %s4043 = ssub.s32 %s47, 2
      $region192: #{tpu_custom_call.1} parent=5 // pred_fallthru
        _
    $region6: #{tpu_custom_call.1} parent=1 // loop_footer
      %s51 = sadd.s32 1, %s47
    $region7: #{tpu_custom_call.1} parent=1 // loop_footer_branch
      %46 = sbr.rel target = $region3
    $region8: #{tpu_custom_call.1} parent=1 // loop_exit
      _
    %4044 = vsyncpa [#allocation5], 1
    %s4045 = scalar_lea.sflag [#allocation5], 1
    %4046 = vsyncpa %s4045, 1
    %4047 = vsyncpa [#allocation8], 1
    %4048 = vsyncpa [#allocation11], 1
    %4049 = vsyncpa [#allocation14], 1
    %s4050 = scalar_lea.sflag [#allocation14], 1
    %4051 = vsyncpa %s4050, 1
    %4052 = vsyncpa [#allocation17], 1
    %s4053 = scalar_lea.sflag [#allocation17], 1
    %4054 = vsyncpa %s4053, 1
    %4055 = vsyncpa [#allocation20], 1
    %s4056 = scalar_lea.sflag [#allocation20], 1
    %4057 = vsyncpa %s4056, 1
    %4058 = vsyncpa [#allocation23], 1
    %s4059 = scalar_lea.sflag [#allocation23], 1
    %4060 = vsyncpa %s4059, 1
    %4061 = vsyncpa [#allocation26], 1
    %s4062 = scalar_lea.sflag [#allocation26], 1
    %4063 = vsyncpa %s4062, 1
    %4064 = vsyncpa [#allocation29], 1
    %4065 = vsyncpa [#allocation6], 1
    %s4066 = scalar_lea.sflag [#allocation6], 1
    %4067 = vsyncpa %s4066, 1

</llo_original>
